<compile_context>
chip_gen: v6e
topology: v6e:2x2x1
jax: 0.10.0
libtpu: 0.0.40
codegen_flags: <defaults>
</compile_context>

<pallas_src>
import functools

import jax
import jax.numpy as jnp
from jax.experimental import pallas as pl
from jax.experimental.pallas import tpu as pltpu


def _round_up(x, m):
    return (x + m - 1) // m * m


# ---------------------------------------------------------------------------
# Fused DenseBlock kernel
# ---------------------------------------------------------------------------
def _dense_block_kernel(x_ref, gamma_ref, beta_ref, w_ref, b_ref,
                        out_ref, apad_ref, *, eps):
    N, H, W, c_pad = x_ref.shape
    num_convs = gamma_ref.shape[0]
    rows = N * H * W

    # Zero the padded-activation scratch ONCE; halo rows/cols stay zero across
    # blocks, only the interior is overwritten each block.
    apad_ref[...] = jnp.zeros_like(apad_ref)

    # Running concatenated feature map (channel-padded to 128 lanes).
    feat = x_ref[...].astype(jnp.float32).reshape(rows, c_pad)

    for i in range(num_convs):                          # static -> unrolled
        # ---- BatchNorm2d (training-mode batch stats) + ReLU ---------------
        mean = jnp.mean(feat, axis=0, keepdims=True)                # (1, Cp)
        var = jnp.mean(jnp.square(feat - mean), axis=0, keepdims=True)
        scale = jax.lax.rsqrt(var + eps) * gamma_ref[i]             # fold gamma
        shift = beta_ref[i] - mean * scale
        a = jnp.maximum(feat * scale + shift, 0.0)                  # (rows, Cp)

        # ---- write interior of the zero-padded activation (halo untouched) -
        apad_ref[:, 1:H + 1, 1:W + 1, :] = a.reshape(N, H, W, c_pad)

        # ---- 3x3 conv: one MXU matmul per ky, kx taps fused along K --------
        # NOTE: for v6e/v7x throughput `patch`/weights could be cast to bf16
        # here (keep preferred_element_type=f32); kept f32 to match reference.
        acc = jnp.zeros((rows, c_pad), jnp.float32)
        for ky in range(3):
            patch = jnp.concatenate(
                [apad_ref[:, ky:ky + H, kx:kx + W, :].reshape(rows, c_pad)
                 for kx in range(3)],
                axis=-1)                                            # (rows, 3*Cp)
            acc = acc + jnp.dot(patch, w_ref[i, ky],
                                preferred_element_type=jnp.float32)

        # ---- channel concat == dense add: this block's output channels were
        # routed (via zero-padded weight columns) to lanes that are still zero.
        feat = feat + acc + b_ref[i]

    out_ref[...] = feat.reshape(N, H, W, c_pad)         # lane-dense store


# ---------------------------------------------------------------------------
# Wrapper: layout / padding plumbing + pallas_call
# ---------------------------------------------------------------------------
def dense_block_forward(x_nchw, params, *, eps=1e-5):
    """DenseBlock forward.  x: NCHW float32.
    params[i] = (gamma (cin,), beta (cin,), w HWIO (3,3,cin,growth), b (growth,))."""
    N, c0, H, W = x_nchw.shape
    num_convs = len(params)
    growth = params[0][3].shape[0]
    c_total = c0 + num_convs * growth
    c_pad = _round_up(c_total, 128)
    w_scr = _round_up(W + 2, 8)

    # TODO(synk): for large feature maps, grid over (N, H) tiles with a 1-row
    # halo plus a separate batch-stats pass; this fused version assumes the
    # whole channel-padded feature map fits in VMEM (fine at these sizes).

    # NCHW -> NHWC, channels padded to c_pad lanes.
    x = jnp.transpose(x_nchw, (0, 2, 3, 1)).astype(jnp.float32)
    x = jnp.pad(x, ((0, 0), (0, 0), (0, 0), (0, c_pad - c0)))

    # Pad / route parameters: block i's conv output channels are placed at
    # lane offset (c0 + i*growth) of the concatenated, 128-padded channel axis.
    gammas = jnp.zeros((num_convs, 1, c_pad), jnp.float32)
    betas = jnp.zeros((num_convs, 1, c_pad), jnp.float32)
    ws = jnp.zeros((num_convs, 3, 3, c_pad, c_pad), jnp.float32)
    bs = jnp.zeros((num_convs, 1, c_pad), jnp.float32)
    for i, (gamma, beta, w, b) in enumerate(params):
        cin = c0 + i * growth
        lo = cin
        gammas = gammas.at[i, 0, :cin].set(gamma)
        betas = betas.at[i, 0, :cin].set(beta)
        ws = ws.at[i, :, :, :cin, lo:lo + growth].set(w)     # HWIO
        bs = bs.at[i, 0, lo:lo + growth].set(b)
    ws = ws.reshape(num_convs, 3, 3 * c_pad, c_pad)          # fuse (kx, cin) -> K

    kernel = functools.partial(_dense_block_kernel, eps=eps)
    vmem = pl.BlockSpec(memory_space=pltpu.MemorySpace.VMEM)
    out = pl.pallas_call(
        kernel,
        out_shape=jax.ShapeDtypeStruct((N, H, W, c_pad), jnp.float32),
        in_specs=[vmem] * 5,
        out_specs=vmem,
        scratch_shapes=[pltpu.VMEM((N, H + 2, w_scr, c_pad), jnp.float32)],
        compiler_params=pltpu.CompilerParams(vmem_limit_bytes=64 << 20),
    )(x, gammas, betas, ws, bs)

    # Drop channel padding, back to NCHW.
    return jnp.transpose(out[..., :c_total], (0, 3, 1, 2))


def init_dense_block_params(key, num_convs, input_channels, num_channels):
    """Deterministic params matching nn.BatchNorm2d / nn.Conv2d shapes."""
    params = []
    for i in range(num_convs):
        cin = input_channels + i * num_channels
        key, kw, kb = jax.random.split(key, 3)
        gamma = jnp.ones((cin,), jnp.float32)                # BN weight init
        beta = jnp.zeros((cin,), jnp.float32)                # BN bias init
        bound = 1.0 / ((cin * 9) ** 0.5)                     # ~ PyTorch conv init
        w = jax.random.uniform(kw, (3, 3, cin, num_channels), jnp.float32,
                               minval=-bound, maxval=bound)  # HWIO
        b = jax.random.uniform(kb, (num_channels,), jnp.float32,
                               minval=-bound, maxval=bound)
        params.append((gamma, beta, w, b))
    return params


# ---------------------------------------------------------------------------
# Pure-JAX reference (correctness cross-check)
# ---------------------------------------------------------------------------
def _ref_conv_block(x_nhwc, gamma, beta, w, b, eps=1e-5):
    mean = jnp.mean(x_nhwc, axis=(0, 1, 2), keepdims=True)
    var = jnp.mean((x_nhwc - mean) ** 2, axis=(0, 1, 2), keepdims=True)
    a = (x_nhwc - mean) * jax.lax.rsqrt(var + eps)
    a = a * gamma.reshape(1, 1, 1, -1) + beta.reshape(1, 1, 1, -1)
    a = jnp.maximum(a, 0.0)
    y = jax.lax.conv_general_dilated(
        a, w, window_strides=(1, 1), padding="SAME",
        dimension_numbers=("NHWC", "HWIO", "NHWC"))
    return y + b.reshape(1, 1, 1, -1)


def _ref_dense_block(x_nchw, params):
    x = jnp.transpose(x_nchw, (0, 2, 3, 1))
    for (gamma, beta, w, b) in params:
        y = _ref_conv_block(x, gamma, beta, w, b)
        x = jnp.concatenate([x, y], axis=-1)
    return jnp.transpose(x, (0, 3, 1, 2))


if __name__ == "__main__":
    key = jax.random.PRNGKey(0)
    k_x, k_p = jax.random.split(key)

    # Small shapes consistent with DenseBlock(num_convs=2, input_channels=4,
    # num_channels=8) applied to an NCHW input.
    N, C_in, H, W = 2, 4, 8, 8
    num_convs, num_channels = 2, 8

    x = jax.random.normal(k_x, (N, C_in, H, W), jnp.float32)
    params = init_dense_block_params(k_p, num_convs, C_in, num_channels)

    out = jax.block_until_ready(dense_block_forward(x, params))

    expected_channels = C_in + num_convs * num_channels    # 4 + 2*8 = 20
    assert out.shape == (N, expected_channels, H, W), out.shape

    ref = jax.block_until_ready(_ref_dense_block(x, params))
    assert jnp.allclose(out, ref, atol=1e-4, rtol=1e-4), float(
        jnp.max(jnp.abs(out - ref)))

    print("KERNEL_OK")
</pallas_src>

<mosaic_0001>
module attributes {stable_mosaic.version = 11 : i64} {
  func.func @_dense_block_kernel(%arg0: memref<2x8x8x128xf32, #tpu.memory_space<vmem>>, %arg1: memref<2x1x128xf32, #tpu.memory_space<vmem>>, %arg2: memref<2x1x128xf32, #tpu.memory_space<vmem>>, %arg3: memref<2x3x384x128xf32, #tpu.memory_space<vmem>>, %arg4: memref<2x1x128xf32, #tpu.memory_space<vmem>>, %arg5: memref<2x8x8x128xf32, #tpu.memory_space<vmem>>, %arg6: memref<2x10x16x128xf32, #tpu.memory_space<vmem>>) attributes {dimension_semantics = [], scalar_prefetch = 0 : i64, scratch_operands = 1 : i64, tpu.core_type = #tpu.core_type<tc>} {
    %cst = arith.constant 0.000000e+00 : f32
    %0 = vector.broadcast %cst : f32 to vector<2x10x16x128xf32>
    %c0 = arith.constant 0 : index
    %c0_0 = arith.constant 0 : index
    %c0_1 = arith.constant 0 : index
    %c0_2 = arith.constant 0 : index
    %1 = vector.load %arg6[%c0, %c0_0, %c0_1, %c0_2] : memref<2x10x16x128xf32, #tpu.memory_space<vmem>>, vector<2x10x16x128xf32>
    tpu.vector_store %arg6[%c0, %c0_0, %c0_1, %c0_2], %0 {strides = array<i32>} : memref<2x10x16x128xf32, #tpu.memory_space<vmem>>, vector<2x10x16x128xf32>,
    %c0_3 = arith.constant 0 : index
    %c0_4 = arith.constant 0 : index
    %c0_5 = arith.constant 0 : index
    %c0_6 = arith.constant 0 : index
    %2 = vector.load %arg0[%c0_3, %c0_4, %c0_5, %c0_6] : memref<2x8x8x128xf32, #tpu.memory_space<vmem>>, vector<2x8x8x128xf32>
    %3 = vector.shape_cast %2 : vector<2x8x8x128xf32> to vector<128x128xf32>
    %cst_7 = arith.constant dense<0.000000e+00> : vector<128xf32>
    %4 = vector.multi_reduction <add>, %3, %cst_7 [0] : vector<128x128xf32> to vector<128xf32>
    %5 = vector.shape_cast %4 : vector<128xf32> to vector<1x128xf32>
    %cst_8 = arith.constant 1.280000e+02 : f32
    %6 = vector.broadcast %cst_8 : f32 to vector<1x128xf32>
    %7 = arith.divf %5, %6 : vector<1x128xf32>
    %8 = vector.broadcast %7 : vector<1x128xf32> to vector<128x128xf32>
    %9 = arith.subf %3, %8 : vector<128x128xf32>
    %10 = arith.mulf %9, %9 : vector<128x128xf32>
    %cst_9 = arith.constant dense<0.000000e+00> : vector<128xf32>
    %11 = vector.multi_reduction <add>, %10, %cst_9 [0] : vector<128x128xf32> to vector<128xf32>
    %12 = vector.shape_cast %11 : vector<128xf32> to vector<1x128xf32>
    %cst_10 = arith.constant 1.280000e+02 : f32
    %13 = vector.broadcast %cst_10 : f32 to vector<1x128xf32>
    %14 = arith.divf %12, %13 : vector<1x128xf32>
    %cst_11 = arith.constant 9.99999974E-6 : f32
    %15 = vector.broadcast %cst_11 : f32 to vector<1x128xf32>
    %16 = arith.addf %14, %15 : vector<1x128xf32>
    %17 = math.rsqrt %16 : vector<1x128xf32>
    %c0_12 = arith.constant 0 : index
    %c0_13 = arith.constant 0 : index
    %c0_14 = arith.constant 0 : index
    %18 = vector.load %arg1[%c0_12, %c0_13, %c0_14] : memref<2x1x128xf32, #tpu.memory_space<vmem>>, vector<1x1x128xf32>
    %19 = vector.shape_cast %18 : vector<1x1x128xf32> to vector<1x128xf32>
    %20 = arith.mulf %17, %19 : vector<1x128xf32>
    %c0_15 = arith.constant 0 : index
    %c0_16 = arith.constant 0 : index
    %c0_17 = arith.constant 0 : index
    %21 = vector.load %arg2[%c0_15, %c0_16, %c0_17] : memref<2x1x128xf32, #tpu.memory_space<vmem>>, vector<1x1x128xf32>
    %22 = vector.shape_cast %21 : vector<1x1x128xf32> to vector<1x128xf32>
    %23 = arith.mulf %7, %20 : vector<1x128xf32>
    %24 = arith.subf %22, %23 : vector<1x128xf32>
    %25 = vector.broadcast %20 : vector<1x128xf32> to vector<128x128xf32>
    %26 = arith.mulf %3, %25 : vector<128x128xf32>
    %27 = vector.broadcast %24 : vector<1x128xf32> to vector<128x128xf32>
    %28 = arith.addf %26, %27 : vector<128x128xf32>
    %cst_18 = arith.constant 0.000000e+00 : f32
    %29 = vector.broadcast %cst_18 : f32 to vector<128x128xf32>
    %30 = arith.maximumf %28, %29 : vector<128x128xf32>
    %31 = vector.shape_cast %30 : vector<128x128xf32> to vector<2x8x8x128xf32>
    %c0_19 = arith.constant 0 : index
    %c1 = arith.constant 1 : index
    %c1_20 = arith.constant 1 : index
    %c0_21 = arith.constant 0 : index
    %32 = vector.load %arg6[%c0_19, %c1, %c1_20, %c0_21] : memref<2x10x16x128xf32, #tpu.memory_space<vmem>>, vector<2x8x8x128xf32>
    tpu.vector_store %arg6[%c0_19, %c1, %c1_20, %c0_21], %31 {strides = array<i32>} : memref<2x10x16x128xf32, #tpu.memory_space<vmem>>, vector<2x8x8x128xf32>,
    %cst_22 = arith.constant 0.000000e+00 : f32
    %33 = vector.broadcast %cst_22 : f32 to vector<128x128xf32>
    %c0_23 = arith.constant 0 : index
    %c0_24 = arith.constant 0 : index
    %c0_25 = arith.constant 0 : index
    %c0_26 = arith.constant 0 : index
    %34 = vector.load %arg6[%c0_23, %c0_24, %c0_25, %c0_26] : memref<2x10x16x128xf32, #tpu.memory_space<vmem>>, vector<2x8x8x128xf32>
    %35 = vector.shape_cast %34 : vector<2x8x8x128xf32> to vector<128x128xf32>
    %c0_27 = arith.constant 0 : index
    %c0_28 = arith.constant 0 : index
    %c1_29 = arith.constant 1 : index
    %c0_30 = arith.constant 0 : index
    %36 = vector.load %arg6[%c0_27, %c0_28, %c1_29, %c0_30] : memref<2x10x16x128xf32, #tpu.memory_space<vmem>>, vector<2x8x8x128xf32>
    %37 = vector.shape_cast %36 : vector<2x8x8x128xf32> to vector<128x128xf32>
    %c0_31 = arith.constant 0 : index
    %c0_32 = arith.constant 0 : index
    %c2 = arith.constant 2 : index
    %c0_33 = arith.constant 0 : index
    %38 = vector.load %arg6[%c0_31, %c0_32, %c2, %c0_33] : memref<2x10x16x128xf32, #tpu.memory_space<vmem>>, vector<2x8x8x128xf32>
    %39 = vector.shape_cast %38 : vector<2x8x8x128xf32> to vector<128x128xf32>
    %40 = tpu.concatenate %35, %37, %39 in 1 : vector<128x128xf32>, vector<128x128xf32>, vector<128x128xf32> -> vector<128x384xf32>
    %c0_34 = arith.constant 0 : index
    %c0_35 = arith.constant 0 : index
    %c0_36 = arith.constant 0 : index
    %c0_37 = arith.constant 0 : index
    %41 = vector.load %arg3[%c0_34, %c0_35, %c0_36, %c0_37] : memref<2x3x384x128xf32, #tpu.memory_space<vmem>>, vector<1x1x384x128xf32>
    %42 = vector.shape_cast %41 : vector<1x1x384x128xf32> to vector<384x128xf32>
    %cst_38 = arith.constant dense<0.000000e+00> : vector<128x128xf32>
    %43 = tpu.matmul %40, %42, %cst_38 {dimension_numbers = #tpu.dot_dimension_numbers<[1], [0], [0], [1], [0, 0, 1, 1], [], []>} : vector<128x384xf32>, vector<384x128xf32>, vector<128x128xf32> -> vector<128x128xf32>
    %44 = arith.addf %33, %43 : vector<128x128xf32>
    %c0_39 = arith.constant 0 : index
    %c1_40 = arith.constant 1 : index
    %c0_41 = arith.constant 0 : index
    %c0_42 = arith.constant 0 : index
    %45 = vector.load %arg6[%c0_39, %c1_40, %c0_41, %c0_42] : memref<2x10x16x128xf32, #tpu.memory_space<vmem>>, vector<2x8x8x128xf32>
    %46 = vector.shape_cast %45 : vector<2x8x8x128xf32> to vector<128x128xf32>
    %c0_43 = arith.constant 0 : index
    %c1_44 = arith.constant 1 : index
    %c1_45 = arith.constant 1 : index
    %c0_46 = arith.constant 0 : index
    %47 = vector.load %arg6[%c0_43, %c1_44, %c1_45, %c0_46] : memref<2x10x16x128xf32, #tpu.memory_space<vmem>>, vector<2x8x8x128xf32>
    %48 = vector.shape_cast %47 : vector<2x8x8x128xf32> to vector<128x128xf32>
    %c0_47 = arith.constant 0 : index
    %c1_48 = arith.constant 1 : index
    %c2_49 = arith.constant 2 : index
    %c0_50 = arith.constant 0 : index
    %49 = vector.load %arg6[%c0_47, %c1_48, %c2_49, %c0_50] : memref<2x10x16x128xf32, #tpu.memory_space<vmem>>, vector<2x8x8x128xf32>
    %50 = vector.shape_cast %49 : vector<2x8x8x128xf32> to vector<128x128xf32>
    %51 = tpu.concatenate %46, %48, %50 in 1 : vector<128x128xf32>, vector<128x128xf32>, vector<128x128xf32> -> vector<128x384xf32>
    %c0_51 = arith.constant 0 : index
    %c1_52 = arith.constant 1 : index
    %c0_53 = arith.constant 0 : index
    %c0_54 = arith.constant 0 : index
    %52 = vector.load %arg3[%c0_51, %c1_52, %c0_53, %c0_54] : memref<2x3x384x128xf32, #tpu.memory_space<vmem>>, vector<1x1x384x128xf32>
    %53 = vector.shape_cast %52 : vector<1x1x384x128xf32> to vector<384x128xf32>
    %cst_55 = arith.constant dense<0.000000e+00> : vector<128x128xf32>
    %54 = tpu.matmul %51, %53, %cst_55 {dimension_numbers = #tpu.dot_dimension_numbers<[1], [0], [0], [1], [0, 0, 1, 1], [], []>} : vector<128x384xf32>, vector<384x128xf32>, vector<128x128xf32> -> vector<128x128xf32>
    %55 = arith.addf %44, %54 : vector<128x128xf32>
    %c0_56 = arith.constant 0 : index
    %c2_57 = arith.constant 2 : index
    %c0_58 = arith.constant 0 : index
    %c0_59 = arith.constant 0 : index
    %56 = vector.load %arg6[%c0_56, %c2_57, %c0_58, %c0_59] : memref<2x10x16x128xf32, #tpu.memory_space<vmem>>, vector<2x8x8x128xf32>
    %57 = vector.shape_cast %56 : vector<2x8x8x128xf32> to vector<128x128xf32>
    %c0_60 = arith.constant 0 : index
    %c2_61 = arith.constant 2 : index
    %c1_62 = arith.constant 1 : index
    %c0_63 = arith.constant 0 : index
    %58 = vector.load %arg6[%c0_60, %c2_61, %c1_62, %c0_63] : memref<2x10x16x128xf32, #tpu.memory_space<vmem>>, vector<2x8x8x128xf32>
    %59 = vector.shape_cast %58 : vector<2x8x8x128xf32> to vector<128x128xf32>
    %c0_64 = arith.constant 0 : index
    %c2_65 = arith.constant 2 : index
    %c2_66 = arith.constant 2 : index
    %c0_67 = arith.constant 0 : index
    %60 = vector.load %arg6[%c0_64, %c2_65, %c2_66, %c0_67] : memref<2x10x16x128xf32, #tpu.memory_space<vmem>>, vector<2x8x8x128xf32>
    %61 = vector.shape_cast %60 : vector<2x8x8x128xf32> to vector<128x128xf32>
    %62 = tpu.concatenate %57, %59, %61 in 1 : vector<128x128xf32>, vector<128x128xf32>, vector<128x128xf32> -> vector<128x384xf32>
    %c0_68 = arith.constant 0 : index
    %c2_69 = arith.constant 2 : index
    %c0_70 = arith.constant 0 : index
    %c0_71 = arith.constant 0 : index
    %63 = vector.load %arg3[%c0_68, %c2_69, %c0_70, %c0_71] : memref<2x3x384x128xf32, #tpu.memory_space<vmem>>, vector<1x1x384x128xf32>
    %64 = vector.shape_cast %63 : vector<1x1x384x128xf32> to vector<384x128xf32>
    %cst_72 = arith.constant dense<0.000000e+00> : vector<128x128xf32>
    %65 = tpu.matmul %62, %64, %cst_72 {dimension_numbers = #tpu.dot_dimension_numbers<[1], [0], [0], [1], [0, 0, 1, 1], [], []>} : vector<128x384xf32>, vector<384x128xf32>, vector<128x128xf32> -> vector<128x128xf32>
    %66 = arith.addf %55, %65 : vector<128x128xf32>
    %67 = arith.addf %3, %66 : vector<128x128xf32>
    %c0_73 = arith.constant 0 : index
    %c0_74 = arith.constant 0 : index
    %c0_75 = arith.constant 0 : index
    %68 = vector.load %arg4[%c0_73, %c0_74, %c0_75] : memref<2x1x128xf32, #tpu.memory_space<vmem>>, vector<1x1x128xf32>
    %69 = vector.shape_cast %68 : vector<1x1x128xf32> to vector<1x128xf32>
    %70 = vector.broadcast %69 : vector<1x128xf32> to vector<128x128xf32>
    %71 = arith.addf %67, %70 : vector<128x128xf32>
    %cst_76 = arith.constant dense<0.000000e+00> : vector<128xf32>
    %72 = vector.multi_reduction <add>, %71, %cst_76 [0] : vector<128x128xf32> to vector<128xf32>
    %73 = vector.shape_cast %72 : vector<128xf32> to vector<1x128xf32>
    %cst_77 = arith.constant 1.280000e+02 : f32
    %74 = vector.broadcast %cst_77 : f32 to vector<1x128xf32>
    %75 = arith.divf %73, %74 : vector<1x128xf32>
    %76 = vector.broadcast %75 : vector<1x128xf32> to vector<128x128xf32>
    %77 = arith.subf %71, %76 : vector<128x128xf32>
    %78 = arith.mulf %77, %77 : vector<128x128xf32>
    %cst_78 = arith.constant dense<0.000000e+00> : vector<128xf32>
    %79 = vector.multi_reduction <add>, %78, %cst_78 [0] : vector<128x128xf32> to vector<128xf32>
    %80 = vector.shape_cast %79 : vector<128xf32> to vector<1x128xf32>
    %cst_79 = arith.constant 1.280000e+02 : f32
    %81 = vector.broadcast %cst_79 : f32 to vector<1x128xf32>
    %82 = arith.divf %80, %81 : vector<1x128xf32>
    %cst_80 = arith.constant 9.99999974E-6 : f32
    %83 = vector.broadcast %cst_80 : f32 to vector<1x128xf32>
    %84 = arith.addf %82, %83 : vector<1x128xf32>
    %85 = math.rsqrt %84 : vector<1x128xf32>
    %c1_81 = arith.constant 1 : index
    %c0_82 = arith.constant 0 : index
    %c0_83 = arith.constant 0 : index
    %86 = vector.load %arg1[%c1_81, %c0_82, %c0_83] : memref<2x1x128xf32, #tpu.memory_space<vmem>>, vector<1x1x128xf32>
    %87 = vector.shape_cast %86 : vector<1x1x128xf32> to vector<1x128xf32>
    %88 = arith.mulf %85, %87 : vector<1x128xf32>
    %c1_84 = arith.constant 1 : index
    %c0_85 = arith.constant 0 : index
    %c0_86 = arith.constant 0 : index
    %89 = vector.load %arg2[%c1_84, %c0_85, %c0_86] : memref<2x1x128xf32, #tpu.memory_space<vmem>>, vector<1x1x128xf32>
    %90 = vector.shape_cast %89 : vector<1x1x128xf32> to vector<1x128xf32>
    %91 = arith.mulf %75, %88 : vector<1x128xf32>
    %92 = arith.subf %90, %91 : vector<1x128xf32>
    %93 = vector.broadcast %88 : vector<1x128xf32> to vector<128x128xf32>
    %94 = arith.mulf %71, %93 : vector<128x128xf32>
    %95 = vector.broadcast %92 : vector<1x128xf32> to vector<128x128xf32>
    %96 = arith.addf %94, %95 : vector<128x128xf32>
    %cst_87 = arith.constant 0.000000e+00 : f32
    %97 = vector.broadcast %cst_87 : f32 to vector<128x128xf32>
    %98 = arith.maximumf %96, %97 : vector<128x128xf32>
    %99 = vector.shape_cast %98 : vector<128x128xf32> to vector<2x8x8x128xf32>
    %c0_88 = arith.constant 0 : index
    %c1_89 = arith.constant 1 : index
    %c1_90 = arith.constant 1 : index
    %c0_91 = arith.constant 0 : index
    %100 = vector.load %arg6[%c0_88, %c1_89, %c1_90, %c0_91] : memref<2x10x16x128xf32, #tpu.memory_space<vmem>>, vector<2x8x8x128xf32>
    tpu.vector_store %arg6[%c0_88, %c1_89, %c1_90, %c0_91], %99 {strides = array<i32>} : memref<2x10x16x128xf32, #tpu.memory_space<vmem>>, vector<2x8x8x128xf32>,
    %cst_92 = arith.constant 0.000000e+00 : f32
    %101 = vector.broadcast %cst_92 : f32 to vector<128x128xf32>
    %c0_93 = arith.constant 0 : index
    %c0_94 = arith.constant 0 : index
    %c0_95 = arith.constant 0 : index
    %c0_96 = arith.constant 0 : index
    %102 = vector.load %arg6[%c0_93, %c0_94, %c0_95, %c0_96] : memref<2x10x16x128xf32, #tpu.memory_space<vmem>>, vector<2x8x8x128xf32>
    %103 = vector.shape_cast %102 : vector<2x8x8x128xf32> to vector<128x128xf32>
    %c0_97 = arith.constant 0 : index
    %c0_98 = arith.constant 0 : index
    %c1_99 = arith.constant 1 : index
    %c0_100 = arith.constant 0 : index
    %104 = vector.load %arg6[%c0_97, %c0_98, %c1_99, %c0_100] : memref<2x10x16x128xf32, #tpu.memory_space<vmem>>, vector<2x8x8x128xf32>
    %105 = vector.shape_cast %104 : vector<2x8x8x128xf32> to vector<128x128xf32>
    %c0_101 = arith.constant 0 : index
    %c0_102 = arith.constant 0 : index
    %c2_103 = arith.constant 2 : index
    %c0_104 = arith.constant 0 : index
    %106 = vector.load %arg6[%c0_101, %c0_102, %c2_103, %c0_104] : memref<2x10x16x128xf32, #tpu.memory_space<vmem>>, vector<2x8x8x128xf32>
    %107 = vector.shape_cast %106 : vector<2x8x8x128xf32> to vector<128x128xf32>
    %108 = tpu.concatenate %103, %105, %107 in 1 : vector<128x128xf32>, vector<128x128xf32>, vector<128x128xf32> -> vector<128x384xf32>
    %c1_105 = arith.constant 1 : index
    %c0_106 = arith.constant 0 : index
    %c0_107 = arith.constant 0 : index
    %c0_108 = arith.constant 0 : index
    %109 = vector.load %arg3[%c1_105, %c0_106, %c0_107, %c0_108] : memref<2x3x384x128xf32, #tpu.memory_space<vmem>>, vector<1x1x384x128xf32>
    %110 = vector.shape_cast %109 : vector<1x1x384x128xf32> to vector<384x128xf32>
    %cst_109 = arith.constant dense<0.000000e+00> : vector<128x128xf32>
    %111 = tpu.matmul %108, %110, %cst_109 {dimension_numbers = #tpu.dot_dimension_numbers<[1], [0], [0], [1], [0, 0, 1, 1], [], []>} : vector<128x384xf32>, vector<384x128xf32>, vector<128x128xf32> -> vector<128x128xf32>
    %112 = arith.addf %101, %111 : vector<128x128xf32>
    %c0_110 = arith.constant 0 : index
    %c1_111 = arith.constant 1 : index
    %c0_112 = arith.constant 0 : index
    %c0_113 = arith.constant 0 : index
    %113 = vector.load %arg6[%c0_110, %c1_111, %c0_112, %c0_113] : memref<2x10x16x128xf32, #tpu.memory_space<vmem>>, vector<2x8x8x128xf32>
    %114 = vector.shape_cast %113 : vector<2x8x8x128xf32> to vector<128x128xf32>
    %c0_114 = arith.constant 0 : index
    %c1_115 = arith.constant 1 : index
    %c1_116 = arith.constant 1 : index
    %c0_117 = arith.constant 0 : index
    %115 = vector.load %arg6[%c0_114, %c1_115, %c1_116, %c0_117] : memref<2x10x16x128xf32, #tpu.memory_space<vmem>>, vector<2x8x8x128xf32>
    %116 = vector.shape_cast %115 : vector<2x8x8x128xf32> to vector<128x128xf32>
    %c0_118 = arith.constant 0 : index
    %c1_119 = arith.constant 1 : index
    %c2_120 = arith.constant 2 : index
    %c0_121 = arith.constant 0 : index
    %117 = vector.load %arg6[%c0_118, %c1_119, %c2_120, %c0_121] : memref<2x10x16x128xf32, #tpu.memory_space<vmem>>, vector<2x8x8x128xf32>
    %118 = vector.shape_cast %117 : vector<2x8x8x128xf32> to vector<128x128xf32>
    %119 = tpu.concatenate %114, %116, %118 in 1 : vector<128x128xf32>, vector<128x128xf32>, vector<128x128xf32> -> vector<128x384xf32>
    %c1_122 = arith.constant 1 : index
    %c1_123 = arith.constant 1 : index
    %c0_124 = arith.constant 0 : index
    %c0_125 = arith.constant 0 : index
    %120 = vector.load %arg3[%c1_122, %c1_123, %c0_124, %c0_125] : memref<2x3x384x128xf32, #tpu.memory_space<vmem>>, vector<1x1x384x128xf32>
    %121 = vector.shape_cast %120 : vector<1x1x384x128xf32> to vector<384x128xf32>
    %cst_126 = arith.constant dense<0.000000e+00> : vector<128x128xf32>
    %122 = tpu.matmul %119, %121, %cst_126 {dimension_numbers = #tpu.dot_dimension_numbers<[1], [0], [0], [1], [0, 0, 1, 1], [], []>} : vector<128x384xf32>, vector<384x128xf32>, vector<128x128xf32> -> vector<128x128xf32>
    %123 = arith.addf %112, %122 : vector<128x128xf32>
    %c0_127 = arith.constant 0 : index
    %c2_128 = arith.constant 2 : index
    %c0_129 = arith.constant 0 : index
    %c0_130 = arith.constant 0 : index
    %124 = vector.load %arg6[%c0_127, %c2_128, %c0_129, %c0_130] : memref<2x10x16x128xf32, #tpu.memory_space<vmem>>, vector<2x8x8x128xf32>
    %125 = vector.shape_cast %124 : vector<2x8x8x128xf32> to vector<128x128xf32>
    %c0_131 = arith.constant 0 : index
    %c2_132 = arith.constant 2 : index
    %c1_133 = arith.constant 1 : index
    %c0_134 = arith.constant 0 : index
    %126 = vector.load %arg6[%c0_131, %c2_132, %c1_133, %c0_134] : memref<2x10x16x128xf32, #tpu.memory_space<vmem>>, vector<2x8x8x128xf32>
    %127 = vector.shape_cast %126 : vector<2x8x8x128xf32> to vector<128x128xf32>
    %c0_135 = arith.constant 0 : index
    %c2_136 = arith.constant 2 : index
    %c2_137 = arith.constant 2 : index
    %c0_138 = arith.constant 0 : index
    %128 = vector.load %arg6[%c0_135, %c2_136, %c2_137, %c0_138] : memref<2x10x16x128xf32, #tpu.memory_space<vmem>>, vector<2x8x8x128xf32>
    %129 = vector.shape_cast %128 : vector<2x8x8x128xf32> to vector<128x128xf32>
    %130 = tpu.concatenate %125, %127, %129 in 1 : vector<128x128xf32>, vector<128x128xf32>, vector<128x128xf32> -> vector<128x384xf32>
    %c1_139 = arith.constant 1 : index
    %c2_140 = arith.constant 2 : index
    %c0_141 = arith.constant 0 : index
    %c0_142 = arith.constant 0 : index
    %131 = vector.load %arg3[%c1_139, %c2_140, %c0_141, %c0_142] : memref<2x3x384x128xf32, #tpu.memory_space<vmem>>, vector<1x1x384x128xf32>
    %132 = vector.shape_cast %131 : vector<1x1x384x128xf32> to vector<384x128xf32>
    %cst_143 = arith.constant dense<0.000000e+00> : vector<128x128xf32>
    %133 = tpu.matmul %130, %132, %cst_143 {dimension_numbers = #tpu.dot_dimension_numbers<[1], [0], [0], [1], [0, 0, 1, 1], [], []>} : vector<128x384xf32>, vector<384x128xf32>, vector<128x128xf32> -> vector<128x128xf32>
    %134 = arith.addf %123, %133 : vector<128x128xf32>
    %135 = arith.addf %71, %134 : vector<128x128xf32>
    %c1_144 = arith.constant 1 : index
    %c0_145 = arith.constant 0 : index
    %c0_146 = arith.constant 0 : index
    %136 = vector.load %arg4[%c1_144, %c0_145, %c0_146] : memref<2x1x128xf32, #tpu.memory_space<vmem>>, vector<1x1x128xf32>
    %137 = vector.shape_cast %136 : vector<1x1x128xf32> to vector<1x128xf32>
    %138 = vector.broadcast %137 : vector<1x128xf32> to vector<128x128xf32>
    %139 = arith.addf %135, %138 : vector<128x128xf32>
    %140 = vector.shape_cast %139 : vector<128x128xf32> to vector<2x8x8x128xf32>
    %c0_147 = arith.constant 0 : index
    %c0_148 = arith.constant 0 : index
    %c0_149 = arith.constant 0 : index
    %c0_150 = arith.constant 0 : index
    %141 = vector.load %arg5[%c0_147, %c0_148, %c0_149, %c0_150] : memref<2x8x8x128xf32, #tpu.memory_space<vmem>>, vector<2x8x8x128xf32>
    tpu.vector_store %arg5[%c0_147, %c0_148, %c0_149, %c0_150], %140 {strides = array<i32>} : memref<2x8x8x128xf32, #tpu.memory_space<vmem>>, vector<2x8x8x128xf32>,
    return
  }
}

</mosaic_0001>

<llo_original>
// kernel: tpu_custom_call.1
$region0: #{tpu_custom_call.1}
  #allocation0 [shape = 'u32[]', space=smem, size = 0x4, offset = 0x4, fixed_abs, tag = 'smem constant byte address 0x4 - core index']
  #allocation1 [shape = 'u32[144,128]{1,0:T(1,128)}', space=vmem, size = 0x12000, scoped, tag = 'internal scratch']
  #allocation2 [shape = 'f32[2,10,16,128]{3,2,1,0:T(8,128)}', space=vmem, size = 0x28000, scoped, tag = 'scratch operand']
  %s0 = inlined_call_operand.hbm [shape: f32[2,8,8,128], index: 0, kind: input, shape index: {}]
  %s1 = inlined_call_operand.hbm [shape: f32[2,1,128], index: 1, kind: input, shape index: {}]
  %s2 = inlined_call_operand.hbm [shape: f32[2,1,128], index: 2, kind: input, shape index: {}]
  %s3 = inlined_call_operand.hbm [shape: f32[2,3,384,128], index: 3, kind: input, shape index: {}]
  %s4 = inlined_call_operand.hbm [shape: f32[2,1,128], index: 4, kind: input, shape index: {}]
  %s5 = inlined_call_operand.hbm [shape: f32[2,8,8,128], index: 5, kind: output, shape index: {}]
  %s6 = sld [smem:[#allocation0]]
  $region50: #{tpu_custom_call.1} parent=0
    _
  %s8 = ssub.s32 1, %s6
  %s9 = scalar_select 0, %s8, %s6
  $region1: #{tpu_custom_call.1} parent=0
    #allocation3 [shape = 'u8[65536]{0}', space=vmem, size = 0x10000, scoped, tag = 'input window, operand 0, single buffered']
    #allocation4 [shape = 's32[1]{0}', space=sflag, size = 0x4, scoped, tag = 'scoped memory for tpu_custom_call.1']
    #allocation5 [shape = 's32[1]{0}', space=sflag, size = 0x4, scoped, tag = 'scoped memory for tpu_custom_call.1']
    #allocation6 [shape = 'u8[1024]{0}', space=vmem, size = 0x400, scoped, tag = 'input window, operand 1, single buffered']
    #allocation7 [shape = 's32[1]{0}', space=sflag, size = 0x4, scoped, tag = 'scoped memory for tpu_custom_call.1']
    #allocation8 [shape = 'u8[1024]{0}', space=vmem, size = 0x400, scoped, tag = 'input window, operand 2, single buffered']
    #allocation9 [shape = 'u8[1179648]{0}', space=vmem, size = 0x120000, scoped, tag = 'input window, operand 3, single buffered']
    #allocation10 [shape = 's32[1]{0}', space=sflag, size = 0x4, scoped, tag = 'scoped memory for tpu_custom_call.1']
    #allocation11 [shape = 'u8[1024]{0}', space=vmem, size = 0x400, scoped, tag = 'input window, operand 4, single buffered']
    #allocation12 [shape = 'u8[65536]{0}', space=vmem, size = 0x10000, scoped, tag = 'output window, operand 0, single buffered']
    %10 = vsyncpa [#allocation4], 0
    %11 = vsyncpa [#allocation7], 0
    %12 = vsyncpa [#allocation10], 0
    %13 = vsyncpa [#allocation5], 0
    // Predicated region
    $region2: #{tpu_custom_call.1} parent=1 // pred_check
      _
    $region3: #{tpu_custom_call.1} parent=1 // pred_check_branch
      %15 = sbr.rel (0) target = $region5
    $region4: #{tpu_custom_call.1} parent=1 // pred_region
      %s17 = ssub.s32 2048, 2048
      %18 = vsyncadd [#allocation4], %s17
      %s19 = sshll.u32 [#allocation3], 4
      %s20 = int_to_ptr.vmem [resolvable:$true] %s19
      %25 = dma.hbm_to_vmem [thread:$0]  %s0, 2048, %s20, [#allocation4], 128, 128, 8
    $region5: #{tpu_custom_call.1} parent=1 // pred_fallthru
      _
    // Predicated region
    $region6: #{tpu_custom_call.1} parent=1 // pred_check
      _
    $region7: #{tpu_custom_call.1} parent=1 // pred_check_branch
      %27 = sbr.rel (0) target = $region9
    $region8: #{tpu_custom_call.1} parent=1 // pred_region
      %s29 = ssub.s32 32, 32
      %30 = vsyncadd [#allocation7], %s29
      %s31 = sshll.u32 [#allocation6], 4
      %s32 = int_to_ptr.vmem [resolvable:$true] %s31
      %37 = dma.hbm_to_vmem [thread:$0]  %s1, 32, %s32, [#allocation7], 16, 16, 1
    $region9: #{tpu_custom_call.1} parent=1 // pred_fallthru
      _
    // Predicated region
    $region10: #{tpu_custom_call.1} parent=1 // pred_check
      _
    $region11: #{tpu_custom_call.1} parent=1 // pred_check_branch
      %39 = sbr.rel (0) target = $region13
    $region12: #{tpu_custom_call.1} parent=1 // pred_region
      %s41 = ssub.s32 32, 32
      %42 = vsyncadd [#allocation7], %s41
      %s43 = sshll.u32 [#allocation8], 4
      %s44 = int_to_ptr.vmem [resolvable:$true] %s43
      %49 = dma.hbm_to_vmem [thread:$0]  %s2, 32, %s44, [#allocation7], 16, 16, 1
    $region13: #{tpu_custom_call.1} parent=1 // pred_fallthru
      _
    // Predicated region
    $region14: #{tpu_custom_call.1} parent=1 // pred_check
      _
    $region15: #{tpu_custom_call.1} parent=1 // pred_check_branch
      %51 = sbr.rel (0) target = $region17
    $region16: #{tpu_custom_call.1} parent=1 // pred_region
      %s53 = ssub.s32 36864, 36864
      %54 = vsyncadd [#allocation10], %s53
      %s55 = sshll.u32 [#allocation9], 4
      %s56 = int_to_ptr.vmem [resolvable:$true] %s55
      %61 = dma.hbm_to_vmem [thread:$0]  %s3, 36864, %s56, [#allocation10], 128, 128, 8
    $region17: #{tpu_custom_call.1} parent=1 // pred_fallthru
      _
    // Predicated region
    $region18: #{tpu_custom_call.1} parent=1 // pred_check
      _
    $region19: #{tpu_custom_call.1} parent=1 // pred_check_branch
      %63 = sbr.rel (0) target = $region21
    $region20: #{tpu_custom_call.1} parent=1 // pred_region
      %s65 = ssub.s32 32, 32
      %66 = vsyncadd [#allocation10], %s65
      %s67 = sshll.u32 [#allocation11], 4
      %s68 = int_to_ptr.vmem [resolvable:$true] %s67
      %73 = dma.hbm_to_vmem [thread:$0]  %s4, 32, %s68, [#allocation10], 16, 16, 1
    $region21: #{tpu_custom_call.1} parent=1 // pred_fallthru
      _
    // Predicated region
    $region22: #{tpu_custom_call.1} parent=1 // pred_check
      _
    $region23: #{tpu_custom_call.1} parent=1 // pred_check_branch
      %75 = sbr.rel (0) target = $region25
    $region24: #{tpu_custom_call.1} parent=1 // pred_region
      %76 = dma.done [#allocation4], 2048
    $region25: #{tpu_custom_call.1} parent=1 // pred_fallthru
      _
    // Predicated region
    $region26: #{tpu_custom_call.1} parent=1 // pred_check
      _
    $region27: #{tpu_custom_call.1} parent=1 // pred_check_branch
      %78 = sbr.rel (0) target = $region29
    $region28: #{tpu_custom_call.1} parent=1 // pred_region
      %79 = dma.done [#allocation7], 32
    $region29: #{tpu_custom_call.1} parent=1 // pred_fallthru
      _
    // Predicated region
    $region30: #{tpu_custom_call.1} parent=1 // pred_check
      _
    $region31: #{tpu_custom_call.1} parent=1 // pred_check_branch
      %81 = sbr.rel (0) target = $region33
    $region32: #{tpu_custom_call.1} parent=1 // pred_region
      %82 = dma.done [#allocation7], 32
    $region33: #{tpu_custom_call.1} parent=1 // pred_fallthru
      _
    // Predicated region
    $region34: #{tpu_custom_call.1} parent=1 // pred_check
      _
    $region35: #{tpu_custom_call.1} parent=1 // pred_check_branch
      %84 = sbr.rel (0) target = $region37
    $region36: #{tpu_custom_call.1} parent=1 // pred_region
      %85 = dma.done [#allocation10], 36864
    $region37: #{tpu_custom_call.1} parent=1 // pred_fallthru
      _
    // Predicated region
    $region38: #{tpu_custom_call.1} parent=1 // pred_check
      _
    $region39: #{tpu_custom_call.1} parent=1 // pred_check_branch
      %87 = sbr.rel (0) target = $region41
    $region40: #{tpu_custom_call.1} parent=1 // pred_region
      %88 = dma.done [#allocation10], 32
    $region41: #{tpu_custom_call.1} parent=1 // pred_fallthru
      _
    %89 = vst [vmem:[#allocation2] sm:$0xff] 0.0
    %90 = vst [vmem:[#allocation2 + $0x8] sm:$0xff] 0.0
    %91 = vst [vmem:[#allocation2 + $0x10] sm:$0xff] 0.0
    %92 = vst [vmem:[#allocation2 + $0x18] sm:$0xff] 0.0
    %93 = vst [vmem:[#allocation2 + $0x20] sm:$0xff] 0.0
    %94 = vst [vmem:[#allocation2 + $0x28] sm:$0xff] 0.0
    %95 = vst [vmem:[#allocation2 + $0x30] sm:$0xff] 0.0
    %96 = vst [vmem:[#allocation2 + $0x38] sm:$0xff] 0.0
    %97 = vst [vmem:[#allocation2 + $0x40] sm:$0xff] 0.0
    %98 = vst [vmem:[#allocation2 + $0x48] sm:$0xff] 0.0
    %99 = vst [vmem:[#allocation2 + $0x50] sm:$0xff] 0.0
    %100 = vst [vmem:[#allocation2 + $0x58] sm:$0xff] 0.0
    %101 = vst [vmem:[#allocation2 + $0x60] sm:$0xff] 0.0
    %102 = vst [vmem:[#allocation2 + $0x68] sm:$0xff] 0.0
    %103 = vst [vmem:[#allocation2 + $0x70] sm:$0xff] 0.0
    %104 = vst [vmem:[#allocation2 + $0x78] sm:$0xff] 0.0
    %105 = vst [vmem:[#allocation2 + $0x80] sm:$0xff] 0.0
    %106 = vst [vmem:[#allocation2 + $0x88] sm:$0xff] 0.0
    %107 = vst [vmem:[#allocation2 + $0x90] sm:$0xff] 0.0
    %108 = vst [vmem:[#allocation2 + $0x98] sm:$0xff] 0.0
    %109 = vst [vmem:[#allocation2 + $0xa0] sm:$0xff] 0.0
    %110 = vst [vmem:[#allocation2 + $0xa8] sm:$0xff] 0.0
    %111 = vst [vmem:[#allocation2 + $0xb0] sm:$0xff] 0.0
    %112 = vst [vmem:[#allocation2 + $0xb8] sm:$0xff] 0.0
    %113 = vst [vmem:[#allocation2 + $0xc0] sm:$0xff] 0.0
    %114 = vst [vmem:[#allocation2 + $0xc8] sm:$0xff] 0.0
    %115 = vst [vmem:[#allocation2 + $0xd0] sm:$0xff] 0.0
    %116 = vst [vmem:[#allocation2 + $0xd8] sm:$0xff] 0.0
    %117 = vst [vmem:[#allocation2 + $0xe0] sm:$0xff] 0.0
    %118 = vst [vmem:[#allocation2 + $0xe8] sm:$0xff] 0.0
    %119 = vst [vmem:[#allocation2 + $0xf0] sm:$0xff] 0.0
    %120 = vst [vmem:[#allocation2 + $0xf8] sm:$0xff] 0.0
    %121 = vst [vmem:[#allocation2 + $0x100] sm:$0xff] 0.0
    %122 = vst [vmem:[#allocation2 + $0x108] sm:$0xff] 0.0
    %123 = vst [vmem:[#allocation2 + $0x110] sm:$0xff] 0.0
    %124 = vst [vmem:[#allocation2 + $0x118] sm:$0xff] 0.0
    %125 = vst [vmem:[#allocation2 + $0x120] sm:$0xff] 0.0
    %126 = vst [vmem:[#allocation2 + $0x128] sm:$0xff] 0.0
    %127 = vst [vmem:[#allocation2 + $0x130] sm:$0xff] 0.0
    %128 = vst [vmem:[#allocation2 + $0x138] sm:$0xff] 0.0
    %v129 = vld [vmem:[#allocation3] sm:$0xff]
    %v130 = vld [vmem:[#allocation3 + $0x8] sm:$0xff]
    %v131 = vld [vmem:[#allocation3 + $0x10] sm:$0xff]
    %v132 = vld [vmem:[#allocation3 + $0x18] sm:$0xff]
    %v133 = vld [vmem:[#allocation3 + $0x20] sm:$0xff]
    %v134 = vld [vmem:[#allocation3 + $0x28] sm:$0xff]
    %v135 = vld [vmem:[#allocation3 + $0x30] sm:$0xff]
    %v136 = vld [vmem:[#allocation3 + $0x38] sm:$0xff]
    %v137 = vld [vmem:[#allocation3 + $0x40] sm:$0xff]
    %v138 = vld [vmem:[#allocation3 + $0x48] sm:$0xff]
    %v139 = vld [vmem:[#allocation3 + $0x50] sm:$0xff]
    %v140 = vld [vmem:[#allocation3 + $0x58] sm:$0xff]
    %v141 = vld [vmem:[#allocation3 + $0x60] sm:$0xff]
    %v142 = vld [vmem:[#allocation3 + $0x68] sm:$0xff]
    %v143 = vld [vmem:[#allocation3 + $0x70] sm:$0xff]
    %v144 = vld [vmem:[#allocation3 + $0x78] sm:$0xff]
    %v145 = vadd.f32 %v129, %v130
    %v146 = vadd.f32 %v145, %v131
    %v147 = vadd.f32 %v146, %v132
    %v148 = vadd.f32 %v147, %v133
    %v149 = vadd.f32 %v148, %v134
    %v150 = vadd.f32 %v149, %v135
    %v151 = vadd.f32 %v150, %v136
    %v152 = vadd.f32 %v151, %v137
    %v153 = vadd.f32 %v152, %v138
    %v154 = vadd.f32 %v153, %v139
    %v155 = vadd.f32 %v154, %v140
    %v156 = vadd.f32 %v155, %v141
    %v157 = vadd.f32 %v156, %v142
    %v158 = vadd.f32 %v157, %v143
    %v159 = vadd.f32 %v158, %v144
    %v160 = vrot.slane %v159, 4
    %v161 = vadd.f32 %v159, %v160
    %v162 = vrot.slane %v161, 2
    %v163 = vadd.f32 %v161, %v162
    %v164 = vrot.slane %v163, 1
    %v165 = vadd.f32 %v163, %v164
    %v166 = vrcp.pop 128.0
    %v167 = vmul.f32 %v165, %v166
    %v168 = vsub.f32 %v129, %v167
    %v169 = vsub.f32 %v130, %v167
    %v170 = vsub.f32 %v131, %v167
    %v171 = vsub.f32 %v132, %v167
    %v172 = vsub.f32 %v133, %v167
    %v173 = vsub.f32 %v134, %v167
    %v174 = vsub.f32 %v135, %v167
    %v175 = vsub.f32 %v136, %v167
    %v176 = vsub.f32 %v137, %v167
    %v177 = vsub.f32 %v138, %v167
    %v178 = vsub.f32 %v139, %v167
    %v179 = vsub.f32 %v140, %v167
    %v180 = vsub.f32 %v141, %v167
    %v181 = vsub.f32 %v142, %v167
    %v182 = vsub.f32 %v143, %v167
    %v183 = vsub.f32 %v144, %v167
    %v184 = vmul.f32 %v168, %v168
    %v185 = vmul.f32 %v169, %v169
    %v186 = vmul.f32 %v170, %v170
    %v187 = vmul.f32 %v171, %v171
    %v188 = vmul.f32 %v172, %v172
    %v189 = vmul.f32 %v173, %v173
    %v190 = vmul.f32 %v174, %v174
    %v191 = vmul.f32 %v175, %v175
    %v192 = vmul.f32 %v176, %v176
    %v193 = vmul.f32 %v177, %v177
    %v194 = vmul.f32 %v178, %v178
    %v195 = vmul.f32 %v179, %v179
    %v196 = vmul.f32 %v180, %v180
    %v197 = vmul.f32 %v181, %v181
    %v198 = vmul.f32 %v182, %v182
    %v199 = vmul.f32 %v183, %v183
    %v200 = vadd.f32 %v184, %v185
    %v201 = vadd.f32 %v200, %v186
    %v202 = vadd.f32 %v201, %v187
    %v203 = vadd.f32 %v202, %v188
    %v204 = vadd.f32 %v203, %v189
    %v205 = vadd.f32 %v204, %v190
    %v206 = vadd.f32 %v205, %v191
    %v207 = vadd.f32 %v206, %v192
    %v208 = vadd.f32 %v207, %v193
    %v209 = vadd.f32 %v208, %v194
    %v210 = vadd.f32 %v209, %v195
    %v211 = vadd.f32 %v210, %v196
    %v212 = vadd.f32 %v211, %v197
    %v213 = vadd.f32 %v212, %v198
    %v214 = vadd.f32 %v213, %v199
    %v215 = vrot.slane %v214, 4
    %v216 = vadd.f32 %v214, %v215
    %v217 = vrot.slane %v216, 2
    %v218 = vadd.f32 %v216, %v217
    %v219 = vrot.slane %v218, 1
    %v220 = vadd.f32 %v218, %v219
    %v221 = vmul.f32 %v220, %v166
    %v222 = vadd.f32 %v221, 1e-05
    %v223 = vrsqrt.pop %v222
    %v224 = vld [vmem:[#allocation6] sm:$0x1]
    %v225 = vmul.f32 %v223, %v224
    %v226 = vld [vmem:[#allocation8] sm:$0x1]
    %v227 = vmul.f32 %v167, %v225
    %v228 = vsub.f32 %v226, %v227
    %v229 = vlaneseq
    %v230 = vshrl.u32 %v229, 7
    %v231 = vsub.s32 0, %v230
    %v232 = vrot.slane %v225, %v231
    %v233 = vmul.f32 %v129, %v232
    %v234 = vmul.f32 %v130, %v232
    %v235 = vmul.f32 %v131, %v232
    %v236 = vmul.f32 %v132, %v232
    %v237 = vmul.f32 %v133, %v232
    %v238 = vmul.f32 %v134, %v232
    %v239 = vmul.f32 %v135, %v232
    %v240 = vmul.f32 %v136, %v232
    %v241 = vmul.f32 %v137, %v232
    %v242 = vmul.f32 %v138, %v232
    %v243 = vmul.f32 %v139, %v232
    %v244 = vmul.f32 %v140, %v232
    %v245 = vmul.f32 %v141, %v232
    %v246 = vmul.f32 %v142, %v232
    %v247 = vmul.f32 %v143, %v232
    %v248 = vmul.f32 %v144, %v232
    %v250 = vlaneseq
    %v251 = vshrl.u32 %v250, 7
    %v252 = vsub.s32 0, %v251
    %v253 = vrot.slane %v228, %v252
    %v255 = vadd.f32 %v233, %v253
    %v256 = vadd.f32 %v234, %v253
    %v257 = vadd.f32 %v235, %v253
    %v258 = vadd.f32 %v236, %v253
    %v259 = vadd.f32 %v237, %v253
    %v260 = vadd.f32 %v238, %v253
    %v261 = vadd.f32 %v239, %v253
    %v262 = vadd.f32 %v240, %v253
    %v263 = vadd.f32 %v241, %v253
    %v264 = vadd.f32 %v242, %v253
    %v265 = vadd.f32 %v243, %v253
    %v266 = vadd.f32 %v244, %v253
    %v267 = vadd.f32 %v245, %v253
    %v268 = vadd.f32 %v246, %v253
    %v269 = vadd.f32 %v247, %v253
    %v270 = vadd.f32 %v248, %v253
    %v271 = vmax.f32 %v255, 0.0
    %v272 = vmax.f32 %v256, 0.0
    %v273 = vmax.f32 %v257, 0.0
    %v274 = vmax.f32 %v258, 0.0
    %v275 = vmax.f32 %v259, 0.0
    %v276 = vmax.f32 %v260, 0.0
    %v277 = vmax.f32 %v261, 0.0
    %v278 = vmax.f32 %v262, 0.0
    %v279 = vmax.f32 %v263, 0.0
    %v280 = vmax.f32 %v264, 0.0
    %v281 = vmax.f32 %v265, 0.0
    %v282 = vmax.f32 %v266, 0.0
    %v283 = vmax.f32 %v267, 0.0
    %v284 = vmax.f32 %v268, 0.0
    %v285 = vmax.f32 %v269, 0.0
    %v286 = vmax.f32 %v270, 0.0
    %s287 = scalar_lea.vmem [#allocation2], 16
    %288 = vst [vmem:[%s287 + $0x1] sm:$0xff] %v271
    %289 = vst [vmem:[%s287 + $0x11] sm:$0xff] %v272
    %290 = vst [vmem:[%s287 + $0x21] sm:$0xff] %v273
    %291 = vst [vmem:[%s287 + $0x31] sm:$0xff] %v274
    %292 = vst [vmem:[%s287 + $0x41] sm:$0xff] %v275
    %293 = vst [vmem:[%s287 + $0x51] sm:$0xff] %v276
    %294 = vst [vmem:[%s287 + $0x61] sm:$0xff] %v277
    %295 = vst [vmem:[%s287 + $0x71] sm:$0xff] %v278
    %296 = vst [vmem:[%s287 + $0xa1] sm:$0xff] %v279
    %297 = vst [vmem:[%s287 + $0xb1] sm:$0xff] %v280
    %298 = vst [vmem:[%s287 + $0xc1] sm:$0xff] %v281
    %299 = vst [vmem:[%s287 + $0xd1] sm:$0xff] %v282
    %300 = vst [vmem:[%s287 + $0xe1] sm:$0xff] %v283
    %301 = vst [vmem:[%s287 + $0xf1] sm:$0xff] %v284
    %302 = vst [vmem:[%s287 + $0x101] sm:$0xff] %v285
    %303 = vst [vmem:[%s287 + $0x111] sm:$0xff] %v286
    %v304 = vld [vmem:[#allocation2] sm:$0xff]
    %v305 = vld [vmem:[#allocation2 + $0x10] sm:$0xff]
    %v306 = vld [vmem:[#allocation2 + $0x20] sm:$0xff]
    %v307 = vld [vmem:[#allocation2 + $0x30] sm:$0xff]
    %v308 = vld [vmem:[#allocation2 + $0x40] sm:$0xff]
    %v309 = vld [vmem:[#allocation2 + $0x50] sm:$0xff]
    %v310 = vld [vmem:[#allocation2 + $0x60] sm:$0xff]
    %v311 = vld [vmem:[#allocation2 + $0x70] sm:$0xff]
    %v312 = vld [vmem:[#allocation2 + $0xa0] sm:$0xff]
    %v313 = vld [vmem:[#allocation2 + $0xb0] sm:$0xff]
    %v314 = vld [vmem:[#allocation2 + $0xc0] sm:$0xff]
    %v315 = vld [vmem:[#allocation2 + $0xd0] sm:$0xff]
    %v316 = vld [vmem:[#allocation2 + $0xe0] sm:$0xff]
    %v317 = vld [vmem:[#allocation2 + $0xf0] sm:$0xff]
    %v318 = vld [vmem:[#allocation2 + $0x100] sm:$0xff]
    %v319 = vld [vmem:[#allocation2 + $0x110] sm:$0xff]
    %v320 = vld [vmem:[#allocation2 + $0x1] sm:$0xff]
    %v321 = vld [vmem:[#allocation2 + $0x11] sm:$0xff]
    %v322 = vld [vmem:[#allocation2 + $0x21] sm:$0xff]
    %v323 = vld [vmem:[#allocation2 + $0x31] sm:$0xff]
    %v324 = vld [vmem:[#allocation2 + $0x41] sm:$0xff]
    %v325 = vld [vmem:[#allocation2 + $0x51] sm:$0xff]
    %v326 = vld [vmem:[#allocation2 + $0x61] sm:$0xff]
    %v327 = vld [vmem:[#allocation2 + $0x71] sm:$0xff]
    %v328 = vld [vmem:[#allocation2 + $0xa1] sm:$0xff]
    %v329 = vld [vmem:[#allocation2 + $0xb1] sm:$0xff]
    %v330 = vld [vmem:[#allocation2 + $0xc1] sm:$0xff]
    %v331 = vld [vmem:[#allocation2 + $0xd1] sm:$0xff]
    %v332 = vld [vmem:[#allocation2 + $0xe1] sm:$0xff]
    %v333 = vld [vmem:[#allocation2 + $0xf1] sm:$0xff]
    %v334 = vld [vmem:[#allocation2 + $0x101] sm:$0xff]
    %v335 = vld [vmem:[#allocation2 + $0x111] sm:$0xff]
    %v336 = vld [vmem:[#allocation2 + $0x2] sm:$0xff]
    %v337 = vld [vmem:[#allocation2 + $0x12] sm:$0xff]
    %v338 = vld [vmem:[#allocation2 + $0x22] sm:$0xff]
    %v339 = vld [vmem:[#allocation2 + $0x32] sm:$0xff]
    %v340 = vld [vmem:[#allocation2 + $0x42] sm:$0xff]
    %v341 = vld [vmem:[#allocation2 + $0x52] sm:$0xff]
    %v342 = vld [vmem:[#allocation2 + $0x62] sm:$0xff]
    %v343 = vld [vmem:[#allocation2 + $0x72] sm:$0xff]
    %v344 = vld [vmem:[#allocation2 + $0xa2] sm:$0xff]
    %v345 = vld [vmem:[#allocation2 + $0xb2] sm:$0xff]
    %v346 = vld [vmem:[#allocation2 + $0xc2] sm:$0xff]
    %v347 = vld [vmem:[#allocation2 + $0xd2] sm:$0xff]
    %v348 = vld [vmem:[#allocation2 + $0xe2] sm:$0xff]
    %v349 = vld [vmem:[#allocation2 + $0xf2] sm:$0xff]
    %v350 = vld [vmem:[#allocation2 + $0x102] sm:$0xff]
    %v351 = vld [vmem:[#allocation2 + $0x112] sm:$0xff]
    %v352 = vld [vmem:[#allocation9] sm:$0xff]
    %v353 = vld [vmem:[#allocation9 + $0x8] sm:$0xff]
    %v354 = vld [vmem:[#allocation9 + $0x10] sm:$0xff]
    %v355 = vld [vmem:[#allocation9 + $0x18] sm:$0xff]
    %v356 = vld [vmem:[#allocation9 + $0x20] sm:$0xff]
    %v357 = vld [vmem:[#allocation9 + $0x28] sm:$0xff]
    %v358 = vld [vmem:[#allocation9 + $0x30] sm:$0xff]
    %v359 = vld [vmem:[#allocation9 + $0x38] sm:$0xff]
    %v360 = vld [vmem:[#allocation9 + $0x40] sm:$0xff]
    %v361 = vld [vmem:[#allocation9 + $0x48] sm:$0xff]
    %v362 = vld [vmem:[#allocation9 + $0x50] sm:$0xff]
    %v363 = vld [vmem:[#allocation9 + $0x58] sm:$0xff]
    %v364 = vld [vmem:[#allocation9 + $0x60] sm:$0xff]
    %v365 = vld [vmem:[#allocation9 + $0x68] sm:$0xff]
    %v366 = vld [vmem:[#allocation9 + $0x70] sm:$0xff]
    %v367 = vld [vmem:[#allocation9 + $0x78] sm:$0xff]
    %v368 = vld [vmem:[#allocation9 + $0x80] sm:$0xff]
    %v369 = vld [vmem:[#allocation9 + $0x88] sm:$0xff]
    %v370 = vld [vmem:[#allocation9 + $0x90] sm:$0xff]
    %v371 = vld [vmem:[#allocation9 + $0x98] sm:$0xff]
    %v372 = vld [vmem:[#allocation9 + $0xa0] sm:$0xff]
    %v373 = vld [vmem:[#allocation9 + $0xa8] sm:$0xff]
    %v374 = vld [vmem:[#allocation9 + $0xb0] sm:$0xff]
    %v375 = vld [vmem:[#allocation9 + $0xb8] sm:$0xff]
    %v376 = vld [vmem:[#allocation9 + $0xc0] sm:$0xff]
    %v377 = vld [vmem:[#allocation9 + $0xc8] sm:$0xff]
    %v378 = vld [vmem:[#allocation9 + $0xd0] sm:$0xff]
    %v379 = vld [vmem:[#allocation9 + $0xd8] sm:$0xff]
    %v380 = vld [vmem:[#allocation9 + $0xe0] sm:$0xff]
    %v381 = vld [vmem:[#allocation9 + $0xe8] sm:$0xff]
    %v382 = vld [vmem:[#allocation9 + $0xf0] sm:$0xff]
    %v383 = vld [vmem:[#allocation9 + $0xf8] sm:$0xff]
    %v384 = vld [vmem:[#allocation9 + $0x100] sm:$0xff]
    %v385 = vld [vmem:[#allocation9 + $0x108] sm:$0xff]
    %v386 = vld [vmem:[#allocation9 + $0x110] sm:$0xff]
    %v387 = vld [vmem:[#allocation9 + $0x118] sm:$0xff]
    %v388 = vld [vmem:[#allocation9 + $0x120] sm:$0xff]
    %v389 = vld [vmem:[#allocation9 + $0x128] sm:$0xff]
    %v390 = vld [vmem:[#allocation9 + $0x130] sm:$0xff]
    %v391 = vld [vmem:[#allocation9 + $0x138] sm:$0xff]
    %v392 = vld [vmem:[#allocation9 + $0x140] sm:$0xff]
    %v393 = vld [vmem:[#allocation9 + $0x148] sm:$0xff]
    %v394 = vld [vmem:[#allocation9 + $0x150] sm:$0xff]
    %v395 = vld [vmem:[#allocation9 + $0x158] sm:$0xff]
    %v396 = vld [vmem:[#allocation9 + $0x160] sm:$0xff]
    %v397 = vld [vmem:[#allocation9 + $0x168] sm:$0xff]
    %v398 = vld [vmem:[#allocation9 + $0x170] sm:$0xff]
    %v399 = vld [vmem:[#allocation9 + $0x178] sm:$0xff]
    %v400 = vld [vmem:[%s287] sm:$0xff]
    %v401 = vld [vmem:[%s287 + $0x10] sm:$0xff]
    %v402 = vld [vmem:[%s287 + $0x20] sm:$0xff]
    %v403 = vld [vmem:[%s287 + $0x30] sm:$0xff]
    %v404 = vld [vmem:[%s287 + $0x40] sm:$0xff]
    %v405 = vld [vmem:[%s287 + $0x50] sm:$0xff]
    %v406 = vld [vmem:[%s287 + $0x60] sm:$0xff]
    %v407 = vld [vmem:[%s287 + $0x70] sm:$0xff]
    %v408 = vld [vmem:[%s287 + $0xa0] sm:$0xff]
    %v409 = vld [vmem:[%s287 + $0xb0] sm:$0xff]
    %v410 = vld [vmem:[%s287 + $0xc0] sm:$0xff]
    %v411 = vld [vmem:[%s287 + $0xd0] sm:$0xff]
    %v412 = vld [vmem:[%s287 + $0xe0] sm:$0xff]
    %v413 = vld [vmem:[%s287 + $0xf0] sm:$0xff]
    %v414 = vld [vmem:[%s287 + $0x100] sm:$0xff]
    %v415 = vld [vmem:[%s287 + $0x110] sm:$0xff]
    %v416 = vld [vmem:[%s287 + $0x1] sm:$0xff]
    %v417 = vld [vmem:[%s287 + $0x11] sm:$0xff]
    %v418 = vld [vmem:[%s287 + $0x21] sm:$0xff]
    %v419 = vld [vmem:[%s287 + $0x31] sm:$0xff]
    %v420 = vld [vmem:[%s287 + $0x41] sm:$0xff]
    %v421 = vld [vmem:[%s287 + $0x51] sm:$0xff]
    %v422 = vld [vmem:[%s287 + $0x61] sm:$0xff]
    %v423 = vld [vmem:[%s287 + $0x71] sm:$0xff]
    %v424 = vld [vmem:[%s287 + $0xa1] sm:$0xff]
    %v425 = vld [vmem:[%s287 + $0xb1] sm:$0xff]
    %v426 = vld [vmem:[%s287 + $0xc1] sm:$0xff]
    %v427 = vld [vmem:[%s287 + $0xd1] sm:$0xff]
    %v428 = vld [vmem:[%s287 + $0xe1] sm:$0xff]
    %v429 = vld [vmem:[%s287 + $0xf1] sm:$0xff]
    %v430 = vld [vmem:[%s287 + $0x101] sm:$0xff]
    %v431 = vld [vmem:[%s287 + $0x111] sm:$0xff]
    %v432 = vld [vmem:[%s287 + $0x2] sm:$0xff]
    %v433 = vld [vmem:[%s287 + $0x12] sm:$0xff]
    %v434 = vld [vmem:[%s287 + $0x22] sm:$0xff]
    %v435 = vld [vmem:[%s287 + $0x32] sm:$0xff]
    %v436 = vld [vmem:[%s287 + $0x42] sm:$0xff]
    %v437 = vld [vmem:[%s287 + $0x52] sm:$0xff]
    %v438 = vld [vmem:[%s287 + $0x62] sm:$0xff]
    %v439 = vld [vmem:[%s287 + $0x72] sm:$0xff]
    %v440 = vld [vmem:[%s287 + $0xa2] sm:$0xff]
    %v441 = vld [vmem:[%s287 + $0xb2] sm:$0xff]
    %v442 = vld [vmem:[%s287 + $0xc2] sm:$0xff]
    %v443 = vld [vmem:[%s287 + $0xd2] sm:$0xff]
    %v444 = vld [vmem:[%s287 + $0xe2] sm:$0xff]
    %v445 = vld [vmem:[%s287 + $0xf2] sm:$0xff]
    %v446 = vld [vmem:[%s287 + $0x102] sm:$0xff]
    %v447 = vld [vmem:[%s287 + $0x112] sm:$0xff]
    %s448 = scalar_lea.vmem [#allocation9], 384
    %v449 = vld [vmem:[%s448] sm:$0xff]
    %v450 = vld [vmem:[%s448 + $0x8] sm:$0xff]
    %v451 = vld [vmem:[%s448 + $0x10] sm:$0xff]
    %v452 = vld [vmem:[%s448 + $0x18] sm:$0xff]
    %v453 = vld [vmem:[%s448 + $0x20] sm:$0xff]
    %v454 = vld [vmem:[%s448 + $0x28] sm:$0xff]
    %v455 = vld [vmem:[%s448 + $0x30] sm:$0xff]
    %v456 = vld [vmem:[%s448 + $0x38] sm:$0xff]
    %v457 = vld [vmem:[%s448 + $0x40] sm:$0xff]
    %v458 = vld [vmem:[%s448 + $0x48] sm:$0xff]
    %v459 = vld [vmem:[%s448 + $0x50] sm:$0xff]
    %v460 = vld [vmem:[%s448 + $0x58] sm:$0xff]
    %v461 = vld [vmem:[%s448 + $0x60] sm:$0xff]
    %v462 = vld [vmem:[%s448 + $0x68] sm:$0xff]
    %v463 = vld [vmem:[%s448 + $0x70] sm:$0xff]
    %v464 = vld [vmem:[%s448 + $0x78] sm:$0xff]
    %v465 = vld [vmem:[%s448 + $0x80] sm:$0xff]
    %v466 = vld [vmem:[%s448 + $0x88] sm:$0xff]
    %v467 = vld [vmem:[%s448 + $0x90] sm:$0xff]
    %v468 = vld [vmem:[%s448 + $0x98] sm:$0xff]
    %v469 = vld [vmem:[%s448 + $0xa0] sm:$0xff]
    %v470 = vld [vmem:[%s448 + $0xa8] sm:$0xff]
    %v471 = vld [vmem:[%s448 + $0xb0] sm:$0xff]
    %v472 = vld [vmem:[%s448 + $0xb8] sm:$0xff]
    %v473 = vld [vmem:[%s448 + $0xc0] sm:$0xff]
    %v474 = vld [vmem:[%s448 + $0xc8] sm:$0xff]
    %v475 = vld [vmem:[%s448 + $0xd0] sm:$0xff]
    %v476 = vld [vmem:[%s448 + $0xd8] sm:$0xff]
    %v477 = vld [vmem:[%s448 + $0xe0] sm:$0xff]
    %v478 = vld [vmem:[%s448 + $0xe8] sm:$0xff]
    %v479 = vld [vmem:[%s448 + $0xf0] sm:$0xff]
    %v480 = vld [vmem:[%s448 + $0xf8] sm:$0xff]
    %v481 = vld [vmem:[%s448 + $0x100] sm:$0xff]
    %v482 = vld [vmem:[%s448 + $0x108] sm:$0xff]
    %v483 = vld [vmem:[%s448 + $0x110] sm:$0xff]
    %v484 = vld [vmem:[%s448 + $0x118] sm:$0xff]
    %v485 = vld [vmem:[%s448 + $0x120] sm:$0xff]
    %v486 = vld [vmem:[%s448 + $0x128] sm:$0xff]
    %v487 = vld [vmem:[%s448 + $0x130] sm:$0xff]
    %v488 = vld [vmem:[%s448 + $0x138] sm:$0xff]
    %v489 = vld [vmem:[%s448 + $0x140] sm:$0xff]
    %v490 = vld [vmem:[%s448 + $0x148] sm:$0xff]
    %v491 = vld [vmem:[%s448 + $0x150] sm:$0xff]
    %v492 = vld [vmem:[%s448 + $0x158] sm:$0xff]
    %v493 = vld [vmem:[%s448 + $0x160] sm:$0xff]
    %v494 = vld [vmem:[%s448 + $0x168] sm:$0xff]
    %v495 = vld [vmem:[%s448 + $0x170] sm:$0xff]
    %v496 = vld [vmem:[%s448 + $0x178] sm:$0xff]
    %497 = vmatprep.subr.mxu0 0.0
    %498 = vmatpush1.msra.mxu0 %v464
    %499 = vmatprep.subr.mxu0 0.0
    %500 = vmatpush1.msra.mxu0 %v463
    %501 = vmatprep.subr.mxu0 0.0
    %502 = vmatpush1.msra.mxu0 %v462
    %503 = vmatprep.subr.mxu0 0.0
    %504 = vmatpush1.msra.mxu0 %v461
    %505 = vmatprep.subr.mxu0 0.0
    %506 = vmatpush1.msra.mxu0 %v460
    %507 = vmatprep.subr.mxu0 0.0
    %508 = vmatpush1.msra.mxu0 %v459
    %509 = vmatprep.subr.mxu0 0.0
    %510 = vmatpush1.msra.mxu0 %v458
    %511 = vmatprep.subr.mxu0 0.0
    %512 = vmatpush1.msra.mxu0 %v457
    %513 = vmatprep.subr.mxu0 0.0
    %514 = vmatpush1.msra.mxu0 %v456
    %515 = vmatprep.subr.mxu0 0.0
    %516 = vmatpush1.msra.mxu0 %v455
    %517 = vmatprep.subr.mxu0 0.0
    %518 = vmatpush1.msra.mxu0 %v454
    %519 = vmatprep.subr.mxu0 0.0
    %520 = vmatpush1.msra.mxu0 %v453
    %521 = vmatprep.subr.mxu0 0.0
    %522 = vmatpush1.msra.mxu0 %v452
    %523 = vmatprep.subr.mxu0 0.0
    %524 = vmatpush1.msra.mxu0 %v451
    %525 = vmatprep.subr.mxu0 0.0
    %526 = vmatpush1.msra.mxu0 %v450
    %527 = vmatprep.subr.mxu0 0.0
    %528 = vmatpush1.msra.mxu0 %v449
    %529 = vmatprep.subr.mxu0 0.0
    %530 = vmatpush2.msra.mxu0 %v480
    %531 = vmatprep.subr.mxu0 0.0
    %532 = vmatpush2.msra.mxu0 %v479
    %533 = vmatprep.subr.mxu0 0.0
    %534 = vmatpush2.msra.mxu0 %v478
    %535 = vmatprep.subr.mxu0 0.0
    %536 = vmatpush2.msra.mxu0 %v477
    %537 = vmatprep.subr.mxu0 0.0
    %538 = vmatpush2.msra.mxu0 %v476
    %539 = vmatprep.subr.mxu0 0.0
    %540 = vmatpush2.msra.mxu0 %v475
    %541 = vmatprep.subr.mxu0 0.0
    %542 = vmatpush2.msra.mxu0 %v474
    %543 = vmatprep.subr.mxu0 0.0
    %544 = vmatpush2.msra.mxu0 %v473
    %545 = vmatprep.subr.mxu0 0.0
    %546 = vmatpush2.msra.mxu0 %v472
    %547 = vmatprep.subr.mxu0 0.0
    %548 = vmatpush2.msra.mxu0 %v471
    %549 = vmatprep.subr.mxu0 0.0
    %550 = vmatpush2.msra.mxu0 %v470
    %551 = vmatprep.subr.mxu0 0.0
    %552 = vmatpush2.msra.mxu0 %v469
    %553 = vmatprep.subr.mxu0 0.0
    %554 = vmatpush2.msra.mxu0 %v468
    %555 = vmatprep.subr.mxu0 0.0
    %556 = vmatpush2.msra.mxu0 %v467
    %557 = vmatprep.subr.mxu0 0.0
    %558 = vmatpush2.msra.mxu0 %v466
    %559 = vmatprep.subr.mxu0 0.0
    %560 = vmatpush2.msra.mxu0 %v465
    %561 = vmatprep.mubr.f32.mxu0 %v416
    %562 = vmatmul.mubr.f32.gmra.mxu0 %v400
    %v563 = vpop.f32.mrf.mxu0
    %v564 = vadd.f32 0.0, %v563
    %v565 = vpop.f32.mrf.mxu0
    %566 = vmatprep.mubr.f32.mxu0 %v417
    %567 = vmatmul.mubr.f32.gmra.mxu0 %v401
    %v568 = vpop.f32.mrf.mxu0
    %v569 = vadd.f32 0.0, %v568
    %v570 = vpop.f32.mrf.mxu0
    %571 = vmatprep.mubr.f32.mxu0 %v418
    %572 = vmatmul.mubr.f32.gmra.mxu0 %v402
    %v573 = vpop.f32.mrf.mxu0
    %v574 = vadd.f32 0.0, %v573
    %v575 = vpop.f32.mrf.mxu0
    %576 = vmatprep.mubr.f32.mxu0 %v419
    %577 = vmatmul.mubr.f32.gmra.mxu0 %v403
    %v578 = vpop.f32.mrf.mxu0
    %v579 = vadd.f32 0.0, %v578
    %v580 = vpop.f32.mrf.mxu0
    %581 = vmatprep.mubr.f32.mxu0 %v420
    %582 = vmatmul.mubr.f32.gmra.mxu0 %v404
    %v583 = vpop.f32.mrf.mxu0
    %v584 = vadd.f32 0.0, %v583
    %v585 = vpop.f32.mrf.mxu0
    %586 = vmatprep.mubr.f32.mxu0 %v421
    %587 = vmatmul.mubr.f32.gmra.mxu0 %v405
    %v588 = vpop.f32.mrf.mxu0
    %v589 = vadd.f32 0.0, %v588
    %v590 = vpop.f32.mrf.mxu0
    %591 = vmatprep.mubr.f32.mxu0 %v422
    %592 = vmatmul.mubr.f32.gmra.mxu0 %v406
    %v593 = vpop.f32.mrf.mxu0
    %v594 = vadd.f32 0.0, %v593
    %v595 = vpop.f32.mrf.mxu0
    %596 = vmatprep.mubr.f32.mxu0 %v423
    %597 = vmatmul.mubr.f32.gmra.mxu0 %v407
    %v598 = vpop.f32.mrf.mxu0
    %v599 = vadd.f32 0.0, %v598
    %v600 = vpop.f32.mrf.mxu0
    %601 = vmatprep.mubr.f32.mxu0 %v424
    %602 = vmatmul.mubr.f32.gmra.mxu0 %v408
    %v603 = vpop.f32.mrf.mxu0
    %v604 = vadd.f32 0.0, %v603
    %v605 = vpop.f32.mrf.mxu0
    %606 = vmatprep.mubr.f32.mxu0 %v425
    %607 = vmatmul.mubr.f32.gmra.mxu0 %v409
    %v608 = vpop.f32.mrf.mxu0
    %v609 = vadd.f32 0.0, %v608
    %v610 = vpop.f32.mrf.mxu0
    %611 = vmatprep.mubr.f32.mxu0 %v426
    %612 = vmatmul.mubr.f32.gmra.mxu0 %v410
    %v613 = vpop.f32.mrf.mxu0
    %v614 = vadd.f32 0.0, %v613
    %v615 = vpop.f32.mrf.mxu0
    %616 = vmatprep.mubr.f32.mxu0 %v427
    %617 = vmatmul.mubr.f32.gmra.mxu0 %v411
    %v618 = vpop.f32.mrf.mxu0
    %v619 = vadd.f32 0.0, %v618
    %v620 = vpop.f32.mrf.mxu0
    %621 = vmatprep.mubr.f32.mxu0 %v428
    %622 = vmatmul.mubr.f32.gmra.mxu0 %v412
    %v623 = vpop.f32.mrf.mxu0
    %v624 = vadd.f32 0.0, %v623
    %v625 = vpop.f32.mrf.mxu0
    %626 = vmatprep.mubr.f32.mxu0 %v429
    %627 = vmatmul.mubr.f32.gmra.mxu0 %v413
    %v628 = vpop.f32.mrf.mxu0
    %v629 = vadd.f32 0.0, %v628
    %v630 = vpop.f32.mrf.mxu0
    %631 = vmatprep.mubr.f32.mxu0 %v430
    %632 = vmatmul.mubr.f32.gmra.mxu0 %v414
    %v633 = vpop.f32.mrf.mxu0
    %v634 = vadd.f32 0.0, %v633
    %v635 = vpop.f32.mrf.mxu0
    %636 = vmatprep.mubr.f32.mxu0 %v431
    %637 = vmatmul.mubr.f32.gmra.mxu0 %v415
    %v638 = vpop.f32.mrf.mxu0
    %v639 = vadd.f32 0.0, %v638
    %v640 = vpop.f32.mrf.mxu0
    %641 = vdwg.mxu0
    %642 = vmatprep.subr.mxu0 0.0
    %643 = vmatpush1.msra.mxu0 %v496
    %644 = vmatprep.subr.mxu0 0.0
    %645 = vmatpush1.msra.mxu0 %v495
    %646 = vmatprep.subr.mxu0 0.0
    %647 = vmatpush1.msra.mxu0 %v494
    %648 = vmatprep.subr.mxu0 0.0
    %649 = vmatpush1.msra.mxu0 %v493
    %650 = vmatprep.subr.mxu0 0.0
    %651 = vmatpush1.msra.mxu0 %v492
    %652 = vmatprep.subr.mxu0 0.0
    %653 = vmatpush1.msra.mxu0 %v491
    %654 = vmatprep.subr.mxu0 0.0
    %655 = vmatpush1.msra.mxu0 %v490
    %656 = vmatprep.subr.mxu0 0.0
    %657 = vmatpush1.msra.mxu0 %v489
    %658 = vmatprep.subr.mxu0 0.0
    %659 = vmatpush1.msra.mxu0 %v488
    %660 = vmatprep.subr.mxu0 0.0
    %661 = vmatpush1.msra.mxu0 %v487
    %662 = vmatprep.subr.mxu0 0.0
    %663 = vmatpush1.msra.mxu0 %v486
    %664 = vmatprep.subr.mxu0 0.0
    %665 = vmatpush1.msra.mxu0 %v485
    %666 = vmatprep.subr.mxu0 0.0
    %667 = vmatpush1.msra.mxu0 %v484
    %668 = vmatprep.subr.mxu0 0.0
    %669 = vmatpush1.msra.mxu0 %v483
    %670 = vmatprep.subr.mxu0 0.0
    %671 = vmatpush1.msra.mxu0 %v482
    %672 = vmatprep.subr.mxu0 0.0
    %673 = vmatpush1.msra.mxu0 %v481
    %674 = vmatprep.subr.mxu0 0.0
    %675 = vmatpush2.msra.mxu0 0.0
    %676 = vmatprep.subr.mxu0 0.0
    %677 = vmatpush2.msra.mxu0 0.0
    %678 = vmatprep.subr.mxu0 0.0
    %679 = vmatpush2.msra.mxu0 0.0
    %680 = vmatprep.subr.mxu0 0.0
    %681 = vmatpush2.msra.mxu0 0.0
    %682 = vmatprep.subr.mxu0 0.0
    %683 = vmatpush2.msra.mxu0 0.0
    %684 = vmatprep.subr.mxu0 0.0
    %685 = vmatpush2.msra.mxu0 0.0
    %686 = vmatprep.subr.mxu0 0.0
    %687 = vmatpush2.msra.mxu0 0.0
    %688 = vmatprep.subr.mxu0 0.0
    %689 = vmatpush2.msra.mxu0 0.0
    %690 = vmatprep.subr.mxu0 0.0
    %691 = vmatpush2.msra.mxu0 0.0
    %692 = vmatprep.subr.mxu0 0.0
    %693 = vmatpush2.msra.mxu0 0.0
    %694 = vmatprep.subr.mxu0 0.0
    %695 = vmatpush2.msra.mxu0 0.0
    %696 = vmatprep.subr.mxu0 0.0
    %697 = vmatpush2.msra.mxu0 0.0
    %698 = vmatprep.subr.mxu0 0.0
    %699 = vmatpush2.msra.mxu0 0.0
    %700 = vmatprep.subr.mxu0 0.0
    %701 = vmatpush2.msra.mxu0 0.0
    %702 = vmatprep.subr.mxu0 0.0
    %703 = vmatpush2.msra.mxu0 0.0
    %704 = vmatprep.subr.mxu0 0.0
    %705 = vmatpush2.msra.mxu0 0.0
    %706 = vmatprep.mubr.f32.mxu0 0.0
    %707 = vmatmul.mubr.f32.gmra.mxu0 %v432
    %v708 = vpop.f32.mrf.mxu0
    %v709 = vadd.f32 %v564, %v708
    %v710 = vpop.f32.mrf.mxu0
    %711 = vmatprep.mubr.f32.mxu0 0.0
    %712 = vmatmul.mubr.f32.gmra.mxu0 %v433
    %v713 = vpop.f32.mrf.mxu0
    %v714 = vadd.f32 %v569, %v713
    %v715 = vpop.f32.mrf.mxu0
    %716 = vmatprep.mubr.f32.mxu0 0.0
    %717 = vmatmul.mubr.f32.gmra.mxu0 %v434
    %v718 = vpop.f32.mrf.mxu0
    %v719 = vadd.f32 %v574, %v718
    %v720 = vpop.f32.mrf.mxu0
    %721 = vmatprep.mubr.f32.mxu0 0.0
    %722 = vmatmul.mubr.f32.gmra.mxu0 %v435
    %v723 = vpop.f32.mrf.mxu0
    %v724 = vadd.f32 %v579, %v723
    %v725 = vpop.f32.mrf.mxu0
    %726 = vmatprep.mubr.f32.mxu0 0.0
    %727 = vmatmul.mubr.f32.gmra.mxu0 %v436
    %v728 = vpop.f32.mrf.mxu0
    %v729 = vadd.f32 %v584, %v728
    %v730 = vpop.f32.mrf.mxu0
    %731 = vmatprep.mubr.f32.mxu0 0.0
    %732 = vmatmul.mubr.f32.gmra.mxu0 %v437
    %v733 = vpop.f32.mrf.mxu0
    %v734 = vadd.f32 %v589, %v733
    %v735 = vpop.f32.mrf.mxu0
    %736 = vmatprep.mubr.f32.mxu0 0.0
    %737 = vmatmul.mubr.f32.gmra.mxu0 %v438
    %v738 = vpop.f32.mrf.mxu0
    %v739 = vadd.f32 %v594, %v738
    %v740 = vpop.f32.mrf.mxu0
    %741 = vmatprep.mubr.f32.mxu0 0.0
    %742 = vmatmul.mubr.f32.gmra.mxu0 %v439
    %v743 = vpop.f32.mrf.mxu0
    %v744 = vadd.f32 %v599, %v743
    %v745 = vpop.f32.mrf.mxu0
    %746 = vmatprep.mubr.f32.mxu0 0.0
    %747 = vmatmul.mubr.f32.gmra.mxu0 %v440
    %v748 = vpop.f32.mrf.mxu0
    %v749 = vadd.f32 %v604, %v748
    %v750 = vpop.f32.mrf.mxu0
    %751 = vmatprep.mubr.f32.mxu0 0.0
    %752 = vmatmul.mubr.f32.gmra.mxu0 %v441
    %v753 = vpop.f32.mrf.mxu0
    %v754 = vadd.f32 %v609, %v753
    %v755 = vpop.f32.mrf.mxu0
    %756 = vmatprep.mubr.f32.mxu0 0.0
    %757 = vmatmul.mubr.f32.gmra.mxu0 %v442
    %v758 = vpop.f32.mrf.mxu0
    %v759 = vadd.f32 %v614, %v758
    %v760 = vpop.f32.mrf.mxu0
    %761 = vmatprep.mubr.f32.mxu0 0.0
    %762 = vmatmul.mubr.f32.gmra.mxu0 %v443
    %v763 = vpop.f32.mrf.mxu0
    %v764 = vadd.f32 %v619, %v763
    %v765 = vpop.f32.mrf.mxu0
    %766 = vmatprep.mubr.f32.mxu0 0.0
    %767 = vmatmul.mubr.f32.gmra.mxu0 %v444
    %v768 = vpop.f32.mrf.mxu0
    %v769 = vadd.f32 %v624, %v768
    %v770 = vpop.f32.mrf.mxu0
    %771 = vmatprep.mubr.f32.mxu0 0.0
    %772 = vmatmul.mubr.f32.gmra.mxu0 %v445
    %v773 = vpop.f32.mrf.mxu0
    %v774 = vadd.f32 %v629, %v773
    %v775 = vpop.f32.mrf.mxu0
    %776 = vmatprep.mubr.f32.mxu0 0.0
    %777 = vmatmul.mubr.f32.gmra.mxu0 %v446
    %v778 = vpop.f32.mrf.mxu0
    %v779 = vadd.f32 %v634, %v778
    %v780 = vpop.f32.mrf.mxu0
    %781 = vmatprep.mubr.f32.mxu0 0.0
    %782 = vmatmul.mubr.f32.gmra.mxu0 %v447
    %v783 = vpop.f32.mrf.mxu0
    %v784 = vadd.f32 %v639, %v783
    %v785 = vpop.f32.mrf.mxu0
    %786 = vdwg.mxu0
    %787 = vmatprep.subr.mxu0 0.0
    %788 = vmatpush1.msra.mxu0 %v367
    %789 = vmatprep.subr.mxu0 0.0
    %790 = vmatpush1.msra.mxu0 %v366
    %791 = vmatprep.subr.mxu0 0.0
    %792 = vmatpush1.msra.mxu0 %v365
    %793 = vmatprep.subr.mxu0 0.0
    %794 = vmatpush1.msra.mxu0 %v364
    %795 = vmatprep.subr.mxu0 0.0
    %796 = vmatpush1.msra.mxu0 %v363
    %797 = vmatprep.subr.mxu0 0.0
    %798 = vmatpush1.msra.mxu0 %v362
    %799 = vmatprep.subr.mxu0 0.0
    %800 = vmatpush1.msra.mxu0 %v361
    %801 = vmatprep.subr.mxu0 0.0
    %802 = vmatpush1.msra.mxu0 %v360
    %803 = vmatprep.subr.mxu0 0.0
    %804 = vmatpush1.msra.mxu0 %v359
    %805 = vmatprep.subr.mxu0 0.0
    %806 = vmatpush1.msra.mxu0 %v358
    %807 = vmatprep.subr.mxu0 0.0
    %808 = vmatpush1.msra.mxu0 %v357
    %809 = vmatprep.subr.mxu0 0.0
    %810 = vmatpush1.msra.mxu0 %v356
    %811 = vmatprep.subr.mxu0 0.0
    %812 = vmatpush1.msra.mxu0 %v355
    %813 = vmatprep.subr.mxu0 0.0
    %814 = vmatpush1.msra.mxu0 %v354
    %815 = vmatprep.subr.mxu0 0.0
    %816 = vmatpush1.msra.mxu0 %v353
    %817 = vmatprep.subr.mxu0 0.0
    %818 = vmatpush1.msra.mxu0 %v352
    %819 = vmatprep.subr.mxu0 0.0
    %820 = vmatpush2.msra.mxu0 %v383
    %821 = vmatprep.subr.mxu0 0.0
    %822 = vmatpush2.msra.mxu0 %v382
    %823 = vmatprep.subr.mxu0 0.0
    %824 = vmatpush2.msra.mxu0 %v381
    %825 = vmatprep.subr.mxu0 0.0
    %826 = vmatpush2.msra.mxu0 %v380
    %827 = vmatprep.subr.mxu0 0.0
    %828 = vmatpush2.msra.mxu0 %v379
    %829 = vmatprep.subr.mxu0 0.0
    %830 = vmatpush2.msra.mxu0 %v378
    %831 = vmatprep.subr.mxu0 0.0
    %832 = vmatpush2.msra.mxu0 %v377
    %833 = vmatprep.subr.mxu0 0.0
    %834 = vmatpush2.msra.mxu0 %v376
    %835 = vmatprep.subr.mxu0 0.0
    %836 = vmatpush2.msra.mxu0 %v375
    %837 = vmatprep.subr.mxu0 0.0
    %838 = vmatpush2.msra.mxu0 %v374
    %839 = vmatprep.subr.mxu0 0.0
    %840 = vmatpush2.msra.mxu0 %v373
    %841 = vmatprep.subr.mxu0 0.0
    %842 = vmatpush2.msra.mxu0 %v372
    %843 = vmatprep.subr.mxu0 0.0
    %844 = vmatpush2.msra.mxu0 %v371
    %845 = vmatprep.subr.mxu0 0.0
    %846 = vmatpush2.msra.mxu0 %v370
    %847 = vmatprep.subr.mxu0 0.0
    %848 = vmatpush2.msra.mxu0 %v369
    %849 = vmatprep.subr.mxu0 0.0
    %850 = vmatpush2.msra.mxu0 %v368
    %851 = vmatprep.mubr.f32.mxu0 %v320
    %852 = vmatmul.mubr.f32.gmra.mxu0 %v304
    %v853 = vpop.f32.mrf.mxu0
    %v854 = vadd.f32 %v709, %v853
    %v855 = vpop.f32.mrf.mxu0
    %856 = vmatprep.mubr.f32.mxu0 %v321
    %857 = vmatmul.mubr.f32.gmra.mxu0 %v305
    %v858 = vpop.f32.mrf.mxu0
    %v859 = vadd.f32 %v714, %v858
    %v860 = vpop.f32.mrf.mxu0
    %861 = vmatprep.mubr.f32.mxu0 %v322
    %862 = vmatmul.mubr.f32.gmra.mxu0 %v306
    %v863 = vpop.f32.mrf.mxu0
    %v864 = vadd.f32 %v719, %v863
    %v865 = vpop.f32.mrf.mxu0
    %866 = vmatprep.mubr.f32.mxu0 %v323
    %867 = vmatmul.mubr.f32.gmra.mxu0 %v307
    %v868 = vpop.f32.mrf.mxu0
    %v869 = vadd.f32 %v724, %v868
    %v870 = vpop.f32.mrf.mxu0
    %871 = vmatprep.mubr.f32.mxu0 %v324
    %872 = vmatmul.mubr.f32.gmra.mxu0 %v308
    %v873 = vpop.f32.mrf.mxu0
    %v874 = vadd.f32 %v729, %v873
    %v875 = vpop.f32.mrf.mxu0
    %876 = vmatprep.mubr.f32.mxu0 %v325
    %877 = vmatmul.mubr.f32.gmra.mxu0 %v309
    %v878 = vpop.f32.mrf.mxu0
    %v879 = vadd.f32 %v734, %v878
    %v880 = vpop.f32.mrf.mxu0
    %881 = vmatprep.mubr.f32.mxu0 %v326
    %882 = vmatmul.mubr.f32.gmra.mxu0 %v310
    %v883 = vpop.f32.mrf.mxu0
    %v884 = vadd.f32 %v739, %v883
    %v885 = vpop.f32.mrf.mxu0
    %886 = vmatprep.mubr.f32.mxu0 %v327
    %887 = vmatmul.mubr.f32.gmra.mxu0 %v311
    %v888 = vpop.f32.mrf.mxu0
    %v889 = vadd.f32 %v744, %v888
    %v890 = vpop.f32.mrf.mxu0
    %891 = vmatprep.mubr.f32.mxu0 %v328
    %892 = vmatmul.mubr.f32.gmra.mxu0 %v312
    %v893 = vpop.f32.mrf.mxu0
    %v894 = vadd.f32 %v749, %v893
    %v895 = vpop.f32.mrf.mxu0
    %896 = vmatprep.mubr.f32.mxu0 %v329
    %897 = vmatmul.mubr.f32.gmra.mxu0 %v313
    %v898 = vpop.f32.mrf.mxu0
    %v899 = vadd.f32 %v754, %v898
    %v900 = vpop.f32.mrf.mxu0
    %901 = vmatprep.mubr.f32.mxu0 %v330
    %902 = vmatmul.mubr.f32.gmra.mxu0 %v314
    %v903 = vpop.f32.mrf.mxu0
    %v904 = vadd.f32 %v759, %v903
    %v905 = vpop.f32.mrf.mxu0
    %906 = vmatprep.mubr.f32.mxu0 %v331
    %907 = vmatmul.mubr.f32.gmra.mxu0 %v315
    %v908 = vpop.f32.mrf.mxu0
    %v909 = vadd.f32 %v764, %v908
    %v910 = vpop.f32.mrf.mxu0
    %911 = vmatprep.mubr.f32.mxu0 %v332
    %912 = vmatmul.mubr.f32.gmra.mxu0 %v316
    %v913 = vpop.f32.mrf.mxu0
    %v914 = vadd.f32 %v769, %v913
    %v915 = vpop.f32.mrf.mxu0
    %916 = vmatprep.mubr.f32.mxu0 %v333
    %917 = vmatmul.mubr.f32.gmra.mxu0 %v317
    %v918 = vpop.f32.mrf.mxu0
    %v919 = vadd.f32 %v774, %v918
    %v920 = vpop.f32.mrf.mxu0
    %921 = vmatprep.mubr.f32.mxu0 %v334
    %922 = vmatmul.mubr.f32.gmra.mxu0 %v318
    %v923 = vpop.f32.mrf.mxu0
    %v924 = vadd.f32 %v779, %v923
    %v925 = vpop.f32.mrf.mxu0
    %926 = vmatprep.mubr.f32.mxu0 %v335
    %927 = vmatmul.mubr.f32.gmra.mxu0 %v319
    %v928 = vpop.f32.mrf.mxu0
    %v929 = vadd.f32 %v784, %v928
    %v930 = vpop.f32.mrf.mxu0
    %931 = vdwg.mxu0
    %932 = vmatprep.subr.mxu0 0.0
    %933 = vmatpush1.msra.mxu0 %v399
    %934 = vmatprep.subr.mxu0 0.0
    %935 = vmatpush1.msra.mxu0 %v398
    %936 = vmatprep.subr.mxu0 0.0
    %937 = vmatpush1.msra.mxu0 %v397
    %938 = vmatprep.subr.mxu0 0.0
    %939 = vmatpush1.msra.mxu0 %v396
    %940 = vmatprep.subr.mxu0 0.0
    %941 = vmatpush1.msra.mxu0 %v395
    %942 = vmatprep.subr.mxu0 0.0
    %943 = vmatpush1.msra.mxu0 %v394
    %944 = vmatprep.subr.mxu0 0.0
    %945 = vmatpush1.msra.mxu0 %v393
    %946 = vmatprep.subr.mxu0 0.0
    %947 = vmatpush1.msra.mxu0 %v392
    %948 = vmatprep.subr.mxu0 0.0
    %949 = vmatpush1.msra.mxu0 %v391
    %950 = vmatprep.subr.mxu0 0.0
    %951 = vmatpush1.msra.mxu0 %v390
    %952 = vmatprep.subr.mxu0 0.0
    %953 = vmatpush1.msra.mxu0 %v389
    %954 = vmatprep.subr.mxu0 0.0
    %955 = vmatpush1.msra.mxu0 %v388
    %956 = vmatprep.subr.mxu0 0.0
    %957 = vmatpush1.msra.mxu0 %v387
    %958 = vmatprep.subr.mxu0 0.0
    %959 = vmatpush1.msra.mxu0 %v386
    %960 = vmatprep.subr.mxu0 0.0
    %961 = vmatpush1.msra.mxu0 %v385
    %962 = vmatprep.subr.mxu0 0.0
    %963 = vmatpush1.msra.mxu0 %v384
    %964 = vmatprep.subr.mxu0 0.0
    %965 = vmatpush2.msra.mxu0 0.0
    %966 = vmatprep.subr.mxu0 0.0
    %967 = vmatpush2.msra.mxu0 0.0
    %968 = vmatprep.subr.mxu0 0.0
    %969 = vmatpush2.msra.mxu0 0.0
    %970 = vmatprep.subr.mxu0 0.0
    %971 = vmatpush2.msra.mxu0 0.0
    %972 = vmatprep.subr.mxu0 0.0
    %973 = vmatpush2.msra.mxu0 0.0
    %974 = vmatprep.subr.mxu0 0.0
    %975 = vmatpush2.msra.mxu0 0.0
    %976 = vmatprep.subr.mxu0 0.0
    %977 = vmatpush2.msra.mxu0 0.0
    %978 = vmatprep.subr.mxu0 0.0
    %979 = vmatpush2.msra.mxu0 0.0
    %980 = vmatprep.subr.mxu0 0.0
    %981 = vmatpush2.msra.mxu0 0.0
    %982 = vmatprep.subr.mxu0 0.0
    %983 = vmatpush2.msra.mxu0 0.0
    %984 = vmatprep.subr.mxu0 0.0
    %985 = vmatpush2.msra.mxu0 0.0
    %986 = vmatprep.subr.mxu0 0.0
    %987 = vmatpush2.msra.mxu0 0.0
    %988 = vmatprep.subr.mxu0 0.0
    %989 = vmatpush2.msra.mxu0 0.0
    %990 = vmatprep.subr.mxu0 0.0
    %991 = vmatpush2.msra.mxu0 0.0
    %992 = vmatprep.subr.mxu0 0.0
    %993 = vmatpush2.msra.mxu0 0.0
    %994 = vmatprep.subr.mxu0 0.0
    %995 = vmatpush2.msra.mxu0 0.0
    %996 = vmatprep.mubr.f32.mxu0 0.0
    %997 = vmatmul.mubr.f32.gmra.mxu0 %v336
    %v998 = vpop.f32.mrf.mxu0
    %v999 = vadd.f32 %v854, %v998
    %v1000 = vpop.f32.mrf.mxu0
    %1001 = vmatprep.mubr.f32.mxu0 0.0
    %1002 = vmatmul.mubr.f32.gmra.mxu0 %v337
    %v1003 = vpop.f32.mrf.mxu0
    %v1004 = vadd.f32 %v859, %v1003
    %v1005 = vpop.f32.mrf.mxu0
    %1006 = vmatprep.mubr.f32.mxu0 0.0
    %1007 = vmatmul.mubr.f32.gmra.mxu0 %v338
    %v1008 = vpop.f32.mrf.mxu0
    %v1009 = vadd.f32 %v864, %v1008
    %v1010 = vpop.f32.mrf.mxu0
    %1011 = vmatprep.mubr.f32.mxu0 0.0
    %1012 = vmatmul.mubr.f32.gmra.mxu0 %v339
    %v1013 = vpop.f32.mrf.mxu0
    %v1014 = vadd.f32 %v869, %v1013
    %v1015 = vpop.f32.mrf.mxu0
    %1016 = vmatprep.mubr.f32.mxu0 0.0
    %1017 = vmatmul.mubr.f32.gmra.mxu0 %v340
    %v1018 = vpop.f32.mrf.mxu0
    %v1019 = vadd.f32 %v874, %v1018
    %v1020 = vpop.f32.mrf.mxu0
    %1021 = vmatprep.mubr.f32.mxu0 0.0
    %1022 = vmatmul.mubr.f32.gmra.mxu0 %v341
    %v1023 = vpop.f32.mrf.mxu0
    %v1024 = vadd.f32 %v879, %v1023
    %v1025 = vpop.f32.mrf.mxu0
    %1026 = vmatprep.mubr.f32.mxu0 0.0
    %1027 = vmatmul.mubr.f32.gmra.mxu0 %v342
    %v1028 = vpop.f32.mrf.mxu0
    %v1029 = vadd.f32 %v884, %v1028
    %v1030 = vpop.f32.mrf.mxu0
    %1031 = vmatprep.mubr.f32.mxu0 0.0
    %1032 = vmatmul.mubr.f32.gmra.mxu0 %v343
    %v1033 = vpop.f32.mrf.mxu0
    %v1034 = vadd.f32 %v889, %v1033
    %v1035 = vpop.f32.mrf.mxu0
    %1036 = vmatprep.mubr.f32.mxu0 0.0
    %1037 = vmatmul.mubr.f32.gmra.mxu0 %v344
    %v1038 = vpop.f32.mrf.mxu0
    %v1039 = vadd.f32 %v894, %v1038
    %v1040 = vpop.f32.mrf.mxu0
    %1041 = vmatprep.mubr.f32.mxu0 0.0
    %1042 = vmatmul.mubr.f32.gmra.mxu0 %v345
    %v1043 = vpop.f32.mrf.mxu0
    %v1044 = vadd.f32 %v899, %v1043
    %v1045 = vpop.f32.mrf.mxu0
    %1046 = vmatprep.mubr.f32.mxu0 0.0
    %1047 = vmatmul.mubr.f32.gmra.mxu0 %v346
    %v1048 = vpop.f32.mrf.mxu0
    %v1049 = vadd.f32 %v904, %v1048
    %v1050 = vpop.f32.mrf.mxu0
    %1051 = vmatprep.mubr.f32.mxu0 0.0
    %1052 = vmatmul.mubr.f32.gmra.mxu0 %v347
    %v1053 = vpop.f32.mrf.mxu0
    %v1054 = vadd.f32 %v909, %v1053
    %v1055 = vpop.f32.mrf.mxu0
    %1056 = vmatprep.mubr.f32.mxu0 0.0
    %1057 = vmatmul.mubr.f32.gmra.mxu0 %v348
    %v1058 = vpop.f32.mrf.mxu0
    %v1059 = vadd.f32 %v914, %v1058
    %v1060 = vpop.f32.mrf.mxu0
    %1061 = vmatprep.mubr.f32.mxu0 0.0
    %1062 = vmatmul.mubr.f32.gmra.mxu0 %v349
    %v1063 = vpop.f32.mrf.mxu0
    %v1064 = vadd.f32 %v919, %v1063
    %v1065 = vpop.f32.mrf.mxu0
    %1066 = vmatprep.mubr.f32.mxu0 0.0
    %1067 = vmatmul.mubr.f32.gmra.mxu0 %v350
    %v1068 = vpop.f32.mrf.mxu0
    %v1069 = vadd.f32 %v924, %v1068
    %v1070 = vpop.f32.mrf.mxu0
    %1071 = vmatprep.mubr.f32.mxu0 0.0
    %1072 = vmatmul.mubr.f32.gmra.mxu0 %v351
    %v1073 = vpop.f32.mrf.mxu0
    %v1074 = vadd.f32 %v929, %v1073
    %v1075 = vpop.f32.mrf.mxu0
    %1076 = vdwg.mxu0
    %s1077 = scalar_lea.vmem [#allocation2], 32
    %v1078 = vld [vmem:[%s1077] sm:$0xff]
    %v1079 = vld [vmem:[%s1077 + $0x10] sm:$0xff]
    %v1080 = vld [vmem:[%s1077 + $0x20] sm:$0xff]
    %v1081 = vld [vmem:[%s1077 + $0x30] sm:$0xff]
    %v1082 = vld [vmem:[%s1077 + $0x40] sm:$0xff]
    %v1083 = vld [vmem:[%s1077 + $0x50] sm:$0xff]
    %v1084 = vld [vmem:[%s1077 + $0x60] sm:$0xff]
    %v1085 = vld [vmem:[%s1077 + $0x70] sm:$0xff]
    %v1086 = vld [vmem:[%s1077 + $0xa0] sm:$0xff]
    %v1087 = vld [vmem:[%s1077 + $0xb0] sm:$0xff]
    %v1088 = vld [vmem:[%s1077 + $0xc0] sm:$0xff]
    %v1089 = vld [vmem:[%s1077 + $0xd0] sm:$0xff]
    %v1090 = vld [vmem:[%s1077 + $0xe0] sm:$0xff]
    %v1091 = vld [vmem:[%s1077 + $0xf0] sm:$0xff]
    %v1092 = vld [vmem:[%s1077 + $0x100] sm:$0xff]
    %v1093 = vld [vmem:[%s1077 + $0x110] sm:$0xff]
    %v1094 = vld [vmem:[%s1077 + $0x1] sm:$0xff]
    %v1095 = vld [vmem:[%s1077 + $0x11] sm:$0xff]
    %v1096 = vld [vmem:[%s1077 + $0x21] sm:$0xff]
    %v1097 = vld [vmem:[%s1077 + $0x31] sm:$0xff]
    %v1098 = vld [vmem:[%s1077 + $0x41] sm:$0xff]
    %v1099 = vld [vmem:[%s1077 + $0x51] sm:$0xff]
    %v1100 = vld [vmem:[%s1077 + $0x61] sm:$0xff]
    %v1101 = vld [vmem:[%s1077 + $0x71] sm:$0xff]
    %v1102 = vld [vmem:[%s1077 + $0xa1] sm:$0xff]
    %v1103 = vld [vmem:[%s1077 + $0xb1] sm:$0xff]
    %v1104 = vld [vmem:[%s1077 + $0xc1] sm:$0xff]
    %v1105 = vld [vmem:[%s1077 + $0xd1] sm:$0xff]
    %v1106 = vld [vmem:[%s1077 + $0xe1] sm:$0xff]
    %v1107 = vld [vmem:[%s1077 + $0xf1] sm:$0xff]
    %v1108 = vld [vmem:[%s1077 + $0x101] sm:$0xff]
    %v1109 = vld [vmem:[%s1077 + $0x111] sm:$0xff]
    %v1110 = vld [vmem:[%s1077 + $0x2] sm:$0xff]
    %v1111 = vld [vmem:[%s1077 + $0x12] sm:$0xff]
    %v1112 = vld [vmem:[%s1077 + $0x22] sm:$0xff]
    %v1113 = vld [vmem:[%s1077 + $0x32] sm:$0xff]
    %v1114 = vld [vmem:[%s1077 + $0x42] sm:$0xff]
    %v1115 = vld [vmem:[%s1077 + $0x52] sm:$0xff]
    %v1116 = vld [vmem:[%s1077 + $0x62] sm:$0xff]
    %v1117 = vld [vmem:[%s1077 + $0x72] sm:$0xff]
    %v1118 = vld [vmem:[%s1077 + $0xa2] sm:$0xff]
    %v1119 = vld [vmem:[%s1077 + $0xb2] sm:$0xff]
    %v1120 = vld [vmem:[%s1077 + $0xc2] sm:$0xff]
    %v1121 = vld [vmem:[%s1077 + $0xd2] sm:$0xff]
    %v1122 = vld [vmem:[%s1077 + $0xe2] sm:$0xff]
    %v1123 = vld [vmem:[%s1077 + $0xf2] sm:$0xff]
    %v1124 = vld [vmem:[%s1077 + $0x102] sm:$0xff]
    %v1125 = vld [vmem:[%s1077 + $0x112] sm:$0xff]
    %s1126 = scalar_lea.vmem [#allocation9], 768
    %v1127 = vld [vmem:[%s1126] sm:$0xff]
    %v1128 = vld [vmem:[%s1126 + $0x8] sm:$0xff]
    %v1129 = vld [vmem:[%s1126 + $0x10] sm:$0xff]
    %v1130 = vld [vmem:[%s1126 + $0x18] sm:$0xff]
    %v1131 = vld [vmem:[%s1126 + $0x20] sm:$0xff]
    %v1132 = vld [vmem:[%s1126 + $0x28] sm:$0xff]
    %v1133 = vld [vmem:[%s1126 + $0x30] sm:$0xff]
    %v1134 = vld [vmem:[%s1126 + $0x38] sm:$0xff]
    %v1135 = vld [vmem:[%s1126 + $0x40] sm:$0xff]
    %v1136 = vld [vmem:[%s1126 + $0x48] sm:$0xff]
    %v1137 = vld [vmem:[%s1126 + $0x50] sm:$0xff]
    %v1138 = vld [vmem:[%s1126 + $0x58] sm:$0xff]
    %v1139 = vld [vmem:[%s1126 + $0x60] sm:$0xff]
    %v1140 = vld [vmem:[%s1126 + $0x68] sm:$0xff]
    %v1141 = vld [vmem:[%s1126 + $0x70] sm:$0xff]
    %v1142 = vld [vmem:[%s1126 + $0x78] sm:$0xff]
    %v1143 = vld [vmem:[%s1126 + $0x80] sm:$0xff]
    %v1144 = vld [vmem:[%s1126 + $0x88] sm:$0xff]
    %v1145 = vld [vmem:[%s1126 + $0x90] sm:$0xff]
    %v1146 = vld [vmem:[%s1126 + $0x98] sm:$0xff]
    %v1147 = vld [vmem:[%s1126 + $0xa0] sm:$0xff]
    %v1148 = vld [vmem:[%s1126 + $0xa8] sm:$0xff]
    %v1149 = vld [vmem:[%s1126 + $0xb0] sm:$0xff]
    %v1150 = vld [vmem:[%s1126 + $0xb8] sm:$0xff]
    %v1151 = vld [vmem:[%s1126 + $0xc0] sm:$0xff]
    %v1152 = vld [vmem:[%s1126 + $0xc8] sm:$0xff]
    %v1153 = vld [vmem:[%s1126 + $0xd0] sm:$0xff]
    %v1154 = vld [vmem:[%s1126 + $0xd8] sm:$0xff]
    %v1155 = vld [vmem:[%s1126 + $0xe0] sm:$0xff]
    %v1156 = vld [vmem:[%s1126 + $0xe8] sm:$0xff]
    %v1157 = vld [vmem:[%s1126 + $0xf0] sm:$0xff]
    %v1158 = vld [vmem:[%s1126 + $0xf8] sm:$0xff]
    %v1159 = vld [vmem:[%s1126 + $0x100] sm:$0xff]
    %v1160 = vld [vmem:[%s1126 + $0x108] sm:$0xff]
    %v1161 = vld [vmem:[%s1126 + $0x110] sm:$0xff]
    %v1162 = vld [vmem:[%s1126 + $0x118] sm:$0xff]
    %v1163 = vld [vmem:[%s1126 + $0x120] sm:$0xff]
    %v1164 = vld [vmem:[%s1126 + $0x128] sm:$0xff]
    %v1165 = vld [vmem:[%s1126 + $0x130] sm:$0xff]
    %v1166 = vld [vmem:[%s1126 + $0x138] sm:$0xff]
    %v1167 = vld [vmem:[%s1126 + $0x140] sm:$0xff]
    %v1168 = vld [vmem:[%s1126 + $0x148] sm:$0xff]
    %v1169 = vld [vmem:[%s1126 + $0x150] sm:$0xff]
    %v1170 = vld [vmem:[%s1126 + $0x158] sm:$0xff]
    %v1171 = vld [vmem:[%s1126 + $0x160] sm:$0xff]
    %v1172 = vld [vmem:[%s1126 + $0x168] sm:$0xff]
    %v1173 = vld [vmem:[%s1126 + $0x170] sm:$0xff]
    %v1174 = vld [vmem:[%s1126 + $0x178] sm:$0xff]
    %1175 = vmatprep.subr.mxu0 0.0
    %1176 = vmatpush1.msra.mxu0 %v1142
    %1177 = vmatprep.subr.mxu0 0.0
    %1178 = vmatpush1.msra.mxu0 %v1141
    %1179 = vmatprep.subr.mxu0 0.0
    %1180 = vmatpush1.msra.mxu0 %v1140
    %1181 = vmatprep.subr.mxu0 0.0
    %1182 = vmatpush1.msra.mxu0 %v1139
    %1183 = vmatprep.subr.mxu0 0.0
    %1184 = vmatpush1.msra.mxu0 %v1138
    %1185 = vmatprep.subr.mxu0 0.0
    %1186 = vmatpush1.msra.mxu0 %v1137
    %1187 = vmatprep.subr.mxu0 0.0
    %1188 = vmatpush1.msra.mxu0 %v1136
    %1189 = vmatprep.subr.mxu0 0.0
    %1190 = vmatpush1.msra.mxu0 %v1135
    %1191 = vmatprep.subr.mxu0 0.0
    %1192 = vmatpush1.msra.mxu0 %v1134
    %1193 = vmatprep.subr.mxu0 0.0
    %1194 = vmatpush1.msra.mxu0 %v1133
    %1195 = vmatprep.subr.mxu0 0.0
    %1196 = vmatpush1.msra.mxu0 %v1132
    %1197 = vmatprep.subr.mxu0 0.0
    %1198 = vmatpush1.msra.mxu0 %v1131
    %1199 = vmatprep.subr.mxu0 0.0
    %1200 = vmatpush1.msra.mxu0 %v1130
    %1201 = vmatprep.subr.mxu0 0.0
    %1202 = vmatpush1.msra.mxu0 %v1129
    %1203 = vmatprep.subr.mxu0 0.0
    %1204 = vmatpush1.msra.mxu0 %v1128
    %1205 = vmatprep.subr.mxu0 0.0
    %1206 = vmatpush1.msra.mxu0 %v1127
    %1207 = vmatprep.subr.mxu0 0.0
    %1208 = vmatpush2.msra.mxu0 %v1158
    %1209 = vmatprep.subr.mxu0 0.0
    %1210 = vmatpush2.msra.mxu0 %v1157
    %1211 = vmatprep.subr.mxu0 0.0
    %1212 = vmatpush2.msra.mxu0 %v1156
    %1213 = vmatprep.subr.mxu0 0.0
    %1214 = vmatpush2.msra.mxu0 %v1155
    %1215 = vmatprep.subr.mxu0 0.0
    %1216 = vmatpush2.msra.mxu0 %v1154
    %1217 = vmatprep.subr.mxu0 0.0
    %1218 = vmatpush2.msra.mxu0 %v1153
    %1219 = vmatprep.subr.mxu0 0.0
    %1220 = vmatpush2.msra.mxu0 %v1152
    %1221 = vmatprep.subr.mxu0 0.0
    %1222 = vmatpush2.msra.mxu0 %v1151
    %1223 = vmatprep.subr.mxu0 0.0
    %1224 = vmatpush2.msra.mxu0 %v1150
    %1225 = vmatprep.subr.mxu0 0.0
    %1226 = vmatpush2.msra.mxu0 %v1149
    %1227 = vmatprep.subr.mxu0 0.0
    %1228 = vmatpush2.msra.mxu0 %v1148
    %1229 = vmatprep.subr.mxu0 0.0
    %1230 = vmatpush2.msra.mxu0 %v1147
    %1231 = vmatprep.subr.mxu0 0.0
    %1232 = vmatpush2.msra.mxu0 %v1146
    %1233 = vmatprep.subr.mxu0 0.0
    %1234 = vmatpush2.msra.mxu0 %v1145
    %1235 = vmatprep.subr.mxu0 0.0
    %1236 = vmatpush2.msra.mxu0 %v1144
    %1237 = vmatprep.subr.mxu0 0.0
    %1238 = vmatpush2.msra.mxu0 %v1143
    %1239 = vmatprep.mubr.f32.mxu0 %v1094
    %1240 = vmatmul.mubr.f32.gmra.mxu0 %v1078
    %v1241 = vpop.f32.mrf.mxu0
    %v1242 = vadd.f32 0.0, %v1241
    %v1243 = vpop.f32.mrf.mxu0
    %1244 = vmatprep.mubr.f32.mxu0 %v1095
    %1245 = vmatmul.mubr.f32.gmra.mxu0 %v1079
    %v1246 = vpop.f32.mrf.mxu0
    %v1247 = vadd.f32 0.0, %v1246
    %v1248 = vpop.f32.mrf.mxu0
    %1249 = vmatprep.mubr.f32.mxu0 %v1096
    %1250 = vmatmul.mubr.f32.gmra.mxu0 %v1080
    %v1251 = vpop.f32.mrf.mxu0
    %v1252 = vadd.f32 0.0, %v1251
    %v1253 = vpop.f32.mrf.mxu0
    %1254 = vmatprep.mubr.f32.mxu0 %v1097
    %1255 = vmatmul.mubr.f32.gmra.mxu0 %v1081
    %v1256 = vpop.f32.mrf.mxu0
    %v1257 = vadd.f32 0.0, %v1256
    %v1258 = vpop.f32.mrf.mxu0
    %1259 = vmatprep.mubr.f32.mxu0 %v1098
    %1260 = vmatmul.mubr.f32.gmra.mxu0 %v1082
    %v1261 = vpop.f32.mrf.mxu0
    %v1262 = vadd.f32 0.0, %v1261
    %v1263 = vpop.f32.mrf.mxu0
    %1264 = vmatprep.mubr.f32.mxu0 %v1099
    %1265 = vmatmul.mubr.f32.gmra.mxu0 %v1083
    %v1266 = vpop.f32.mrf.mxu0
    %v1267 = vadd.f32 0.0, %v1266
    %v1268 = vpop.f32.mrf.mxu0
    %1269 = vmatprep.mubr.f32.mxu0 %v1100
    %1270 = vmatmul.mubr.f32.gmra.mxu0 %v1084
    %v1271 = vpop.f32.mrf.mxu0
    %v1272 = vadd.f32 0.0, %v1271
    %v1273 = vpop.f32.mrf.mxu0
    %1274 = vmatprep.mubr.f32.mxu0 %v1101
    %1275 = vmatmul.mubr.f32.gmra.mxu0 %v1085
    %v1276 = vpop.f32.mrf.mxu0
    %v1277 = vadd.f32 0.0, %v1276
    %v1278 = vpop.f32.mrf.mxu0
    %1279 = vmatprep.mubr.f32.mxu0 %v1102
    %1280 = vmatmul.mubr.f32.gmra.mxu0 %v1086
    %v1281 = vpop.f32.mrf.mxu0
    %v1282 = vadd.f32 0.0, %v1281
    %v1283 = vpop.f32.mrf.mxu0
    %1284 = vmatprep.mubr.f32.mxu0 %v1103
    %1285 = vmatmul.mubr.f32.gmra.mxu0 %v1087
    %v1286 = vpop.f32.mrf.mxu0
    %v1287 = vadd.f32 0.0, %v1286
    %v1288 = vpop.f32.mrf.mxu0
    %1289 = vmatprep.mubr.f32.mxu0 %v1104
    %1290 = vmatmul.mubr.f32.gmra.mxu0 %v1088
    %v1291 = vpop.f32.mrf.mxu0
    %v1292 = vadd.f32 0.0, %v1291
    %v1293 = vpop.f32.mrf.mxu0
    %1294 = vmatprep.mubr.f32.mxu0 %v1105
    %1295 = vmatmul.mubr.f32.gmra.mxu0 %v1089
    %v1296 = vpop.f32.mrf.mxu0
    %v1297 = vadd.f32 0.0, %v1296
    %v1298 = vpop.f32.mrf.mxu0
    %1299 = vmatprep.mubr.f32.mxu0 %v1106
    %1300 = vmatmul.mubr.f32.gmra.mxu0 %v1090
    %v1301 = vpop.f32.mrf.mxu0
    %v1302 = vadd.f32 0.0, %v1301
    %v1303 = vpop.f32.mrf.mxu0
    %1304 = vmatprep.mubr.f32.mxu0 %v1107
    %1305 = vmatmul.mubr.f32.gmra.mxu0 %v1091
    %v1306 = vpop.f32.mrf.mxu0
    %v1307 = vadd.f32 0.0, %v1306
    %v1308 = vpop.f32.mrf.mxu0
    %1309 = vmatprep.mubr.f32.mxu0 %v1108
    %1310 = vmatmul.mubr.f32.gmra.mxu0 %v1092
    %v1311 = vpop.f32.mrf.mxu0
    %v1312 = vadd.f32 0.0, %v1311
    %v1313 = vpop.f32.mrf.mxu0
    %1314 = vmatprep.mubr.f32.mxu0 %v1109
    %1315 = vmatmul.mubr.f32.gmra.mxu0 %v1093
    %v1316 = vpop.f32.mrf.mxu0
    %v1317 = vadd.f32 0.0, %v1316
    %v1318 = vpop.f32.mrf.mxu0
    %1319 = vdwg.mxu0
    %1320 = vmatprep.subr.mxu0 0.0
    %1321 = vmatpush1.msra.mxu0 %v1174
    %1322 = vmatprep.subr.mxu0 0.0
    %1323 = vmatpush1.msra.mxu0 %v1173
    %1324 = vmatprep.subr.mxu0 0.0
    %1325 = vmatpush1.msra.mxu0 %v1172
    %1326 = vmatprep.subr.mxu0 0.0
    %1327 = vmatpush1.msra.mxu0 %v1171
    %1328 = vmatprep.subr.mxu0 0.0
    %1329 = vmatpush1.msra.mxu0 %v1170
    %1330 = vmatprep.subr.mxu0 0.0
    %1331 = vmatpush1.msra.mxu0 %v1169
    %1332 = vmatprep.subr.mxu0 0.0
    %1333 = vmatpush1.msra.mxu0 %v1168
    %1334 = vmatprep.subr.mxu0 0.0
    %1335 = vmatpush1.msra.mxu0 %v1167
    %1336 = vmatprep.subr.mxu0 0.0
    %1337 = vmatpush1.msra.mxu0 %v1166
    %1338 = vmatprep.subr.mxu0 0.0
    %1339 = vmatpush1.msra.mxu0 %v1165
    %1340 = vmatprep.subr.mxu0 0.0
    %1341 = vmatpush1.msra.mxu0 %v1164
    %1342 = vmatprep.subr.mxu0 0.0
    %1343 = vmatpush1.msra.mxu0 %v1163
    %1344 = vmatprep.subr.mxu0 0.0
    %1345 = vmatpush1.msra.mxu0 %v1162
    %1346 = vmatprep.subr.mxu0 0.0
    %1347 = vmatpush1.msra.mxu0 %v1161
    %1348 = vmatprep.subr.mxu0 0.0
    %1349 = vmatpush1.msra.mxu0 %v1160
    %1350 = vmatprep.subr.mxu0 0.0
    %1351 = vmatpush1.msra.mxu0 %v1159
    %1352 = vmatprep.subr.mxu0 0.0
    %1353 = vmatpush2.msra.mxu0 0.0
    %1354 = vmatprep.subr.mxu0 0.0
    %1355 = vmatpush2.msra.mxu0 0.0
    %1356 = vmatprep.subr.mxu0 0.0
    %1357 = vmatpush2.msra.mxu0 0.0
    %1358 = vmatprep.subr.mxu0 0.0
    %1359 = vmatpush2.msra.mxu0 0.0
    %1360 = vmatprep.subr.mxu0 0.0
    %1361 = vmatpush2.msra.mxu0 0.0
    %1362 = vmatprep.subr.mxu0 0.0
    %1363 = vmatpush2.msra.mxu0 0.0
    %1364 = vmatprep.subr.mxu0 0.0
    %1365 = vmatpush2.msra.mxu0 0.0
    %1366 = vmatprep.subr.mxu0 0.0
    %1367 = vmatpush2.msra.mxu0 0.0
    %1368 = vmatprep.subr.mxu0 0.0
    %1369 = vmatpush2.msra.mxu0 0.0
    %1370 = vmatprep.subr.mxu0 0.0
    %1371 = vmatpush2.msra.mxu0 0.0
    %1372 = vmatprep.subr.mxu0 0.0
    %1373 = vmatpush2.msra.mxu0 0.0
    %1374 = vmatprep.subr.mxu0 0.0
    %1375 = vmatpush2.msra.mxu0 0.0
    %1376 = vmatprep.subr.mxu0 0.0
    %1377 = vmatpush2.msra.mxu0 0.0
    %1378 = vmatprep.subr.mxu0 0.0
    %1379 = vmatpush2.msra.mxu0 0.0
    %1380 = vmatprep.subr.mxu0 0.0
    %1381 = vmatpush2.msra.mxu0 0.0
    %1382 = vmatprep.subr.mxu0 0.0
    %1383 = vmatpush2.msra.mxu0 0.0
    %1384 = vmatprep.mubr.f32.mxu0 0.0
    %1385 = vmatmul.mubr.f32.gmra.mxu0 %v1110
    %v1386 = vpop.f32.mrf.mxu0
    %v1387 = vadd.f32 %v1242, %v1386
    %v1388 = vpop.f32.mrf.mxu0
    %1389 = vmatprep.mubr.f32.mxu0 0.0
    %1390 = vmatmul.mubr.f32.gmra.mxu0 %v1111
    %v1391 = vpop.f32.mrf.mxu0
    %v1392 = vadd.f32 %v1247, %v1391
    %v1393 = vpop.f32.mrf.mxu0
    %1394 = vmatprep.mubr.f32.mxu0 0.0
    %1395 = vmatmul.mubr.f32.gmra.mxu0 %v1112
    %v1396 = vpop.f32.mrf.mxu0
    %v1397 = vadd.f32 %v1252, %v1396
    %v1398 = vpop.f32.mrf.mxu0
    %1399 = vmatprep.mubr.f32.mxu0 0.0
    %1400 = vmatmul.mubr.f32.gmra.mxu0 %v1113
    %v1401 = vpop.f32.mrf.mxu0
    %v1402 = vadd.f32 %v1257, %v1401
    %v1403 = vpop.f32.mrf.mxu0
    %1404 = vmatprep.mubr.f32.mxu0 0.0
    %1405 = vmatmul.mubr.f32.gmra.mxu0 %v1114
    %v1406 = vpop.f32.mrf.mxu0
    %v1407 = vadd.f32 %v1262, %v1406
    %v1408 = vpop.f32.mrf.mxu0
    %1409 = vmatprep.mubr.f32.mxu0 0.0
    %1410 = vmatmul.mubr.f32.gmra.mxu0 %v1115
    %v1411 = vpop.f32.mrf.mxu0
    %v1412 = vadd.f32 %v1267, %v1411
    %v1413 = vpop.f32.mrf.mxu0
    %1414 = vmatprep.mubr.f32.mxu0 0.0
    %1415 = vmatmul.mubr.f32.gmra.mxu0 %v1116
    %v1416 = vpop.f32.mrf.mxu0
    %v1417 = vadd.f32 %v1272, %v1416
    %v1418 = vpop.f32.mrf.mxu0
    %1419 = vmatprep.mubr.f32.mxu0 0.0
    %1420 = vmatmul.mubr.f32.gmra.mxu0 %v1117
    %v1421 = vpop.f32.mrf.mxu0
    %v1422 = vadd.f32 %v1277, %v1421
    %v1423 = vpop.f32.mrf.mxu0
    %1424 = vmatprep.mubr.f32.mxu0 0.0
    %1425 = vmatmul.mubr.f32.gmra.mxu0 %v1118
    %v1426 = vpop.f32.mrf.mxu0
    %v1427 = vadd.f32 %v1282, %v1426
    %v1428 = vpop.f32.mrf.mxu0
    %1429 = vmatprep.mubr.f32.mxu0 0.0
    %1430 = vmatmul.mubr.f32.gmra.mxu0 %v1119
    %v1431 = vpop.f32.mrf.mxu0
    %v1432 = vadd.f32 %v1287, %v1431
    %v1433 = vpop.f32.mrf.mxu0
    %1434 = vmatprep.mubr.f32.mxu0 0.0
    %1435 = vmatmul.mubr.f32.gmra.mxu0 %v1120
    %v1436 = vpop.f32.mrf.mxu0
    %v1437 = vadd.f32 %v1292, %v1436
    %v1438 = vpop.f32.mrf.mxu0
    %1439 = vmatprep.mubr.f32.mxu0 0.0
    %1440 = vmatmul.mubr.f32.gmra.mxu0 %v1121
    %v1441 = vpop.f32.mrf.mxu0
    %v1442 = vadd.f32 %v1297, %v1441
    %v1443 = vpop.f32.mrf.mxu0
    %1444 = vmatprep.mubr.f32.mxu0 0.0
    %1445 = vmatmul.mubr.f32.gmra.mxu0 %v1122
    %v1446 = vpop.f32.mrf.mxu0
    %v1447 = vadd.f32 %v1302, %v1446
    %v1448 = vpop.f32.mrf.mxu0
    %1449 = vmatprep.mubr.f32.mxu0 0.0
    %1450 = vmatmul.mubr.f32.gmra.mxu0 %v1123
    %v1451 = vpop.f32.mrf.mxu0
    %v1452 = vadd.f32 %v1307, %v1451
    %v1453 = vpop.f32.mrf.mxu0
    %1454 = vmatprep.mubr.f32.mxu0 0.0
    %1455 = vmatmul.mubr.f32.gmra.mxu0 %v1124
    %v1456 = vpop.f32.mrf.mxu0
    %v1457 = vadd.f32 %v1312, %v1456
    %v1458 = vpop.f32.mrf.mxu0
    %1459 = vmatprep.mubr.f32.mxu0 0.0
    %1460 = vmatmul.mubr.f32.gmra.mxu0 %v1125
    %v1461 = vpop.f32.mrf.mxu0
    %v1462 = vadd.f32 %v1317, %v1461
    %v1463 = vpop.f32.mrf.mxu0
    %1464 = vdwg.mxu0
    %v1465 = vadd.f32 %v999, %v1387
    %v1466 = vadd.f32 %v1004, %v1392
    %v1467 = vadd.f32 %v1009, %v1397
    %v1468 = vadd.f32 %v1014, %v1402
    %v1469 = vadd.f32 %v1019, %v1407
    %v1470 = vadd.f32 %v1024, %v1412
    %v1471 = vadd.f32 %v1029, %v1417
    %v1472 = vadd.f32 %v1034, %v1422
    %v1473 = vadd.f32 %v1039, %v1427
    %v1474 = vadd.f32 %v1044, %v1432
    %v1475 = vadd.f32 %v1049, %v1437
    %v1476 = vadd.f32 %v1054, %v1442
    %v1477 = vadd.f32 %v1059, %v1447
    %v1478 = vadd.f32 %v1064, %v1452
    %v1479 = vadd.f32 %v1069, %v1457
    %v1480 = vadd.f32 %v1074, %v1462
    %v1481 = vadd.f32 %v129, %v1465
    %v1482 = vadd.f32 %v130, %v1466
    %v1483 = vadd.f32 %v131, %v1467
    %v1484 = vadd.f32 %v132, %v1468
    %v1485 = vadd.f32 %v133, %v1469
    %v1486 = vadd.f32 %v134, %v1470
    %v1487 = vadd.f32 %v135, %v1471
    %v1488 = vadd.f32 %v136, %v1472
    %v1489 = vadd.f32 %v137, %v1473
    %v1490 = vadd.f32 %v138, %v1474
    %v1491 = vadd.f32 %v139, %v1475
    %v1492 = vadd.f32 %v140, %v1476
    %v1493 = vadd.f32 %v141, %v1477
    %v1494 = vadd.f32 %v142, %v1478
    %v1495 = vadd.f32 %v143, %v1479
    %v1496 = vadd.f32 %v144, %v1480
    %v1497 = vld [vmem:[#allocation11] sm:$0x1]
    %v1499 = vlaneseq
    %v1500 = vshrl.u32 %v1499, 7
    %v1501 = vsub.s32 0, %v1500
    %v1502 = vrot.slane %v1497, %v1501
    %v1504 = vadd.f32 %v1481, %v1502
    %v1505 = vadd.f32 %v1482, %v1502
    %v1506 = vadd.f32 %v1483, %v1502
    %v1507 = vadd.f32 %v1484, %v1502
    %v1508 = vadd.f32 %v1485, %v1502
    %v1509 = vadd.f32 %v1486, %v1502
    %v1510 = vadd.f32 %v1487, %v1502
    %v1511 = vadd.f32 %v1488, %v1502
    %v1512 = vadd.f32 %v1489, %v1502
    %v1513 = vadd.f32 %v1490, %v1502
    %v1514 = vadd.f32 %v1491, %v1502
    %v1515 = vadd.f32 %v1492, %v1502
    %v1516 = vadd.f32 %v1493, %v1502
    %v1517 = vadd.f32 %v1494, %v1502
    %v1518 = vadd.f32 %v1495, %v1502
    %v1519 = vadd.f32 %v1496, %v1502
    %v1520 = vadd.f32 %v1504, %v1505
    %v1521 = vadd.f32 %v1520, %v1506
    %v1522 = vadd.f32 %v1521, %v1507
    %v1523 = vadd.f32 %v1522, %v1508
    %v1524 = vadd.f32 %v1523, %v1509
    %v1525 = vadd.f32 %v1524, %v1510
    %v1526 = vadd.f32 %v1525, %v1511
    %v1527 = vadd.f32 %v1526, %v1512
    %v1528 = vadd.f32 %v1527, %v1513
    %v1529 = vadd.f32 %v1528, %v1514
    %v1530 = vadd.f32 %v1529, %v1515
    %v1531 = vadd.f32 %v1530, %v1516
    %v1532 = vadd.f32 %v1531, %v1517
    %v1533 = vadd.f32 %v1532, %v1518
    %v1534 = vadd.f32 %v1533, %v1519
    %v1535 = vrot.slane %v1534, 4
    %v1536 = vadd.f32 %v1534, %v1535
    %v1537 = vrot.slane %v1536, 2
    %v1538 = vadd.f32 %v1536, %v1537
    %v1539 = vrot.slane %v1538, 1
    %v1540 = vadd.f32 %v1538, %v1539
    %v1541 = vmul.f32 %v1540, %v166
    %v1542 = vsub.f32 %v1504, %v1541
    %v1543 = vsub.f32 %v1505, %v1541
    %v1544 = vsub.f32 %v1506, %v1541
    %v1545 = vsub.f32 %v1507, %v1541
    %v1546 = vsub.f32 %v1508, %v1541
    %v1547 = vsub.f32 %v1509, %v1541
    %v1548 = vsub.f32 %v1510, %v1541
    %v1549 = vsub.f32 %v1511, %v1541
    %v1550 = vsub.f32 %v1512, %v1541
    %v1551 = vsub.f32 %v1513, %v1541
    %v1552 = vsub.f32 %v1514, %v1541
    %v1553 = vsub.f32 %v1515, %v1541
    %v1554 = vsub.f32 %v1516, %v1541
    %v1555 = vsub.f32 %v1517, %v1541
    %v1556 = vsub.f32 %v1518, %v1541
    %v1557 = vsub.f32 %v1519, %v1541
    %v1558 = vmul.f32 %v1542, %v1542
    %v1559 = vmul.f32 %v1543, %v1543
    %v1560 = vmul.f32 %v1544, %v1544
    %v1561 = vmul.f32 %v1545, %v1545
    %v1562 = vmul.f32 %v1546, %v1546
    %v1563 = vmul.f32 %v1547, %v1547
    %v1564 = vmul.f32 %v1548, %v1548
    %v1565 = vmul.f32 %v1549, %v1549
    %v1566 = vmul.f32 %v1550, %v1550
    %v1567 = vmul.f32 %v1551, %v1551
    %v1568 = vmul.f32 %v1552, %v1552
    %v1569 = vmul.f32 %v1553, %v1553
    %v1570 = vmul.f32 %v1554, %v1554
    %v1571 = vmul.f32 %v1555, %v1555
    %v1572 = vmul.f32 %v1556, %v1556
    %v1573 = vmul.f32 %v1557, %v1557
    %v1574 = vadd.f32 %v1558, %v1559
    %v1575 = vadd.f32 %v1574, %v1560
    %v1576 = vadd.f32 %v1575, %v1561
    %v1577 = vadd.f32 %v1576, %v1562
    %v1578 = vadd.f32 %v1577, %v1563
    %v1579 = vadd.f32 %v1578, %v1564
    %v1580 = vadd.f32 %v1579, %v1565
    %v1581 = vadd.f32 %v1580, %v1566
    %v1582 = vadd.f32 %v1581, %v1567
    %v1583 = vadd.f32 %v1582, %v1568
    %v1584 = vadd.f32 %v1583, %v1569
    %v1585 = vadd.f32 %v1584, %v1570
    %v1586 = vadd.f32 %v1585, %v1571
    %v1587 = vadd.f32 %v1586, %v1572
    %v1588 = vadd.f32 %v1587, %v1573
    %v1589 = vrot.slane %v1588, 4
    %v1590 = vadd.f32 %v1588, %v1589
    %v1591 = vrot.slane %v1590, 2
    %v1592 = vadd.f32 %v1590, %v1591
    %v1593 = vrot.slane %v1592, 1
    %v1594 = vadd.f32 %v1592, %v1593
    %v1595 = vmul.f32 %v1594, %v166
    %v1596 = vadd.f32 %v1595, 1e-05
    %v1597 = vrsqrt.pop %v1596
    %s1598 = scalar_lea.vmem [#allocation6], 1
    %v1599 = vld [vmem:[%s1598] sm:$0x1]
    %v1600 = vmul.f32 %v1597, %v1599
    %s1601 = scalar_lea.vmem [#allocation8], 1
    %v1602 = vld [vmem:[%s1601] sm:$0x1]
    %v1603 = vmul.f32 %v1541, %v1600
    %v1604 = vsub.f32 %v1602, %v1603
    %v1605 = vlaneseq
    %v1606 = vshrl.u32 %v1605, 7
    %v1607 = vsub.s32 0, %v1606
    %v1608 = vrot.slane %v1600, %v1607
    %v1609 = vmul.f32 %v1504, %v1608
    %v1610 = vmul.f32 %v1505, %v1608
    %v1611 = vmul.f32 %v1506, %v1608
    %v1612 = vmul.f32 %v1507, %v1608
    %v1613 = vmul.f32 %v1508, %v1608
    %v1614 = vmul.f32 %v1509, %v1608
    %v1615 = vmul.f32 %v1510, %v1608
    %v1616 = vmul.f32 %v1511, %v1608
    %v1617 = vmul.f32 %v1512, %v1608
    %v1618 = vmul.f32 %v1513, %v1608
    %v1619 = vmul.f32 %v1514, %v1608
    %v1620 = vmul.f32 %v1515, %v1608
    %v1621 = vmul.f32 %v1516, %v1608
    %v1622 = vmul.f32 %v1517, %v1608
    %v1623 = vmul.f32 %v1518, %v1608
    %v1624 = vmul.f32 %v1519, %v1608
    %v1626 = vlaneseq
    %v1627 = vshrl.u32 %v1626, 7
    %v1628 = vsub.s32 0, %v1627
    %v1629 = vrot.slane %v1604, %v1628
    %v1631 = vadd.f32 %v1609, %v1629
    %v1632 = vadd.f32 %v1610, %v1629
    %v1633 = vadd.f32 %v1611, %v1629
    %v1634 = vadd.f32 %v1612, %v1629
    %v1635 = vadd.f32 %v1613, %v1629
    %v1636 = vadd.f32 %v1614, %v1629
    %v1637 = vadd.f32 %v1615, %v1629
    %v1638 = vadd.f32 %v1616, %v1629
    %v1639 = vadd.f32 %v1617, %v1629
    %v1640 = vadd.f32 %v1618, %v1629
    %v1641 = vadd.f32 %v1619, %v1629
    %v1642 = vadd.f32 %v1620, %v1629
    %v1643 = vadd.f32 %v1621, %v1629
    %v1644 = vadd.f32 %v1622, %v1629
    %v1645 = vadd.f32 %v1623, %v1629
    %v1646 = vadd.f32 %v1624, %v1629
    %v1647 = vmax.f32 %v1631, 0.0
    %v1648 = vmax.f32 %v1632, 0.0
    %v1649 = vmax.f32 %v1633, 0.0
    %v1650 = vmax.f32 %v1634, 0.0
    %v1651 = vmax.f32 %v1635, 0.0
    %v1652 = vmax.f32 %v1636, 0.0
    %v1653 = vmax.f32 %v1637, 0.0
    %v1654 = vmax.f32 %v1638, 0.0
    %v1655 = vmax.f32 %v1639, 0.0
    %v1656 = vmax.f32 %v1640, 0.0
    %v1657 = vmax.f32 %v1641, 0.0
    %v1658 = vmax.f32 %v1642, 0.0
    %v1659 = vmax.f32 %v1643, 0.0
    %v1660 = vmax.f32 %v1644, 0.0
    %v1661 = vmax.f32 %v1645, 0.0
    %v1662 = vmax.f32 %v1646, 0.0
    %1663 = vst [vmem:[%s287 + $0x1] sm:$0xff] %v1647
    %1664 = vst [vmem:[%s287 + $0x11] sm:$0xff] %v1648
    %1665 = vst [vmem:[%s287 + $0x21] sm:$0xff] %v1649
    %1666 = vst [vmem:[%s287 + $0x31] sm:$0xff] %v1650
    %1667 = vst [vmem:[%s287 + $0x41] sm:$0xff] %v1651
    %1668 = vst [vmem:[%s287 + $0x51] sm:$0xff] %v1652
    %1669 = vst [vmem:[%s287 + $0x61] sm:$0xff] %v1653
    %1670 = vst [vmem:[%s287 + $0x71] sm:$0xff] %v1654
    %1671 = vst [vmem:[%s287 + $0xa1] sm:$0xff] %v1655
    %1672 = vst [vmem:[%s287 + $0xb1] sm:$0xff] %v1656
    %1673 = vst [vmem:[%s287 + $0xc1] sm:$0xff] %v1657
    %1674 = vst [vmem:[%s287 + $0xd1] sm:$0xff] %v1658
    %1675 = vst [vmem:[%s287 + $0xe1] sm:$0xff] %v1659
    %1676 = vst [vmem:[%s287 + $0xf1] sm:$0xff] %v1660
    %1677 = vst [vmem:[%s287 + $0x101] sm:$0xff] %v1661
    %1678 = vst [vmem:[%s287 + $0x111] sm:$0xff] %v1662
    %v1679 = vld [vmem:[#allocation2] sm:$0xff]
    %v1680 = vld [vmem:[#allocation2 + $0x10] sm:$0xff]
    %v1681 = vld [vmem:[#allocation2 + $0x20] sm:$0xff]
    %v1682 = vld [vmem:[#allocation2 + $0x30] sm:$0xff]
    %v1683 = vld [vmem:[#allocation2 + $0x40] sm:$0xff]
    %v1684 = vld [vmem:[#allocation2 + $0x50] sm:$0xff]
    %v1685 = vld [vmem:[#allocation2 + $0x60] sm:$0xff]
    %v1686 = vld [vmem:[#allocation2 + $0x70] sm:$0xff]
    %v1687 = vld [vmem:[#allocation2 + $0xa0] sm:$0xff]
    %v1688 = vld [vmem:[#allocation2 + $0xb0] sm:$0xff]
    %v1689 = vld [vmem:[#allocation2 + $0xc0] sm:$0xff]
    %v1690 = vld [vmem:[#allocation2 + $0xd0] sm:$0xff]
    %v1691 = vld [vmem:[#allocation2 + $0xe0] sm:$0xff]
    %v1692 = vld [vmem:[#allocation2 + $0xf0] sm:$0xff]
    %v1693 = vld [vmem:[#allocation2 + $0x100] sm:$0xff]
    %v1694 = vld [vmem:[#allocation2 + $0x110] sm:$0xff]
    %v1695 = vld [vmem:[#allocation2 + $0x1] sm:$0xff]
    %v1696 = vld [vmem:[#allocation2 + $0x11] sm:$0xff]
    %v1697 = vld [vmem:[#allocation2 + $0x21] sm:$0xff]
    %v1698 = vld [vmem:[#allocation2 + $0x31] sm:$0xff]
    %v1699 = vld [vmem:[#allocation2 + $0x41] sm:$0xff]
    %v1700 = vld [vmem:[#allocation2 + $0x51] sm:$0xff]
    %v1701 = vld [vmem:[#allocation2 + $0x61] sm:$0xff]
    %v1702 = vld [vmem:[#allocation2 + $0x71] sm:$0xff]
    %v1703 = vld [vmem:[#allocation2 + $0xa1] sm:$0xff]
    %v1704 = vld [vmem:[#allocation2 + $0xb1] sm:$0xff]
    %v1705 = vld [vmem:[#allocation2 + $0xc1] sm:$0xff]
    %v1706 = vld [vmem:[#allocation2 + $0xd1] sm:$0xff]
    %v1707 = vld [vmem:[#allocation2 + $0xe1] sm:$0xff]
    %v1708 = vld [vmem:[#allocation2 + $0xf1] sm:$0xff]
    %v1709 = vld [vmem:[#allocation2 + $0x101] sm:$0xff]
    %v1710 = vld [vmem:[#allocation2 + $0x111] sm:$0xff]
    %v1711 = vld [vmem:[#allocation2 + $0x2] sm:$0xff]
    %v1712 = vld [vmem:[#allocation2 + $0x12] sm:$0xff]
    %v1713 = vld [vmem:[#allocation2 + $0x22] sm:$0xff]
    %v1714 = vld [vmem:[#allocation2 + $0x32] sm:$0xff]
    %v1715 = vld [vmem:[#allocation2 + $0x42] sm:$0xff]
    %v1716 = vld [vmem:[#allocation2 + $0x52] sm:$0xff]
    %v1717 = vld [vmem:[#allocation2 + $0x62] sm:$0xff]
    %v1718 = vld [vmem:[#allocation2 + $0x72] sm:$0xff]
    %v1719 = vld [vmem:[#allocation2 + $0xa2] sm:$0xff]
    %v1720 = vld [vmem:[#allocation2 + $0xb2] sm:$0xff]
    %v1721 = vld [vmem:[#allocation2 + $0xc2] sm:$0xff]
    %v1722 = vld [vmem:[#allocation2 + $0xd2] sm:$0xff]
    %v1723 = vld [vmem:[#allocation2 + $0xe2] sm:$0xff]
    %v1724 = vld [vmem:[#allocation2 + $0xf2] sm:$0xff]
    %v1725 = vld [vmem:[#allocation2 + $0x102] sm:$0xff]
    %v1726 = vld [vmem:[#allocation2 + $0x112] sm:$0xff]
    %s1727 = scalar_lea.vmem [#allocation9], 1152
    %v1728 = vld [vmem:[%s1727] sm:$0xff]
    %v1729 = vld [vmem:[%s1727 + $0x8] sm:$0xff]
    %v1730 = vld [vmem:[%s1727 + $0x10] sm:$0xff]
    %v1731 = vld [vmem:[%s1727 + $0x18] sm:$0xff]
    %v1732 = vld [vmem:[%s1727 + $0x20] sm:$0xff]
    %v1733 = vld [vmem:[%s1727 + $0x28] sm:$0xff]
    %v1734 = vld [vmem:[%s1727 + $0x30] sm:$0xff]
    %v1735 = vld [vmem:[%s1727 + $0x38] sm:$0xff]
    %v1736 = vld [vmem:[%s1727 + $0x40] sm:$0xff]
    %v1737 = vld [vmem:[%s1727 + $0x48] sm:$0xff]
    %v1738 = vld [vmem:[%s1727 + $0x50] sm:$0xff]
    %v1739 = vld [vmem:[%s1727 + $0x58] sm:$0xff]
    %v1740 = vld [vmem:[%s1727 + $0x60] sm:$0xff]
    %v1741 = vld [vmem:[%s1727 + $0x68] sm:$0xff]
    %v1742 = vld [vmem:[%s1727 + $0x70] sm:$0xff]
    %v1743 = vld [vmem:[%s1727 + $0x78] sm:$0xff]
    %v1744 = vld [vmem:[%s1727 + $0x80] sm:$0xff]
    %v1745 = vld [vmem:[%s1727 + $0x88] sm:$0xff]
    %v1746 = vld [vmem:[%s1727 + $0x90] sm:$0xff]
    %v1747 = vld [vmem:[%s1727 + $0x98] sm:$0xff]
    %v1748 = vld [vmem:[%s1727 + $0xa0] sm:$0xff]
    %v1749 = vld [vmem:[%s1727 + $0xa8] sm:$0xff]
    %v1750 = vld [vmem:[%s1727 + $0xb0] sm:$0xff]
    %v1751 = vld [vmem:[%s1727 + $0xb8] sm:$0xff]
    %v1752 = vld [vmem:[%s1727 + $0xc0] sm:$0xff]
    %v1753 = vld [vmem:[%s1727 + $0xc8] sm:$0xff]
    %v1754 = vld [vmem:[%s1727 + $0xd0] sm:$0xff]
    %v1755 = vld [vmem:[%s1727 + $0xd8] sm:$0xff]
    %v1756 = vld [vmem:[%s1727 + $0xe0] sm:$0xff]
    %v1757 = vld [vmem:[%s1727 + $0xe8] sm:$0xff]
    %v1758 = vld [vmem:[%s1727 + $0xf0] sm:$0xff]
    %v1759 = vld [vmem:[%s1727 + $0xf8] sm:$0xff]
    %v1760 = vld [vmem:[%s1727 + $0x100] sm:$0xff]
    %v1761 = vld [vmem:[%s1727 + $0x108] sm:$0xff]
    %v1762 = vld [vmem:[%s1727 + $0x110] sm:$0xff]
    %v1763 = vld [vmem:[%s1727 + $0x118] sm:$0xff]
    %v1764 = vld [vmem:[%s1727 + $0x120] sm:$0xff]
    %v1765 = vld [vmem:[%s1727 + $0x128] sm:$0xff]
    %v1766 = vld [vmem:[%s1727 + $0x130] sm:$0xff]
    %v1767 = vld [vmem:[%s1727 + $0x138] sm:$0xff]
    %v1768 = vld [vmem:[%s1727 + $0x140] sm:$0xff]
    %v1769 = vld [vmem:[%s1727 + $0x148] sm:$0xff]
    %v1770 = vld [vmem:[%s1727 + $0x150] sm:$0xff]
    %v1771 = vld [vmem:[%s1727 + $0x158] sm:$0xff]
    %v1772 = vld [vmem:[%s1727 + $0x160] sm:$0xff]
    %v1773 = vld [vmem:[%s1727 + $0x168] sm:$0xff]
    %v1774 = vld [vmem:[%s1727 + $0x170] sm:$0xff]
    %v1775 = vld [vmem:[%s1727 + $0x178] sm:$0xff]
    %v1776 = vld [vmem:[%s287] sm:$0xff]
    %v1777 = vld [vmem:[%s287 + $0x10] sm:$0xff]
    %v1778 = vld [vmem:[%s287 + $0x20] sm:$0xff]
    %v1779 = vld [vmem:[%s287 + $0x30] sm:$0xff]
    %v1780 = vld [vmem:[%s287 + $0x40] sm:$0xff]
    %v1781 = vld [vmem:[%s287 + $0x50] sm:$0xff]
    %v1782 = vld [vmem:[%s287 + $0x60] sm:$0xff]
    %v1783 = vld [vmem:[%s287 + $0x70] sm:$0xff]
    %v1784 = vld [vmem:[%s287 + $0xa0] sm:$0xff]
    %v1785 = vld [vmem:[%s287 + $0xb0] sm:$0xff]
    %v1786 = vld [vmem:[%s287 + $0xc0] sm:$0xff]
    %v1787 = vld [vmem:[%s287 + $0xd0] sm:$0xff]
    %v1788 = vld [vmem:[%s287 + $0xe0] sm:$0xff]
    %v1789 = vld [vmem:[%s287 + $0xf0] sm:$0xff]
    %v1790 = vld [vmem:[%s287 + $0x100] sm:$0xff]
    %v1791 = vld [vmem:[%s287 + $0x110] sm:$0xff]
    %v1792 = vld [vmem:[%s287 + $0x1] sm:$0xff]
    %v1793 = vld [vmem:[%s287 + $0x11] sm:$0xff]
    %v1794 = vld [vmem:[%s287 + $0x21] sm:$0xff]
    %v1795 = vld [vmem:[%s287 + $0x31] sm:$0xff]
    %v1796 = vld [vmem:[%s287 + $0x41] sm:$0xff]
    %v1797 = vld [vmem:[%s287 + $0x51] sm:$0xff]
    %v1798 = vld [vmem:[%s287 + $0x61] sm:$0xff]
    %v1799 = vld [vmem:[%s287 + $0x71] sm:$0xff]
    %v1800 = vld [vmem:[%s287 + $0xa1] sm:$0xff]
    %v1801 = vld [vmem:[%s287 + $0xb1] sm:$0xff]
    %v1802 = vld [vmem:[%s287 + $0xc1] sm:$0xff]
    %v1803 = vld [vmem:[%s287 + $0xd1] sm:$0xff]
    %v1804 = vld [vmem:[%s287 + $0xe1] sm:$0xff]
    %v1805 = vld [vmem:[%s287 + $0xf1] sm:$0xff]
    %v1806 = vld [vmem:[%s287 + $0x101] sm:$0xff]
    %v1807 = vld [vmem:[%s287 + $0x111] sm:$0xff]
    %v1808 = vld [vmem:[%s287 + $0x2] sm:$0xff]
    %v1809 = vld [vmem:[%s287 + $0x12] sm:$0xff]
    %v1810 = vld [vmem:[%s287 + $0x22] sm:$0xff]
    %v1811 = vld [vmem:[%s287 + $0x32] sm:$0xff]
    %v1812 = vld [vmem:[%s287 + $0x42] sm:$0xff]
    %v1813 = vld [vmem:[%s287 + $0x52] sm:$0xff]
    %v1814 = vld [vmem:[%s287 + $0x62] sm:$0xff]
    %v1815 = vld [vmem:[%s287 + $0x72] sm:$0xff]
    %v1816 = vld [vmem:[%s287 + $0xa2] sm:$0xff]
    %v1817 = vld [vmem:[%s287 + $0xb2] sm:$0xff]
    %v1818 = vld [vmem:[%s287 + $0xc2] sm:$0xff]
    %v1819 = vld [vmem:[%s287 + $0xd2] sm:$0xff]
    %v1820 = vld [vmem:[%s287 + $0xe2] sm:$0xff]
    %v1821 = vld [vmem:[%s287 + $0xf2] sm:$0xff]
    %v1822 = vld [vmem:[%s287 + $0x102] sm:$0xff]
    %v1823 = vld [vmem:[%s287 + $0x112] sm:$0xff]
    %s1824 = scalar_lea.vmem [#allocation9], 1536
    %v1825 = vld [vmem:[%s1824] sm:$0xff]
    %v1826 = vld [vmem:[%s1824 + $0x8] sm:$0xff]
    %v1827 = vld [vmem:[%s1824 + $0x10] sm:$0xff]
    %v1828 = vld [vmem:[%s1824 + $0x18] sm:$0xff]
    %v1829 = vld [vmem:[%s1824 + $0x20] sm:$0xff]
    %v1830 = vld [vmem:[%s1824 + $0x28] sm:$0xff]
    %v1831 = vld [vmem:[%s1824 + $0x30] sm:$0xff]
    %v1832 = vld [vmem:[%s1824 + $0x38] sm:$0xff]
    %v1833 = vld [vmem:[%s1824 + $0x40] sm:$0xff]
    %v1834 = vld [vmem:[%s1824 + $0x48] sm:$0xff]
    %v1835 = vld [vmem:[%s1824 + $0x50] sm:$0xff]
    %v1836 = vld [vmem:[%s1824 + $0x58] sm:$0xff]
    %v1837 = vld [vmem:[%s1824 + $0x60] sm:$0xff]
    %v1838 = vld [vmem:[%s1824 + $0x68] sm:$0xff]
    %v1839 = vld [vmem:[%s1824 + $0x70] sm:$0xff]
    %v1840 = vld [vmem:[%s1824 + $0x78] sm:$0xff]
    %v1841 = vld [vmem:[%s1824 + $0x80] sm:$0xff]
    %v1842 = vld [vmem:[%s1824 + $0x88] sm:$0xff]
    %v1843 = vld [vmem:[%s1824 + $0x90] sm:$0xff]
    %v1844 = vld [vmem:[%s1824 + $0x98] sm:$0xff]
    %v1845 = vld [vmem:[%s1824 + $0xa0] sm:$0xff]
    %v1846 = vld [vmem:[%s1824 + $0xa8] sm:$0xff]
    %v1847 = vld [vmem:[%s1824 + $0xb0] sm:$0xff]
    %v1848 = vld [vmem:[%s1824 + $0xb8] sm:$0xff]
    %v1849 = vld [vmem:[%s1824 + $0xc0] sm:$0xff]
    %v1850 = vld [vmem:[%s1824 + $0xc8] sm:$0xff]
    %v1851 = vld [vmem:[%s1824 + $0xd0] sm:$0xff]
    %v1852 = vld [vmem:[%s1824 + $0xd8] sm:$0xff]
    %v1853 = vld [vmem:[%s1824 + $0xe0] sm:$0xff]
    %v1854 = vld [vmem:[%s1824 + $0xe8] sm:$0xff]
    %v1855 = vld [vmem:[%s1824 + $0xf0] sm:$0xff]
    %v1856 = vld [vmem:[%s1824 + $0xf8] sm:$0xff]
    %v1857 = vld [vmem:[%s1824 + $0x100] sm:$0xff]
    %v1858 = vld [vmem:[%s1824 + $0x108] sm:$0xff]
    %v1859 = vld [vmem:[%s1824 + $0x110] sm:$0xff]
    %v1860 = vld [vmem:[%s1824 + $0x118] sm:$0xff]
    %v1861 = vld [vmem:[%s1824 + $0x120] sm:$0xff]
    %v1862 = vld [vmem:[%s1824 + $0x128] sm:$0xff]
    %v1863 = vld [vmem:[%s1824 + $0x130] sm:$0xff]
    %v1864 = vld [vmem:[%s1824 + $0x138] sm:$0xff]
    %v1865 = vld [vmem:[%s1824 + $0x140] sm:$0xff]
    %v1866 = vld [vmem:[%s1824 + $0x148] sm:$0xff]
    %v1867 = vld [vmem:[%s1824 + $0x150] sm:$0xff]
    %v1868 = vld [vmem:[%s1824 + $0x158] sm:$0xff]
    %v1869 = vld [vmem:[%s1824 + $0x160] sm:$0xff]
    %v1870 = vld [vmem:[%s1824 + $0x168] sm:$0xff]
    %v1871 = vld [vmem:[%s1824 + $0x170] sm:$0xff]
    %v1872 = vld [vmem:[%s1824 + $0x178] sm:$0xff]
    %1873 = vmatprep.subr.mxu0 0.0
    %1874 = vmatpush1.msra.mxu0 %v1840
    %1875 = vmatprep.subr.mxu0 0.0
    %1876 = vmatpush1.msra.mxu0 %v1839
    %1877 = vmatprep.subr.mxu0 0.0
    %1878 = vmatpush1.msra.mxu0 %v1838
    %1879 = vmatprep.subr.mxu0 0.0
    %1880 = vmatpush1.msra.mxu0 %v1837
    %1881 = vmatprep.subr.mxu0 0.0
    %1882 = vmatpush1.msra.mxu0 %v1836
    %1883 = vmatprep.subr.mxu0 0.0
    %1884 = vmatpush1.msra.mxu0 %v1835
    %1885 = vmatprep.subr.mxu0 0.0
    %1886 = vmatpush1.msra.mxu0 %v1834
    %1887 = vmatprep.subr.mxu0 0.0
    %1888 = vmatpush1.msra.mxu0 %v1833
    %1889 = vmatprep.subr.mxu0 0.0
    %1890 = vmatpush1.msra.mxu0 %v1832
    %1891 = vmatprep.subr.mxu0 0.0
    %1892 = vmatpush1.msra.mxu0 %v1831
    %1893 = vmatprep.subr.mxu0 0.0
    %1894 = vmatpush1.msra.mxu0 %v1830
    %1895 = vmatprep.subr.mxu0 0.0
    %1896 = vmatpush1.msra.mxu0 %v1829
    %1897 = vmatprep.subr.mxu0 0.0
    %1898 = vmatpush1.msra.mxu0 %v1828
    %1899 = vmatprep.subr.mxu0 0.0
    %1900 = vmatpush1.msra.mxu0 %v1827
    %1901 = vmatprep.subr.mxu0 0.0
    %1902 = vmatpush1.msra.mxu0 %v1826
    %1903 = vmatprep.subr.mxu0 0.0
    %1904 = vmatpush1.msra.mxu0 %v1825
    %1905 = vmatprep.subr.mxu0 0.0
    %1906 = vmatpush2.msra.mxu0 %v1856
    %1907 = vmatprep.subr.mxu0 0.0
    %1908 = vmatpush2.msra.mxu0 %v1855
    %1909 = vmatprep.subr.mxu0 0.0
    %1910 = vmatpush2.msra.mxu0 %v1854
    %1911 = vmatprep.subr.mxu0 0.0
    %1912 = vmatpush2.msra.mxu0 %v1853
    %1913 = vmatprep.subr.mxu0 0.0
    %1914 = vmatpush2.msra.mxu0 %v1852
    %1915 = vmatprep.subr.mxu0 0.0
    %1916 = vmatpush2.msra.mxu0 %v1851
    %1917 = vmatprep.subr.mxu0 0.0
    %1918 = vmatpush2.msra.mxu0 %v1850
    %1919 = vmatprep.subr.mxu0 0.0
    %1920 = vmatpush2.msra.mxu0 %v1849
    %1921 = vmatprep.subr.mxu0 0.0
    %1922 = vmatpush2.msra.mxu0 %v1848
    %1923 = vmatprep.subr.mxu0 0.0
    %1924 = vmatpush2.msra.mxu0 %v1847
    %1925 = vmatprep.subr.mxu0 0.0
    %1926 = vmatpush2.msra.mxu0 %v1846
    %1927 = vmatprep.subr.mxu0 0.0
    %1928 = vmatpush2.msra.mxu0 %v1845
    %1929 = vmatprep.subr.mxu0 0.0
    %1930 = vmatpush2.msra.mxu0 %v1844
    %1931 = vmatprep.subr.mxu0 0.0
    %1932 = vmatpush2.msra.mxu0 %v1843
    %1933 = vmatprep.subr.mxu0 0.0
    %1934 = vmatpush2.msra.mxu0 %v1842
    %1935 = vmatprep.subr.mxu0 0.0
    %1936 = vmatpush2.msra.mxu0 %v1841
    %1937 = vmatprep.mubr.f32.mxu0 %v1792
    %1938 = vmatmul.mubr.f32.gmra.mxu0 %v1776
    %v1939 = vpop.f32.mrf.mxu0
    %v1940 = vadd.f32 0.0, %v1939
    %v1941 = vpop.f32.mrf.mxu0
    %1942 = vmatprep.mubr.f32.mxu0 %v1793
    %1943 = vmatmul.mubr.f32.gmra.mxu0 %v1777
    %v1944 = vpop.f32.mrf.mxu0
    %v1945 = vadd.f32 0.0, %v1944
    %v1946 = vpop.f32.mrf.mxu0
    %1947 = vmatprep.mubr.f32.mxu0 %v1794
    %1948 = vmatmul.mubr.f32.gmra.mxu0 %v1778
    %v1949 = vpop.f32.mrf.mxu0
    %v1950 = vadd.f32 0.0, %v1949
    %v1951 = vpop.f32.mrf.mxu0
    %1952 = vmatprep.mubr.f32.mxu0 %v1795
    %1953 = vmatmul.mubr.f32.gmra.mxu0 %v1779
    %v1954 = vpop.f32.mrf.mxu0
    %v1955 = vadd.f32 0.0, %v1954
    %v1956 = vpop.f32.mrf.mxu0
    %1957 = vmatprep.mubr.f32.mxu0 %v1796
    %1958 = vmatmul.mubr.f32.gmra.mxu0 %v1780
    %v1959 = vpop.f32.mrf.mxu0
    %v1960 = vadd.f32 0.0, %v1959
    %v1961 = vpop.f32.mrf.mxu0
    %1962 = vmatprep.mubr.f32.mxu0 %v1797
    %1963 = vmatmul.mubr.f32.gmra.mxu0 %v1781
    %v1964 = vpop.f32.mrf.mxu0
    %v1965 = vadd.f32 0.0, %v1964
    %v1966 = vpop.f32.mrf.mxu0
    %1967 = vmatprep.mubr.f32.mxu0 %v1798
    %1968 = vmatmul.mubr.f32.gmra.mxu0 %v1782
    %v1969 = vpop.f32.mrf.mxu0
    %v1970 = vadd.f32 0.0, %v1969
    %v1971 = vpop.f32.mrf.mxu0
    %1972 = vmatprep.mubr.f32.mxu0 %v1799
    %1973 = vmatmul.mubr.f32.gmra.mxu0 %v1783
    %v1974 = vpop.f32.mrf.mxu0
    %v1975 = vadd.f32 0.0, %v1974
    %v1976 = vpop.f32.mrf.mxu0
    %1977 = vmatprep.mubr.f32.mxu0 %v1800
    %1978 = vmatmul.mubr.f32.gmra.mxu0 %v1784
    %v1979 = vpop.f32.mrf.mxu0
    %v1980 = vadd.f32 0.0, %v1979
    %v1981 = vpop.f32.mrf.mxu0
    %1982 = vmatprep.mubr.f32.mxu0 %v1801
    %1983 = vmatmul.mubr.f32.gmra.mxu0 %v1785
    %v1984 = vpop.f32.mrf.mxu0
    %v1985 = vadd.f32 0.0, %v1984
    %v1986 = vpop.f32.mrf.mxu0
    %1987 = vmatprep.mubr.f32.mxu0 %v1802
    %1988 = vmatmul.mubr.f32.gmra.mxu0 %v1786
    %v1989 = vpop.f32.mrf.mxu0
    %v1990 = vadd.f32 0.0, %v1989
    %v1991 = vpop.f32.mrf.mxu0
    %1992 = vmatprep.mubr.f32.mxu0 %v1803
    %1993 = vmatmul.mubr.f32.gmra.mxu0 %v1787
    %v1994 = vpop.f32.mrf.mxu0
    %v1995 = vadd.f32 0.0, %v1994
    %v1996 = vpop.f32.mrf.mxu0
    %1997 = vmatprep.mubr.f32.mxu0 %v1804
    %1998 = vmatmul.mubr.f32.gmra.mxu0 %v1788
    %v1999 = vpop.f32.mrf.mxu0
    %v2000 = vadd.f32 0.0, %v1999
    %v2001 = vpop.f32.mrf.mxu0
    %2002 = vmatprep.mubr.f32.mxu0 %v1805
    %2003 = vmatmul.mubr.f32.gmra.mxu0 %v1789
    %v2004 = vpop.f32.mrf.mxu0
    %v2005 = vadd.f32 0.0, %v2004
    %v2006 = vpop.f32.mrf.mxu0
    %2007 = vmatprep.mubr.f32.mxu0 %v1806
    %2008 = vmatmul.mubr.f32.gmra.mxu0 %v1790
    %v2009 = vpop.f32.mrf.mxu0
    %v2010 = vadd.f32 0.0, %v2009
    %v2011 = vpop.f32.mrf.mxu0
    %2012 = vmatprep.mubr.f32.mxu0 %v1807
    %2013 = vmatmul.mubr.f32.gmra.mxu0 %v1791
    %v2014 = vpop.f32.mrf.mxu0
    %v2015 = vadd.f32 0.0, %v2014
    %v2016 = vpop.f32.mrf.mxu0
    %2017 = vdwg.mxu0
    %2018 = vmatprep.subr.mxu0 0.0
    %2019 = vmatpush1.msra.mxu0 %v1872
    %2020 = vmatprep.subr.mxu0 0.0
    %2021 = vmatpush1.msra.mxu0 %v1871
    %2022 = vmatprep.subr.mxu0 0.0
    %2023 = vmatpush1.msra.mxu0 %v1870
    %2024 = vmatprep.subr.mxu0 0.0
    %2025 = vmatpush1.msra.mxu0 %v1869
    %2026 = vmatprep.subr.mxu0 0.0
    %2027 = vmatpush1.msra.mxu0 %v1868
    %2028 = vmatprep.subr.mxu0 0.0
    %2029 = vmatpush1.msra.mxu0 %v1867
    %2030 = vmatprep.subr.mxu0 0.0
    %2031 = vmatpush1.msra.mxu0 %v1866
    %2032 = vmatprep.subr.mxu0 0.0
    %2033 = vmatpush1.msra.mxu0 %v1865
    %2034 = vmatprep.subr.mxu0 0.0
    %2035 = vmatpush1.msra.mxu0 %v1864
    %2036 = vmatprep.subr.mxu0 0.0
    %2037 = vmatpush1.msra.mxu0 %v1863
    %2038 = vmatprep.subr.mxu0 0.0
    %2039 = vmatpush1.msra.mxu0 %v1862
    %2040 = vmatprep.subr.mxu0 0.0
    %2041 = vmatpush1.msra.mxu0 %v1861
    %2042 = vmatprep.subr.mxu0 0.0
    %2043 = vmatpush1.msra.mxu0 %v1860
    %2044 = vmatprep.subr.mxu0 0.0
    %2045 = vmatpush1.msra.mxu0 %v1859
    %2046 = vmatprep.subr.mxu0 0.0
    %2047 = vmatpush1.msra.mxu0 %v1858
    %2048 = vmatprep.subr.mxu0 0.0
    %2049 = vmatpush1.msra.mxu0 %v1857
    %2050 = vmatprep.subr.mxu0 0.0
    %2051 = vmatpush2.msra.mxu0 0.0
    %2052 = vmatprep.subr.mxu0 0.0
    %2053 = vmatpush2.msra.mxu0 0.0
    %2054 = vmatprep.subr.mxu0 0.0
    %2055 = vmatpush2.msra.mxu0 0.0
    %2056 = vmatprep.subr.mxu0 0.0
    %2057 = vmatpush2.msra.mxu0 0.0
    %2058 = vmatprep.subr.mxu0 0.0
    %2059 = vmatpush2.msra.mxu0 0.0
    %2060 = vmatprep.subr.mxu0 0.0
    %2061 = vmatpush2.msra.mxu0 0.0
    %2062 = vmatprep.subr.mxu0 0.0
    %2063 = vmatpush2.msra.mxu0 0.0
    %2064 = vmatprep.subr.mxu0 0.0
    %2065 = vmatpush2.msra.mxu0 0.0
    %2066 = vmatprep.subr.mxu0 0.0
    %2067 = vmatpush2.msra.mxu0 0.0
    %2068 = vmatprep.subr.mxu0 0.0
    %2069 = vmatpush2.msra.mxu0 0.0
    %2070 = vmatprep.subr.mxu0 0.0
    %2071 = vmatpush2.msra.mxu0 0.0
    %2072 = vmatprep.subr.mxu0 0.0
    %2073 = vmatpush2.msra.mxu0 0.0
    %2074 = vmatprep.subr.mxu0 0.0
    %2075 = vmatpush2.msra.mxu0 0.0
    %2076 = vmatprep.subr.mxu0 0.0
    %2077 = vmatpush2.msra.mxu0 0.0
    %2078 = vmatprep.subr.mxu0 0.0
    %2079 = vmatpush2.msra.mxu0 0.0
    %2080 = vmatprep.subr.mxu0 0.0
    %2081 = vmatpush2.msra.mxu0 0.0
    %2082 = vmatprep.mubr.f32.mxu0 0.0
    %2083 = vmatmul.mubr.f32.gmra.mxu0 %v1808
    %v2084 = vpop.f32.mrf.mxu0
    %v2085 = vadd.f32 %v1940, %v2084
    %v2086 = vpop.f32.mrf.mxu0
    %2087 = vmatprep.mubr.f32.mxu0 0.0
    %2088 = vmatmul.mubr.f32.gmra.mxu0 %v1809
    %v2089 = vpop.f32.mrf.mxu0
    %v2090 = vadd.f32 %v1945, %v2089
    %v2091 = vpop.f32.mrf.mxu0
    %2092 = vmatprep.mubr.f32.mxu0 0.0
    %2093 = vmatmul.mubr.f32.gmra.mxu0 %v1810
    %v2094 = vpop.f32.mrf.mxu0
    %v2095 = vadd.f32 %v1950, %v2094
    %v2096 = vpop.f32.mrf.mxu0
    %2097 = vmatprep.mubr.f32.mxu0 0.0
    %2098 = vmatmul.mubr.f32.gmra.mxu0 %v1811
    %v2099 = vpop.f32.mrf.mxu0
    %v2100 = vadd.f32 %v1955, %v2099
    %v2101 = vpop.f32.mrf.mxu0
    %2102 = vmatprep.mubr.f32.mxu0 0.0
    %2103 = vmatmul.mubr.f32.gmra.mxu0 %v1812
    %v2104 = vpop.f32.mrf.mxu0
    %v2105 = vadd.f32 %v1960, %v2104
    %v2106 = vpop.f32.mrf.mxu0
    %2107 = vmatprep.mubr.f32.mxu0 0.0
    %2108 = vmatmul.mubr.f32.gmra.mxu0 %v1813
    %v2109 = vpop.f32.mrf.mxu0
    %v2110 = vadd.f32 %v1965, %v2109
    %v2111 = vpop.f32.mrf.mxu0
    %2112 = vmatprep.mubr.f32.mxu0 0.0
    %2113 = vmatmul.mubr.f32.gmra.mxu0 %v1814
    %v2114 = vpop.f32.mrf.mxu0
    %v2115 = vadd.f32 %v1970, %v2114
    %v2116 = vpop.f32.mrf.mxu0
    %2117 = vmatprep.mubr.f32.mxu0 0.0
    %2118 = vmatmul.mubr.f32.gmra.mxu0 %v1815
    %v2119 = vpop.f32.mrf.mxu0
    %v2120 = vadd.f32 %v1975, %v2119
    %v2121 = vpop.f32.mrf.mxu0
    %2122 = vmatprep.mubr.f32.mxu0 0.0
    %2123 = vmatmul.mubr.f32.gmra.mxu0 %v1816
    %v2124 = vpop.f32.mrf.mxu0
    %v2125 = vadd.f32 %v1980, %v2124
    %v2126 = vpop.f32.mrf.mxu0
    %2127 = vmatprep.mubr.f32.mxu0 0.0
    %2128 = vmatmul.mubr.f32.gmra.mxu0 %v1817
    %v2129 = vpop.f32.mrf.mxu0
    %v2130 = vadd.f32 %v1985, %v2129
    %v2131 = vpop.f32.mrf.mxu0
    %2132 = vmatprep.mubr.f32.mxu0 0.0
    %2133 = vmatmul.mubr.f32.gmra.mxu0 %v1818
    %v2134 = vpop.f32.mrf.mxu0
    %v2135 = vadd.f32 %v1990, %v2134
    %v2136 = vpop.f32.mrf.mxu0
    %2137 = vmatprep.mubr.f32.mxu0 0.0
    %2138 = vmatmul.mubr.f32.gmra.mxu0 %v1819
    %v2139 = vpop.f32.mrf.mxu0
    %v2140 = vadd.f32 %v1995, %v2139
    %v2141 = vpop.f32.mrf.mxu0
    %2142 = vmatprep.mubr.f32.mxu0 0.0
    %2143 = vmatmul.mubr.f32.gmra.mxu0 %v1820
    %v2144 = vpop.f32.mrf.mxu0
    %v2145 = vadd.f32 %v2000, %v2144
    %v2146 = vpop.f32.mrf.mxu0
    %2147 = vmatprep.mubr.f32.mxu0 0.0
    %2148 = vmatmul.mubr.f32.gmra.mxu0 %v1821
    %v2149 = vpop.f32.mrf.mxu0
    %v2150 = vadd.f32 %v2005, %v2149
    %v2151 = vpop.f32.mrf.mxu0
    %2152 = vmatprep.mubr.f32.mxu0 0.0
    %2153 = vmatmul.mubr.f32.gmra.mxu0 %v1822
    %v2154 = vpop.f32.mrf.mxu0
    %v2155 = vadd.f32 %v2010, %v2154
    %v2156 = vpop.f32.mrf.mxu0
    %2157 = vmatprep.mubr.f32.mxu0 0.0
    %2158 = vmatmul.mubr.f32.gmra.mxu0 %v1823
    %v2159 = vpop.f32.mrf.mxu0
    %v2160 = vadd.f32 %v2015, %v2159
    %v2161 = vpop.f32.mrf.mxu0
    %2162 = vdwg.mxu0
    %2163 = vmatprep.subr.mxu0 0.0
    %2164 = vmatpush1.msra.mxu0 %v1743
    %2165 = vmatprep.subr.mxu0 0.0
    %2166 = vmatpush1.msra.mxu0 %v1742
    %2167 = vmatprep.subr.mxu0 0.0
    %2168 = vmatpush1.msra.mxu0 %v1741
    %2169 = vmatprep.subr.mxu0 0.0
    %2170 = vmatpush1.msra.mxu0 %v1740
    %2171 = vmatprep.subr.mxu0 0.0
    %2172 = vmatpush1.msra.mxu0 %v1739
    %2173 = vmatprep.subr.mxu0 0.0
    %2174 = vmatpush1.msra.mxu0 %v1738
    %2175 = vmatprep.subr.mxu0 0.0
    %2176 = vmatpush1.msra.mxu0 %v1737
    %2177 = vmatprep.subr.mxu0 0.0
    %2178 = vmatpush1.msra.mxu0 %v1736
    %2179 = vmatprep.subr.mxu0 0.0
    %2180 = vmatpush1.msra.mxu0 %v1735
    %2181 = vmatprep.subr.mxu0 0.0
    %2182 = vmatpush1.msra.mxu0 %v1734
    %2183 = vmatprep.subr.mxu0 0.0
    %2184 = vmatpush1.msra.mxu0 %v1733
    %2185 = vmatprep.subr.mxu0 0.0
    %2186 = vmatpush1.msra.mxu0 %v1732
    %2187 = vmatprep.subr.mxu0 0.0
    %2188 = vmatpush1.msra.mxu0 %v1731
    %2189 = vmatprep.subr.mxu0 0.0
    %2190 = vmatpush1.msra.mxu0 %v1730
    %2191 = vmatprep.subr.mxu0 0.0
    %2192 = vmatpush1.msra.mxu0 %v1729
    %2193 = vmatprep.subr.mxu0 0.0
    %2194 = vmatpush1.msra.mxu0 %v1728
    %2195 = vmatprep.subr.mxu0 0.0
    %2196 = vmatpush2.msra.mxu0 %v1759
    %2197 = vmatprep.subr.mxu0 0.0
    %2198 = vmatpush2.msra.mxu0 %v1758
    %2199 = vmatprep.subr.mxu0 0.0
    %2200 = vmatpush2.msra.mxu0 %v1757
    %2201 = vmatprep.subr.mxu0 0.0
    %2202 = vmatpush2.msra.mxu0 %v1756
    %2203 = vmatprep.subr.mxu0 0.0
    %2204 = vmatpush2.msra.mxu0 %v1755
    %2205 = vmatprep.subr.mxu0 0.0
    %2206 = vmatpush2.msra.mxu0 %v1754
    %2207 = vmatprep.subr.mxu0 0.0
    %2208 = vmatpush2.msra.mxu0 %v1753
    %2209 = vmatprep.subr.mxu0 0.0
    %2210 = vmatpush2.msra.mxu0 %v1752
    %2211 = vmatprep.subr.mxu0 0.0
    %2212 = vmatpush2.msra.mxu0 %v1751
    %2213 = vmatprep.subr.mxu0 0.0
    %2214 = vmatpush2.msra.mxu0 %v1750
    %2215 = vmatprep.subr.mxu0 0.0
    %2216 = vmatpush2.msra.mxu0 %v1749
    %2217 = vmatprep.subr.mxu0 0.0
    %2218 = vmatpush2.msra.mxu0 %v1748
    %2219 = vmatprep.subr.mxu0 0.0
    %2220 = vmatpush2.msra.mxu0 %v1747
    %2221 = vmatprep.subr.mxu0 0.0
    %2222 = vmatpush2.msra.mxu0 %v1746
    %2223 = vmatprep.subr.mxu0 0.0
    %2224 = vmatpush2.msra.mxu0 %v1745
    %2225 = vmatprep.subr.mxu0 0.0
    %2226 = vmatpush2.msra.mxu0 %v1744
    %2227 = vmatprep.mubr.f32.mxu0 %v1695
    %2228 = vmatmul.mubr.f32.gmra.mxu0 %v1679
    %v2229 = vpop.f32.mrf.mxu0
    %v2230 = vadd.f32 %v2085, %v2229
    %v2231 = vpop.f32.mrf.mxu0
    %2232 = vmatprep.mubr.f32.mxu0 %v1696
    %2233 = vmatmul.mubr.f32.gmra.mxu0 %v1680
    %v2234 = vpop.f32.mrf.mxu0
    %v2235 = vadd.f32 %v2090, %v2234
    %v2236 = vpop.f32.mrf.mxu0
    %2237 = vmatprep.mubr.f32.mxu0 %v1697
    %2238 = vmatmul.mubr.f32.gmra.mxu0 %v1681
    %v2239 = vpop.f32.mrf.mxu0
    %v2240 = vadd.f32 %v2095, %v2239
    %v2241 = vpop.f32.mrf.mxu0
    %2242 = vmatprep.mubr.f32.mxu0 %v1698
    %2243 = vmatmul.mubr.f32.gmra.mxu0 %v1682
    %v2244 = vpop.f32.mrf.mxu0
    %v2245 = vadd.f32 %v2100, %v2244
    %v2246 = vpop.f32.mrf.mxu0
    %2247 = vmatprep.mubr.f32.mxu0 %v1699
    %2248 = vmatmul.mubr.f32.gmra.mxu0 %v1683
    %v2249 = vpop.f32.mrf.mxu0
    %v2250 = vadd.f32 %v2105, %v2249
    %v2251 = vpop.f32.mrf.mxu0
    %2252 = vmatprep.mubr.f32.mxu0 %v1700
    %2253 = vmatmul.mubr.f32.gmra.mxu0 %v1684
    %v2254 = vpop.f32.mrf.mxu0
    %v2255 = vadd.f32 %v2110, %v2254
    %v2256 = vpop.f32.mrf.mxu0
    %2257 = vmatprep.mubr.f32.mxu0 %v1701
    %2258 = vmatmul.mubr.f32.gmra.mxu0 %v1685
    %v2259 = vpop.f32.mrf.mxu0
    %v2260 = vadd.f32 %v2115, %v2259
    %v2261 = vpop.f32.mrf.mxu0
    %2262 = vmatprep.mubr.f32.mxu0 %v1702
    %2263 = vmatmul.mubr.f32.gmra.mxu0 %v1686
    %v2264 = vpop.f32.mrf.mxu0
    %v2265 = vadd.f32 %v2120, %v2264
    %v2266 = vpop.f32.mrf.mxu0
    %2267 = vmatprep.mubr.f32.mxu0 %v1703
    %2268 = vmatmul.mubr.f32.gmra.mxu0 %v1687
    %v2269 = vpop.f32.mrf.mxu0
    %v2270 = vadd.f32 %v2125, %v2269
    %v2271 = vpop.f32.mrf.mxu0
    %2272 = vmatprep.mubr.f32.mxu0 %v1704
    %2273 = vmatmul.mubr.f32.gmra.mxu0 %v1688
    %v2274 = vpop.f32.mrf.mxu0
    %v2275 = vadd.f32 %v2130, %v2274
    %v2276 = vpop.f32.mrf.mxu0
    %2277 = vmatprep.mubr.f32.mxu0 %v1705
    %2278 = vmatmul.mubr.f32.gmra.mxu0 %v1689
    %v2279 = vpop.f32.mrf.mxu0
    %v2280 = vadd.f32 %v2135, %v2279
    %v2281 = vpop.f32.mrf.mxu0
    %2282 = vmatprep.mubr.f32.mxu0 %v1706
    %2283 = vmatmul.mubr.f32.gmra.mxu0 %v1690
    %v2284 = vpop.f32.mrf.mxu0
    %v2285 = vadd.f32 %v2140, %v2284
    %v2286 = vpop.f32.mrf.mxu0
    %2287 = vmatprep.mubr.f32.mxu0 %v1707
    %2288 = vmatmul.mubr.f32.gmra.mxu0 %v1691
    %v2289 = vpop.f32.mrf.mxu0
    %v2290 = vadd.f32 %v2145, %v2289
    %v2291 = vpop.f32.mrf.mxu0
    %2292 = vmatprep.mubr.f32.mxu0 %v1708
    %2293 = vmatmul.mubr.f32.gmra.mxu0 %v1692
    %v2294 = vpop.f32.mrf.mxu0
    %v2295 = vadd.f32 %v2150, %v2294
    %v2296 = vpop.f32.mrf.mxu0
    %2297 = vmatprep.mubr.f32.mxu0 %v1709
    %2298 = vmatmul.mubr.f32.gmra.mxu0 %v1693
    %v2299 = vpop.f32.mrf.mxu0
    %v2300 = vadd.f32 %v2155, %v2299
    %v2301 = vpop.f32.mrf.mxu0
    %2302 = vmatprep.mubr.f32.mxu0 %v1710
    %2303 = vmatmul.mubr.f32.gmra.mxu0 %v1694
    %v2304 = vpop.f32.mrf.mxu0
    %v2305 = vadd.f32 %v2160, %v2304
    %v2306 = vpop.f32.mrf.mxu0
    %2307 = vdwg.mxu0
    %2308 = vmatprep.subr.mxu0 0.0
    %2309 = vmatpush1.msra.mxu0 %v1775
    %2310 = vmatprep.subr.mxu0 0.0
    %2311 = vmatpush1.msra.mxu0 %v1774
    %2312 = vmatprep.subr.mxu0 0.0
    %2313 = vmatpush1.msra.mxu0 %v1773
    %2314 = vmatprep.subr.mxu0 0.0
    %2315 = vmatpush1.msra.mxu0 %v1772
    %2316 = vmatprep.subr.mxu0 0.0
    %2317 = vmatpush1.msra.mxu0 %v1771
    %2318 = vmatprep.subr.mxu0 0.0
    %2319 = vmatpush1.msra.mxu0 %v1770
    %2320 = vmatprep.subr.mxu0 0.0
    %2321 = vmatpush1.msra.mxu0 %v1769
    %2322 = vmatprep.subr.mxu0 0.0
    %2323 = vmatpush1.msra.mxu0 %v1768
    %2324 = vmatprep.subr.mxu0 0.0
    %2325 = vmatpush1.msra.mxu0 %v1767
    %2326 = vmatprep.subr.mxu0 0.0
    %2327 = vmatpush1.msra.mxu0 %v1766
    %2328 = vmatprep.subr.mxu0 0.0
    %2329 = vmatpush1.msra.mxu0 %v1765
    %2330 = vmatprep.subr.mxu0 0.0
    %2331 = vmatpush1.msra.mxu0 %v1764
    %2332 = vmatprep.subr.mxu0 0.0
    %2333 = vmatpush1.msra.mxu0 %v1763
    %2334 = vmatprep.subr.mxu0 0.0
    %2335 = vmatpush1.msra.mxu0 %v1762
    %2336 = vmatprep.subr.mxu0 0.0
    %2337 = vmatpush1.msra.mxu0 %v1761
    %2338 = vmatprep.subr.mxu0 0.0
    %2339 = vmatpush1.msra.mxu0 %v1760
    %2340 = vmatprep.subr.mxu0 0.0
    %2341 = vmatpush2.msra.mxu0 0.0
    %2342 = vmatprep.subr.mxu0 0.0
    %2343 = vmatpush2.msra.mxu0 0.0
    %2344 = vmatprep.subr.mxu0 0.0
    %2345 = vmatpush2.msra.mxu0 0.0
    %2346 = vmatprep.subr.mxu0 0.0
    %2347 = vmatpush2.msra.mxu0 0.0
    %2348 = vmatprep.subr.mxu0 0.0
    %2349 = vmatpush2.msra.mxu0 0.0
    %2350 = vmatprep.subr.mxu0 0.0
    %2351 = vmatpush2.msra.mxu0 0.0
    %2352 = vmatprep.subr.mxu0 0.0
    %2353 = vmatpush2.msra.mxu0 0.0
    %2354 = vmatprep.subr.mxu0 0.0
    %2355 = vmatpush2.msra.mxu0 0.0
    %2356 = vmatprep.subr.mxu0 0.0
    %2357 = vmatpush2.msra.mxu0 0.0
    %2358 = vmatprep.subr.mxu0 0.0
    %2359 = vmatpush2.msra.mxu0 0.0
    %2360 = vmatprep.subr.mxu0 0.0
    %2361 = vmatpush2.msra.mxu0 0.0
    %2362 = vmatprep.subr.mxu0 0.0
    %2363 = vmatpush2.msra.mxu0 0.0
    %2364 = vmatprep.subr.mxu0 0.0
    %2365 = vmatpush2.msra.mxu0 0.0
    %2366 = vmatprep.subr.mxu0 0.0
    %2367 = vmatpush2.msra.mxu0 0.0
    %2368 = vmatprep.subr.mxu0 0.0
    %2369 = vmatpush2.msra.mxu0 0.0
    %2370 = vmatprep.subr.mxu0 0.0
    %2371 = vmatpush2.msra.mxu0 0.0
    %2372 = vmatprep.mubr.f32.mxu0 0.0
    %2373 = vmatmul.mubr.f32.gmra.mxu0 %v1711
    %v2374 = vpop.f32.mrf.mxu0
    %v2375 = vadd.f32 %v2230, %v2374
    %v2376 = vpop.f32.mrf.mxu0
    %2377 = vmatprep.mubr.f32.mxu0 0.0
    %2378 = vmatmul.mubr.f32.gmra.mxu0 %v1712
    %v2379 = vpop.f32.mrf.mxu0
    %v2380 = vadd.f32 %v2235, %v2379
    %v2381 = vpop.f32.mrf.mxu0
    %2382 = vmatprep.mubr.f32.mxu0 0.0
    %2383 = vmatmul.mubr.f32.gmra.mxu0 %v1713
    %v2384 = vpop.f32.mrf.mxu0
    %v2385 = vadd.f32 %v2240, %v2384
    %v2386 = vpop.f32.mrf.mxu0
    %2387 = vmatprep.mubr.f32.mxu0 0.0
    %2388 = vmatmul.mubr.f32.gmra.mxu0 %v1714
    %v2389 = vpop.f32.mrf.mxu0
    %v2390 = vadd.f32 %v2245, %v2389
    %v2391 = vpop.f32.mrf.mxu0
    %2392 = vmatprep.mubr.f32.mxu0 0.0
    %2393 = vmatmul.mubr.f32.gmra.mxu0 %v1715
    %v2394 = vpop.f32.mrf.mxu0
    %v2395 = vadd.f32 %v2250, %v2394
    %v2396 = vpop.f32.mrf.mxu0
    %2397 = vmatprep.mubr.f32.mxu0 0.0
    %2398 = vmatmul.mubr.f32.gmra.mxu0 %v1716
    %v2399 = vpop.f32.mrf.mxu0
    %v2400 = vadd.f32 %v2255, %v2399
    %v2401 = vpop.f32.mrf.mxu0
    %2402 = vmatprep.mubr.f32.mxu0 0.0
    %2403 = vmatmul.mubr.f32.gmra.mxu0 %v1717
    %v2404 = vpop.f32.mrf.mxu0
    %v2405 = vadd.f32 %v2260, %v2404
    %v2406 = vpop.f32.mrf.mxu0
    %2407 = vmatprep.mubr.f32.mxu0 0.0
    %2408 = vmatmul.mubr.f32.gmra.mxu0 %v1718
    %v2409 = vpop.f32.mrf.mxu0
    %v2410 = vadd.f32 %v2265, %v2409
    %v2411 = vpop.f32.mrf.mxu0
    %2412 = vmatprep.mubr.f32.mxu0 0.0
    %2413 = vmatmul.mubr.f32.gmra.mxu0 %v1719
    %v2414 = vpop.f32.mrf.mxu0
    %v2415 = vadd.f32 %v2270, %v2414
    %v2416 = vpop.f32.mrf.mxu0
    %2417 = vmatprep.mubr.f32.mxu0 0.0
    %2418 = vmatmul.mubr.f32.gmra.mxu0 %v1720
    %v2419 = vpop.f32.mrf.mxu0
    %v2420 = vadd.f32 %v2275, %v2419
    %v2421 = vpop.f32.mrf.mxu0
    %2422 = vmatprep.mubr.f32.mxu0 0.0
    %2423 = vmatmul.mubr.f32.gmra.mxu0 %v1721
    %v2424 = vpop.f32.mrf.mxu0
    %v2425 = vadd.f32 %v2280, %v2424
    %v2426 = vpop.f32.mrf.mxu0
    %2427 = vmatprep.mubr.f32.mxu0 0.0
    %2428 = vmatmul.mubr.f32.gmra.mxu0 %v1722
    %v2429 = vpop.f32.mrf.mxu0
    %v2430 = vadd.f32 %v2285, %v2429
    %v2431 = vpop.f32.mrf.mxu0
    %2432 = vmatprep.mubr.f32.mxu0 0.0
    %2433 = vmatmul.mubr.f32.gmra.mxu0 %v1723
    %v2434 = vpop.f32.mrf.mxu0
    %v2435 = vadd.f32 %v2290, %v2434
    %v2436 = vpop.f32.mrf.mxu0
    %2437 = vmatprep.mubr.f32.mxu0 0.0
    %2438 = vmatmul.mubr.f32.gmra.mxu0 %v1724
    %v2439 = vpop.f32.mrf.mxu0
    %v2440 = vadd.f32 %v2295, %v2439
    %v2441 = vpop.f32.mrf.mxu0
    %2442 = vmatprep.mubr.f32.mxu0 0.0
    %2443 = vmatmul.mubr.f32.gmra.mxu0 %v1725
    %v2444 = vpop.f32.mrf.mxu0
    %v2445 = vadd.f32 %v2300, %v2444
    %v2446 = vpop.f32.mrf.mxu0
    %2447 = vmatprep.mubr.f32.mxu0 0.0
    %2448 = vmatmul.mubr.f32.gmra.mxu0 %v1726
    %v2449 = vpop.f32.mrf.mxu0
    %v2450 = vadd.f32 %v2305, %v2449
    %v2451 = vpop.f32.mrf.mxu0
    %2452 = vdwg.mxu0
    %v2453 = vld [vmem:[%s1077] sm:$0xff]
    %v2454 = vld [vmem:[%s1077 + $0x10] sm:$0xff]
    %v2455 = vld [vmem:[%s1077 + $0x20] sm:$0xff]
    %v2456 = vld [vmem:[%s1077 + $0x30] sm:$0xff]
    %v2457 = vld [vmem:[%s1077 + $0x40] sm:$0xff]
    %v2458 = vld [vmem:[%s1077 + $0x50] sm:$0xff]
    %v2459 = vld [vmem:[%s1077 + $0x60] sm:$0xff]
    %v2460 = vld [vmem:[%s1077 + $0x70] sm:$0xff]
    %v2461 = vld [vmem:[%s1077 + $0xa0] sm:$0xff]
    %v2462 = vld [vmem:[%s1077 + $0xb0] sm:$0xff]
    %v2463 = vld [vmem:[%s1077 + $0xc0] sm:$0xff]
    %v2464 = vld [vmem:[%s1077 + $0xd0] sm:$0xff]
    %v2465 = vld [vmem:[%s1077 + $0xe0] sm:$0xff]
    %v2466 = vld [vmem:[%s1077 + $0xf0] sm:$0xff]
    %v2467 = vld [vmem:[%s1077 + $0x100] sm:$0xff]
    %v2468 = vld [vmem:[%s1077 + $0x110] sm:$0xff]
    %v2469 = vld [vmem:[%s1077 + $0x1] sm:$0xff]
    %v2470 = vld [vmem:[%s1077 + $0x11] sm:$0xff]
    %v2471 = vld [vmem:[%s1077 + $0x21] sm:$0xff]
    %v2472 = vld [vmem:[%s1077 + $0x31] sm:$0xff]
    %v2473 = vld [vmem:[%s1077 + $0x41] sm:$0xff]
    %v2474 = vld [vmem:[%s1077 + $0x51] sm:$0xff]
    %v2475 = vld [vmem:[%s1077 + $0x61] sm:$0xff]
    %v2476 = vld [vmem:[%s1077 + $0x71] sm:$0xff]
    %v2477 = vld [vmem:[%s1077 + $0xa1] sm:$0xff]
    %v2478 = vld [vmem:[%s1077 + $0xb1] sm:$0xff]
    %v2479 = vld [vmem:[%s1077 + $0xc1] sm:$0xff]
    %v2480 = vld [vmem:[%s1077 + $0xd1] sm:$0xff]
    %v2481 = vld [vmem:[%s1077 + $0xe1] sm:$0xff]
    %v2482 = vld [vmem:[%s1077 + $0xf1] sm:$0xff]
    %v2483 = vld [vmem:[%s1077 + $0x101] sm:$0xff]
    %v2484 = vld [vmem:[%s1077 + $0x111] sm:$0xff]
    %v2485 = vld [vmem:[%s1077 + $0x2] sm:$0xff]
    %v2486 = vld [vmem:[%s1077 + $0x12] sm:$0xff]
    %v2487 = vld [vmem:[%s1077 + $0x22] sm:$0xff]
    %v2488 = vld [vmem:[%s1077 + $0x32] sm:$0xff]
    %v2489 = vld [vmem:[%s1077 + $0x42] sm:$0xff]
    %v2490 = vld [vmem:[%s1077 + $0x52] sm:$0xff]
    %v2491 = vld [vmem:[%s1077 + $0x62] sm:$0xff]
    %v2492 = vld [vmem:[%s1077 + $0x72] sm:$0xff]
    %v2493 = vld [vmem:[%s1077 + $0xa2] sm:$0xff]
    %v2494 = vld [vmem:[%s1077 + $0xb2] sm:$0xff]
    %v2495 = vld [vmem:[%s1077 + $0xc2] sm:$0xff]
    %v2496 = vld [vmem:[%s1077 + $0xd2] sm:$0xff]
    %v2497 = vld [vmem:[%s1077 + $0xe2] sm:$0xff]
    %v2498 = vld [vmem:[%s1077 + $0xf2] sm:$0xff]
    %v2499 = vld [vmem:[%s1077 + $0x102] sm:$0xff]
    %v2500 = vld [vmem:[%s1077 + $0x112] sm:$0xff]
    %s2501 = scalar_lea.vmem [#allocation9], 1920
    %v2502 = vld [vmem:[%s2501] sm:$0xff]
    %v2503 = vld [vmem:[%s2501 + $0x8] sm:$0xff]
    %v2504 = vld [vmem:[%s2501 + $0x10] sm:$0xff]
    %v2505 = vld [vmem:[%s2501 + $0x18] sm:$0xff]
    %v2506 = vld [vmem:[%s2501 + $0x20] sm:$0xff]
    %v2507 = vld [vmem:[%s2501 + $0x28] sm:$0xff]
    %v2508 = vld [vmem:[%s2501 + $0x30] sm:$0xff]
    %v2509 = vld [vmem:[%s2501 + $0x38] sm:$0xff]
    %v2510 = vld [vmem:[%s2501 + $0x40] sm:$0xff]
    %v2511 = vld [vmem:[%s2501 + $0x48] sm:$0xff]
    %v2512 = vld [vmem:[%s2501 + $0x50] sm:$0xff]
    %v2513 = vld [vmem:[%s2501 + $0x58] sm:$0xff]
    %v2514 = vld [vmem:[%s2501 + $0x60] sm:$0xff]
    %v2515 = vld [vmem:[%s2501 + $0x68] sm:$0xff]
    %v2516 = vld [vmem:[%s2501 + $0x70] sm:$0xff]
    %v2517 = vld [vmem:[%s2501 + $0x78] sm:$0xff]
    %v2518 = vld [vmem:[%s2501 + $0x80] sm:$0xff]
    %v2519 = vld [vmem:[%s2501 + $0x88] sm:$0xff]
    %v2520 = vld [vmem:[%s2501 + $0x90] sm:$0xff]
    %v2521 = vld [vmem:[%s2501 + $0x98] sm:$0xff]
    %v2522 = vld [vmem:[%s2501 + $0xa0] sm:$0xff]
    %v2523 = vld [vmem:[%s2501 + $0xa8] sm:$0xff]
    %v2524 = vld [vmem:[%s2501 + $0xb0] sm:$0xff]
    %v2525 = vld [vmem:[%s2501 + $0xb8] sm:$0xff]
    %v2526 = vld [vmem:[%s2501 + $0xc0] sm:$0xff]
    %v2527 = vld [vmem:[%s2501 + $0xc8] sm:$0xff]
    %v2528 = vld [vmem:[%s2501 + $0xd0] sm:$0xff]
    %v2529 = vld [vmem:[%s2501 + $0xd8] sm:$0xff]
    %v2530 = vld [vmem:[%s2501 + $0xe0] sm:$0xff]
    %v2531 = vld [vmem:[%s2501 + $0xe8] sm:$0xff]
    %v2532 = vld [vmem:[%s2501 + $0xf0] sm:$0xff]
    %v2533 = vld [vmem:[%s2501 + $0xf8] sm:$0xff]
    %v2534 = vld [vmem:[%s2501 + $0x100] sm:$0xff]
    %v2535 = vld [vmem:[%s2501 + $0x108] sm:$0xff]
    %v2536 = vld [vmem:[%s2501 + $0x110] sm:$0xff]
    %v2537 = vld [vmem:[%s2501 + $0x118] sm:$0xff]
    %v2538 = vld [vmem:[%s2501 + $0x120] sm:$0xff]
    %v2539 = vld [vmem:[%s2501 + $0x128] sm:$0xff]
    %v2540 = vld [vmem:[%s2501 + $0x130] sm:$0xff]
    %v2541 = vld [vmem:[%s2501 + $0x138] sm:$0xff]
    %v2542 = vld [vmem:[%s2501 + $0x140] sm:$0xff]
    %v2543 = vld [vmem:[%s2501 + $0x148] sm:$0xff]
    %v2544 = vld [vmem:[%s2501 + $0x150] sm:$0xff]
    %v2545 = vld [vmem:[%s2501 + $0x158] sm:$0xff]
    %v2546 = vld [vmem:[%s2501 + $0x160] sm:$0xff]
    %v2547 = vld [vmem:[%s2501 + $0x168] sm:$0xff]
    %v2548 = vld [vmem:[%s2501 + $0x170] sm:$0xff]
    %v2549 = vld [vmem:[%s2501 + $0x178] sm:$0xff]
    %2550 = vmatprep.subr.mxu0 0.0
    %2551 = vmatpush1.msra.mxu0 %v2517
    %2552 = vmatprep.subr.mxu0 0.0
    %2553 = vmatpush1.msra.mxu0 %v2516
    %2554 = vmatprep.subr.mxu0 0.0
    %2555 = vmatpush1.msra.mxu0 %v2515
    %2556 = vmatprep.subr.mxu0 0.0
    %2557 = vmatpush1.msra.mxu0 %v2514
    %2558 = vmatprep.subr.mxu0 0.0
    %2559 = vmatpush1.msra.mxu0 %v2513
    %2560 = vmatprep.subr.mxu0 0.0
    %2561 = vmatpush1.msra.mxu0 %v2512
    %2562 = vmatprep.subr.mxu0 0.0
    %2563 = vmatpush1.msra.mxu0 %v2511
    %2564 = vmatprep.subr.mxu0 0.0
    %2565 = vmatpush1.msra.mxu0 %v2510
    %2566 = vmatprep.subr.mxu0 0.0
    %2567 = vmatpush1.msra.mxu0 %v2509
    %2568 = vmatprep.subr.mxu0 0.0
    %2569 = vmatpush1.msra.mxu0 %v2508
    %2570 = vmatprep.subr.mxu0 0.0
    %2571 = vmatpush1.msra.mxu0 %v2507
    %2572 = vmatprep.subr.mxu0 0.0
    %2573 = vmatpush1.msra.mxu0 %v2506
    %2574 = vmatprep.subr.mxu0 0.0
    %2575 = vmatpush1.msra.mxu0 %v2505
    %2576 = vmatprep.subr.mxu0 0.0
    %2577 = vmatpush1.msra.mxu0 %v2504
    %2578 = vmatprep.subr.mxu0 0.0
    %2579 = vmatpush1.msra.mxu0 %v2503
    %2580 = vmatprep.subr.mxu0 0.0
    %2581 = vmatpush1.msra.mxu0 %v2502
    %2582 = vmatprep.subr.mxu0 0.0
    %2583 = vmatpush2.msra.mxu0 %v2533
    %2584 = vmatprep.subr.mxu0 0.0
    %2585 = vmatpush2.msra.mxu0 %v2532
    %2586 = vmatprep.subr.mxu0 0.0
    %2587 = vmatpush2.msra.mxu0 %v2531
    %2588 = vmatprep.subr.mxu0 0.0
    %2589 = vmatpush2.msra.mxu0 %v2530
    %2590 = vmatprep.subr.mxu0 0.0
    %2591 = vmatpush2.msra.mxu0 %v2529
    %2592 = vmatprep.subr.mxu0 0.0
    %2593 = vmatpush2.msra.mxu0 %v2528
    %2594 = vmatprep.subr.mxu0 0.0
    %2595 = vmatpush2.msra.mxu0 %v2527
    %2596 = vmatprep.subr.mxu0 0.0
    %2597 = vmatpush2.msra.mxu0 %v2526
    %2598 = vmatprep.subr.mxu0 0.0
    %2599 = vmatpush2.msra.mxu0 %v2525
    %2600 = vmatprep.subr.mxu0 0.0
    %2601 = vmatpush2.msra.mxu0 %v2524
    %2602 = vmatprep.subr.mxu0 0.0
    %2603 = vmatpush2.msra.mxu0 %v2523
    %2604 = vmatprep.subr.mxu0 0.0
    %2605 = vmatpush2.msra.mxu0 %v2522
    %2606 = vmatprep.subr.mxu0 0.0
    %2607 = vmatpush2.msra.mxu0 %v2521
    %2608 = vmatprep.subr.mxu0 0.0
    %2609 = vmatpush2.msra.mxu0 %v2520
    %2610 = vmatprep.subr.mxu0 0.0
    %2611 = vmatpush2.msra.mxu0 %v2519
    %2612 = vmatprep.subr.mxu0 0.0
    %2613 = vmatpush2.msra.mxu0 %v2518
    %2614 = vmatprep.mubr.f32.mxu0 %v2469
    %2615 = vmatmul.mubr.f32.gmra.mxu0 %v2453
    %v2616 = vpop.f32.mrf.mxu0
    %v2617 = vadd.f32 0.0, %v2616
    %v2618 = vpop.f32.mrf.mxu0
    %2619 = vmatprep.mubr.f32.mxu0 %v2470
    %2620 = vmatmul.mubr.f32.gmra.mxu0 %v2454
    %v2621 = vpop.f32.mrf.mxu0
    %v2622 = vadd.f32 0.0, %v2621
    %v2623 = vpop.f32.mrf.mxu0
    %2624 = vmatprep.mubr.f32.mxu0 %v2471
    %2625 = vmatmul.mubr.f32.gmra.mxu0 %v2455
    %v2626 = vpop.f32.mrf.mxu0
    %v2627 = vadd.f32 0.0, %v2626
    %v2628 = vpop.f32.mrf.mxu0
    %2629 = vmatprep.mubr.f32.mxu0 %v2472
    %2630 = vmatmul.mubr.f32.gmra.mxu0 %v2456
    %v2631 = vpop.f32.mrf.mxu0
    %v2632 = vadd.f32 0.0, %v2631
    %v2633 = vpop.f32.mrf.mxu0
    %2634 = vmatprep.mubr.f32.mxu0 %v2473
    %2635 = vmatmul.mubr.f32.gmra.mxu0 %v2457
    %v2636 = vpop.f32.mrf.mxu0
    %v2637 = vadd.f32 0.0, %v2636
    %v2638 = vpop.f32.mrf.mxu0
    %2639 = vmatprep.mubr.f32.mxu0 %v2474
    %2640 = vmatmul.mubr.f32.gmra.mxu0 %v2458
    %v2641 = vpop.f32.mrf.mxu0
    %v2642 = vadd.f32 0.0, %v2641
    %v2643 = vpop.f32.mrf.mxu0
    %2644 = vmatprep.mubr.f32.mxu0 %v2475
    %2645 = vmatmul.mubr.f32.gmra.mxu0 %v2459
    %v2646 = vpop.f32.mrf.mxu0
    %v2647 = vadd.f32 0.0, %v2646
    %v2648 = vpop.f32.mrf.mxu0
    %2649 = vmatprep.mubr.f32.mxu0 %v2476
    %2650 = vmatmul.mubr.f32.gmra.mxu0 %v2460
    %v2651 = vpop.f32.mrf.mxu0
    %v2652 = vadd.f32 0.0, %v2651
    %v2653 = vpop.f32.mrf.mxu0
    %2654 = vmatprep.mubr.f32.mxu0 %v2477
    %2655 = vmatmul.mubr.f32.gmra.mxu0 %v2461
    %v2656 = vpop.f32.mrf.mxu0
    %v2657 = vadd.f32 0.0, %v2656
    %v2658 = vpop.f32.mrf.mxu0
    %2659 = vmatprep.mubr.f32.mxu0 %v2478
    %2660 = vmatmul.mubr.f32.gmra.mxu0 %v2462
    %v2661 = vpop.f32.mrf.mxu0
    %v2662 = vadd.f32 0.0, %v2661
    %v2663 = vpop.f32.mrf.mxu0
    %2664 = vmatprep.mubr.f32.mxu0 %v2479
    %2665 = vmatmul.mubr.f32.gmra.mxu0 %v2463
    %v2666 = vpop.f32.mrf.mxu0
    %v2667 = vadd.f32 0.0, %v2666
    %v2668 = vpop.f32.mrf.mxu0
    %2669 = vmatprep.mubr.f32.mxu0 %v2480
    %2670 = vmatmul.mubr.f32.gmra.mxu0 %v2464
    %v2671 = vpop.f32.mrf.mxu0
    %v2672 = vadd.f32 0.0, %v2671
    %v2673 = vpop.f32.mrf.mxu0
    %2674 = vmatprep.mubr.f32.mxu0 %v2481
    %2675 = vmatmul.mubr.f32.gmra.mxu0 %v2465
    %v2676 = vpop.f32.mrf.mxu0
    %v2677 = vadd.f32 0.0, %v2676
    %v2678 = vpop.f32.mrf.mxu0
    %2679 = vmatprep.mubr.f32.mxu0 %v2482
    %2680 = vmatmul.mubr.f32.gmra.mxu0 %v2466
    %v2681 = vpop.f32.mrf.mxu0
    %v2682 = vadd.f32 0.0, %v2681
    %v2683 = vpop.f32.mrf.mxu0
    %2684 = vmatprep.mubr.f32.mxu0 %v2483
    %2685 = vmatmul.mubr.f32.gmra.mxu0 %v2467
    %v2686 = vpop.f32.mrf.mxu0
    %v2687 = vadd.f32 0.0, %v2686
    %v2688 = vpop.f32.mrf.mxu0
    %2689 = vmatprep.mubr.f32.mxu0 %v2484
    %2690 = vmatmul.mubr.f32.gmra.mxu0 %v2468
    %v2691 = vpop.f32.mrf.mxu0
    %v2692 = vadd.f32 0.0, %v2691
    %v2693 = vpop.f32.mrf.mxu0
    %2694 = vdwg.mxu0
    %2695 = vmatprep.subr.mxu0 0.0
    %2696 = vmatpush1.msra.mxu0 %v2549
    %2697 = vmatprep.subr.mxu0 0.0
    %2698 = vmatpush1.msra.mxu0 %v2548
    %2699 = vmatprep.subr.mxu0 0.0
    %2700 = vmatpush1.msra.mxu0 %v2547
    %2701 = vmatprep.subr.mxu0 0.0
    %2702 = vmatpush1.msra.mxu0 %v2546
    %2703 = vmatprep.subr.mxu0 0.0
    %2704 = vmatpush1.msra.mxu0 %v2545
    %2705 = vmatprep.subr.mxu0 0.0
    %2706 = vmatpush1.msra.mxu0 %v2544
    %2707 = vmatprep.subr.mxu0 0.0
    %2708 = vmatpush1.msra.mxu0 %v2543
    %2709 = vmatprep.subr.mxu0 0.0
    %2710 = vmatpush1.msra.mxu0 %v2542
    %2711 = vmatprep.subr.mxu0 0.0
    %2712 = vmatpush1.msra.mxu0 %v2541
    %2713 = vmatprep.subr.mxu0 0.0
    %2714 = vmatpush1.msra.mxu0 %v2540
    %2715 = vmatprep.subr.mxu0 0.0
    %2716 = vmatpush1.msra.mxu0 %v2539
    %2717 = vmatprep.subr.mxu0 0.0
    %2718 = vmatpush1.msra.mxu0 %v2538
    %2719 = vmatprep.subr.mxu0 0.0
    %2720 = vmatpush1.msra.mxu0 %v2537
    %2721 = vmatprep.subr.mxu0 0.0
    %2722 = vmatpush1.msra.mxu0 %v2536
    %2723 = vmatprep.subr.mxu0 0.0
    %2724 = vmatpush1.msra.mxu0 %v2535
    %2725 = vmatprep.subr.mxu0 0.0
    %2726 = vmatpush1.msra.mxu0 %v2534
    %2727 = vmatprep.subr.mxu0 0.0
    %2728 = vmatpush2.msra.mxu0 0.0
    %2729 = vmatprep.subr.mxu0 0.0
    %2730 = vmatpush2.msra.mxu0 0.0
    %2731 = vmatprep.subr.mxu0 0.0
    %2732 = vmatpush2.msra.mxu0 0.0
    %2733 = vmatprep.subr.mxu0 0.0
    %2734 = vmatpush2.msra.mxu0 0.0
    %2735 = vmatprep.subr.mxu0 0.0
    %2736 = vmatpush2.msra.mxu0 0.0
    %2737 = vmatprep.subr.mxu0 0.0
    %2738 = vmatpush2.msra.mxu0 0.0
    %2739 = vmatprep.subr.mxu0 0.0
    %2740 = vmatpush2.msra.mxu0 0.0
    %2741 = vmatprep.subr.mxu0 0.0
    %2742 = vmatpush2.msra.mxu0 0.0
    %2743 = vmatprep.subr.mxu0 0.0
    %2744 = vmatpush2.msra.mxu0 0.0
    %2745 = vmatprep.subr.mxu0 0.0
    %2746 = vmatpush2.msra.mxu0 0.0
    %2747 = vmatprep.subr.mxu0 0.0
    %2748 = vmatpush2.msra.mxu0 0.0
    %2749 = vmatprep.subr.mxu0 0.0
    %2750 = vmatpush2.msra.mxu0 0.0
    %2751 = vmatprep.subr.mxu0 0.0
    %2752 = vmatpush2.msra.mxu0 0.0
    %2753 = vmatprep.subr.mxu0 0.0
    %2754 = vmatpush2.msra.mxu0 0.0
    %2755 = vmatprep.subr.mxu0 0.0
    %2756 = vmatpush2.msra.mxu0 0.0
    %2757 = vmatprep.subr.mxu0 0.0
    %2758 = vmatpush2.msra.mxu0 0.0
    %2759 = vmatprep.mubr.f32.mxu0 0.0
    %2760 = vmatmul.mubr.f32.gmra.mxu0 %v2485
    %v2761 = vpop.f32.mrf.mxu0
    %v2762 = vadd.f32 %v2617, %v2761
    %v2763 = vpop.f32.mrf.mxu0
    %2764 = vmatprep.mubr.f32.mxu0 0.0
    %2765 = vmatmul.mubr.f32.gmra.mxu0 %v2486
    %v2766 = vpop.f32.mrf.mxu0
    %v2767 = vadd.f32 %v2622, %v2766
    %v2768 = vpop.f32.mrf.mxu0
    %2769 = vmatprep.mubr.f32.mxu0 0.0
    %2770 = vmatmul.mubr.f32.gmra.mxu0 %v2487
    %v2771 = vpop.f32.mrf.mxu0
    %v2772 = vadd.f32 %v2627, %v2771
    %v2773 = vpop.f32.mrf.mxu0
    %2774 = vmatprep.mubr.f32.mxu0 0.0
    %2775 = vmatmul.mubr.f32.gmra.mxu0 %v2488
    %v2776 = vpop.f32.mrf.mxu0
    %v2777 = vadd.f32 %v2632, %v2776
    %v2778 = vpop.f32.mrf.mxu0
    %2779 = vmatprep.mubr.f32.mxu0 0.0
    %2780 = vmatmul.mubr.f32.gmra.mxu0 %v2489
    %v2781 = vpop.f32.mrf.mxu0
    %v2782 = vadd.f32 %v2637, %v2781
    %v2783 = vpop.f32.mrf.mxu0
    %2784 = vmatprep.mubr.f32.mxu0 0.0
    %2785 = vmatmul.mubr.f32.gmra.mxu0 %v2490
    %v2786 = vpop.f32.mrf.mxu0
    %v2787 = vadd.f32 %v2642, %v2786
    %v2788 = vpop.f32.mrf.mxu0
    %2789 = vmatprep.mubr.f32.mxu0 0.0
    %2790 = vmatmul.mubr.f32.gmra.mxu0 %v2491
    %v2791 = vpop.f32.mrf.mxu0
    %v2792 = vadd.f32 %v2647, %v2791
    %v2793 = vpop.f32.mrf.mxu0
    %2794 = vmatprep.mubr.f32.mxu0 0.0
    %2795 = vmatmul.mubr.f32.gmra.mxu0 %v2492
    %v2796 = vpop.f32.mrf.mxu0
    %v2797 = vadd.f32 %v2652, %v2796
    %v2798 = vpop.f32.mrf.mxu0
    %2799 = vmatprep.mubr.f32.mxu0 0.0
    %2800 = vmatmul.mubr.f32.gmra.mxu0 %v2493
    %v2801 = vpop.f32.mrf.mxu0
    %v2802 = vadd.f32 %v2657, %v2801
    %v2803 = vpop.f32.mrf.mxu0
    %2804 = vmatprep.mubr.f32.mxu0 0.0
    %2805 = vmatmul.mubr.f32.gmra.mxu0 %v2494
    %v2806 = vpop.f32.mrf.mxu0
    %v2807 = vadd.f32 %v2662, %v2806
    %v2808 = vpop.f32.mrf.mxu0
    %2809 = vmatprep.mubr.f32.mxu0 0.0
    %2810 = vmatmul.mubr.f32.gmra.mxu0 %v2495
    %v2811 = vpop.f32.mrf.mxu0
    %v2812 = vadd.f32 %v2667, %v2811
    %v2813 = vpop.f32.mrf.mxu0
    %2814 = vmatprep.mubr.f32.mxu0 0.0
    %2815 = vmatmul.mubr.f32.gmra.mxu0 %v2496
    %v2816 = vpop.f32.mrf.mxu0
    %v2817 = vadd.f32 %v2672, %v2816
    %v2818 = vpop.f32.mrf.mxu0
    %2819 = vmatprep.mubr.f32.mxu0 0.0
    %2820 = vmatmul.mubr.f32.gmra.mxu0 %v2497
    %v2821 = vpop.f32.mrf.mxu0
    %v2822 = vadd.f32 %v2677, %v2821
    %v2823 = vpop.f32.mrf.mxu0
    %2824 = vmatprep.mubr.f32.mxu0 0.0
    %2825 = vmatmul.mubr.f32.gmra.mxu0 %v2498
    %v2826 = vpop.f32.mrf.mxu0
    %v2827 = vadd.f32 %v2682, %v2826
    %v2828 = vpop.f32.mrf.mxu0
    %2829 = vmatprep.mubr.f32.mxu0 0.0
    %2830 = vmatmul.mubr.f32.gmra.mxu0 %v2499
    %v2831 = vpop.f32.mrf.mxu0
    %v2832 = vadd.f32 %v2687, %v2831
    %v2833 = vpop.f32.mrf.mxu0
    %2834 = vmatprep.mubr.f32.mxu0 0.0
    %2835 = vmatmul.mubr.f32.gmra.mxu0 %v2500
    %v2836 = vpop.f32.mrf.mxu0
    %v2837 = vadd.f32 %v2692, %v2836
    %v2838 = vpop.f32.mrf.mxu0
    %2839 = vdwg.mxu0
    %v2840 = vadd.f32 %v2375, %v2762
    %v2841 = vadd.f32 %v2380, %v2767
    %v2842 = vadd.f32 %v2385, %v2772
    %v2843 = vadd.f32 %v2390, %v2777
    %v2844 = vadd.f32 %v2395, %v2782
    %v2845 = vadd.f32 %v2400, %v2787
    %v2846 = vadd.f32 %v2405, %v2792
    %v2847 = vadd.f32 %v2410, %v2797
    %v2848 = vadd.f32 %v2415, %v2802
    %v2849 = vadd.f32 %v2420, %v2807
    %v2850 = vadd.f32 %v2425, %v2812
    %v2851 = vadd.f32 %v2430, %v2817
    %v2852 = vadd.f32 %v2435, %v2822
    %v2853 = vadd.f32 %v2440, %v2827
    %v2854 = vadd.f32 %v2445, %v2832
    %v2855 = vadd.f32 %v2450, %v2837
    %v2856 = vadd.f32 %v1504, %v2840
    %v2857 = vadd.f32 %v1505, %v2841
    %v2858 = vadd.f32 %v1506, %v2842
    %v2859 = vadd.f32 %v1507, %v2843
    %v2860 = vadd.f32 %v1508, %v2844
    %v2861 = vadd.f32 %v1509, %v2845
    %v2862 = vadd.f32 %v1510, %v2846
    %v2863 = vadd.f32 %v1511, %v2847
    %v2864 = vadd.f32 %v1512, %v2848
    %v2865 = vadd.f32 %v1513, %v2849
    %v2866 = vadd.f32 %v1514, %v2850
    %v2867 = vadd.f32 %v1515, %v2851
    %v2868 = vadd.f32 %v1516, %v2852
    %v2869 = vadd.f32 %v1517, %v2853
    %v2870 = vadd.f32 %v1518, %v2854
    %v2871 = vadd.f32 %v1519, %v2855
    %s2872 = scalar_lea.vmem [#allocation11], 1
    %v2873 = vld [vmem:[%s2872] sm:$0x1]
    %v2875 = vlaneseq
    %v2876 = vshrl.u32 %v2875, 7
    %v2877 = vsub.s32 0, %v2876
    %v2878 = vrot.slane %v2873, %v2877
    %v2880 = vadd.f32 %v2856, %v2878
    %v2881 = vadd.f32 %v2857, %v2878
    %v2882 = vadd.f32 %v2858, %v2878
    %v2883 = vadd.f32 %v2859, %v2878
    %v2884 = vadd.f32 %v2860, %v2878
    %v2885 = vadd.f32 %v2861, %v2878
    %v2886 = vadd.f32 %v2862, %v2878
    %v2887 = vadd.f32 %v2863, %v2878
    %v2888 = vadd.f32 %v2864, %v2878
    %v2889 = vadd.f32 %v2865, %v2878
    %v2890 = vadd.f32 %v2866, %v2878
    %v2891 = vadd.f32 %v2867, %v2878
    %v2892 = vadd.f32 %v2868, %v2878
    %v2893 = vadd.f32 %v2869, %v2878
    %v2894 = vadd.f32 %v2870, %v2878
    %v2895 = vadd.f32 %v2871, %v2878
    %2896 = vst [vmem:[#allocation12] sm:$0xff] %v2880
    %2897 = vst [vmem:[#allocation12 + $0x8] sm:$0xff] %v2881
    %2898 = vst [vmem:[#allocation12 + $0x10] sm:$0xff] %v2882
    %2899 = vst [vmem:[#allocation12 + $0x18] sm:$0xff] %v2883
    %2900 = vst [vmem:[#allocation12 + $0x20] sm:$0xff] %v2884
    %2901 = vst [vmem:[#allocation12 + $0x28] sm:$0xff] %v2885
    %2902 = vst [vmem:[#allocation12 + $0x30] sm:$0xff] %v2886
    %2903 = vst [vmem:[#allocation12 + $0x38] sm:$0xff] %v2887
    %2904 = vst [vmem:[#allocation12 + $0x40] sm:$0xff] %v2888
    %2905 = vst [vmem:[#allocation12 + $0x48] sm:$0xff] %v2889
    %2906 = vst [vmem:[#allocation12 + $0x50] sm:$0xff] %v2890
    %2907 = vst [vmem:[#allocation12 + $0x58] sm:$0xff] %v2891
    %2908 = vst [vmem:[#allocation12 + $0x60] sm:$0xff] %v2892
    %2909 = vst [vmem:[#allocation12 + $0x68] sm:$0xff] %v2893
    %2910 = vst [vmem:[#allocation12 + $0x70] sm:$0xff] %v2894
    %2911 = vst [vmem:[#allocation12 + $0x78] sm:$0xff] %v2895
    // Predicated region
    $region42: #{tpu_custom_call.1} parent=1 // pred_check
      _
    $region43: #{tpu_custom_call.1} parent=1 // pred_check_branch
      %2913 = sbr.rel (0) target = $region45
    $region44: #{tpu_custom_call.1} parent=1 // pred_region
      %s2915 = ssub.s32 2048, 2048
      %2916 = vsyncadd [#allocation5], %s2915
      %s2917 = sshll.u32 [#allocation12], 4
      %s2918 = int_to_ptr.vmem [resolvable:$true] %s2917
      %2923 = dma.vmem_to_hbm [thread:$0]  %s2918, 2048, %s5, [#allocation5], 128, 128, 8
    $region45: #{tpu_custom_call.1} parent=1 // pred_fallthru
      _
    // Predicated region
    $region46: #{tpu_custom_call.1} parent=1 // pred_check
      _
    $region47: #{tpu_custom_call.1} parent=1 // pred_check_branch
      %2925 = sbr.rel (0) target = $region49
    $region48: #{tpu_custom_call.1} parent=1 // pred_region
      %2926 = dma.done [#allocation5], 2048
    $region49: #{tpu_custom_call.1} parent=1 // pred_fallthru
      _
    %2927 = vsyncpa [#allocation4], 1
    %2928 = vsyncpa [#allocation7], 1
    %2929 = vsyncpa [#allocation10], 1
    %2930 = vsyncpa [#allocation5], 1

</llo_original>
